<compile_context>
chip_gen: v6e
topology: v6e:2x2x1
jax: 0.10.0
libtpu: 0.0.40
codegen_flags: <defaults>
</compile_context>

<pallas_src>
import jax
import jax.numpy as jnp
from jax.experimental import pallas as pl
from jax.experimental.pallas import tpu as pltpu

GATE_LANES = 128      # per-gate lane stride (>= H, multiple of 128)
B_BLK = 8             # sublane-aligned batch block


# ---------------------------------------------------------------------------
# Fused Pallas kernel: all GRU layers + fc head in one call
# ---------------------------------------------------------------------------
def make_fused_gru_kernel(num_layers, T, H, mxu_dtype):
    """Ref order: x(T*8, D_in), per layer [w_ih_fused(D_in,3*128),
    w_hh_fused(H,3*128), b_gi(1,3*128), b_hn(1,H)], fc_w(H,C_pad),
    fc_b(1,C_pad), out(8,C_pad), gi_scratch(T*8,3*128), seq_scratch(T*8,H).
    Gate lane blocks: 0 -> r, 128 -> z, 256 -> n (PyTorch gate order)."""
    GL = GATE_LANES

    def kernel(*refs):
        x_ref = refs[0]
        fc_w_ref = refs[1 + 4 * num_layers]
        fc_b_ref = refs[2 + 4 * num_layers]
        out_ref = refs[3 + 4 * num_layers]
        gi_ref = refs[4 + 4 * num_layers]      # (T*8, 3*128) f32 scratch
        seq_ref = refs[5 + 4 * num_layers]     # (T*8, H)     f32 scratch

        h = jnp.zeros((B_BLK, H), jnp.float32)
        for l in range(num_layers):
            w_ih_ref, w_hh_ref, b_gi_ref, b_hn_ref = refs[1 + 4 * l: 5 + 4 * l]

            # --- hoisted input projection: one fused matmul over all T steps ---
            seq = x_ref[...] if l == 0 else seq_ref[...]
            gi_ref[...] = (
                jnp.dot(seq.astype(mxu_dtype), w_ih_ref[...],
                        preferred_element_type=jnp.float32)
                + b_gi_ref[...]                 # b_ih (+ b_hh for r,z) folded in
            )

            # --- hoisted recurrent weight / bias loads ---
            w_hh = w_hh_ref[...]                              # (H, 3*128), mxu dtype
            b_hn = jnp.broadcast_to(b_hn_ref[...], (B_BLK, H))

            need_seq = (l + 1 < num_layers)
            h = jnp.zeros((B_BLK, H), jnp.float32)
            # Serialized recurrence: one fused MXU pass per step (gi precomputed).
            for t in range(T):                                # small static T
                gh = jnp.dot(h.astype(mxu_dtype), w_hh,
                             preferred_element_type=jnp.float32)  # (8, 3*128)
                gi_t = gi_ref[t * B_BLK:(t + 1) * B_BLK, :]       # tile-aligned
                r = jax.nn.sigmoid(gi_t[:, 0:H] + gh[:, 0:H])
                z = jax.nn.sigmoid(gi_t[:, GL:GL + H] + gh[:, GL:GL + H])
                n = jnp.tanh(gi_t[:, 2 * GL:2 * GL + H]
                             + r * (gh[:, 2 * GL:2 * GL + H] + b_hn))
                h = (1.0 - z) * n + z * h
                if need_seq:
                    seq_ref[t * B_BLK:(t + 1) * B_BLK, :] = h

        # fc head on the last layer's last-timestep hidden state.
        out_ref[...] = (
            jnp.dot(h.astype(mxu_dtype), fc_w_ref[...],
                    preferred_element_type=jnp.float32)
            + fc_b_ref[...]
        ).astype(out_ref.dtype)

    return kernel


# ---------------------------------------------------------------------------
# Wrapper: layout plumbing (padding, gate fusion) done XLA-side
# ---------------------------------------------------------------------------
def gru_model_forward(x_btd, params, mxu_dtype=jnp.float32):
    """Equivalent of GRUModel.forward. x_btd: (B, T, input_size), batch_first."""
    B, T, D = x_btd.shape
    layers = params["gru_layers"]
    num_layers = len(layers)
    H = layers[0]["w_hh"].shape[-1]
    C = params["fc_w"].shape[-1]
    GL = GATE_LANES

    n_b = pl.cdiv(B, B_BLK)
    B_pad = n_b * B_BLK
    C_pad = pl.cdiv(C, 128) * 128

    # Pad batch to a sublane multiple, go time-major per batch block:
    # (B,T,D) -> (n_b, T*B_BLK, D) with row index = t*B_BLK + j.
    x = x_btd.astype(jnp.float32)
    if B_pad != B:
        x = jnp.pad(x, ((0, B_pad - B), (0, 0), (0, 0)))
    x = x.reshape(n_b, B_BLK, T, D).transpose(0, 2, 1, 3).reshape(n_b, T * B_BLK, D)

    def fuse_w(w3):        # (3, D_in, H) -> (D_in, 3*128), gates lane-padded
        d_in = w3.shape[1]
        out = jnp.zeros((d_in, 3 * GL), jnp.float32)
        for g in range(3):
            out = out.at[:, g * GL:g * GL + H].set(w3[g])
        return out.astype(mxu_dtype)

    def fuse_b(b_ih, b_hh):  # fold b_hh into r,z; n keeps only b_ih here
        out = jnp.zeros((1, 3 * GL), jnp.float32)
        out = out.at[:, 0:H].set(b_ih[0] + b_hh[0])
        out = out.at[:, GL:GL + H].set(b_ih[1] + b_hh[1])
        out = out.at[:, 2 * GL:2 * GL + H].set(b_ih[2])
        return out

    inputs = [x]
    for layer in layers:
        inputs += [fuse_w(layer["w_ih"]), fuse_w(layer["w_hh"]),
                   fuse_b(layer["b_ih"], layer["b_hh"]),
                   layer["b_hh"][2]]                       # b_hn, (1, H)
    fc_w = jnp.zeros((H, C_pad), jnp.float32).at[:, :C].set(
        params["fc_w"]).astype(mxu_dtype)
    fc_b = jnp.zeros((1, C_pad), jnp.float32).at[:, :C].set(params["fc_b"])
    inputs += [fc_w, fc_b]

    in_specs = [pl.BlockSpec((None, T * B_BLK, D), lambda b: (b, 0, 0))]
    for a in inputs[1:]:
        in_specs.append(pl.BlockSpec(a.shape, lambda b: (0, 0)))

    kernel = make_fused_gru_kernel(num_layers, T, H, mxu_dtype)

    out_pad = pl.pallas_call(
        kernel,
        out_shape=jax.ShapeDtypeStruct((B_pad, C_pad), jnp.float32),
        grid_spec=pltpu.PrefetchScalarGridSpec(
            num_scalar_prefetch=0,
            grid=(n_b,),                                    # batch-parallel axis
            in_specs=in_specs,
            out_specs=pl.BlockSpec((B_BLK, C_pad), lambda b: (b, 0)),
            scratch_shapes=[
                pltpu.VMEM((T * B_BLK, 3 * GL), jnp.float32),   # gi (all steps)
                pltpu.VMEM((T * B_BLK, H), jnp.float32),        # inter-layer seq
            ]),
        compiler_params=pltpu.CompilerParams(
            dimension_semantics=("parallel",),
            vmem_limit_bytes=32 * 1024 * 1024),
    )(*inputs)

    return out_pad[:B, :C]


# ---------------------------------------------------------------------------
# Deterministic parameter init (PyTorch-style uniform(-1/sqrt(H), 1/sqrt(H)))
# Per-gate layout: w_ih (3, D_in, H), w_hh (3, H, H), b_* (3, 1, H); order r,z,n.
# ---------------------------------------------------------------------------
def init_params(key, input_size, hidden_size, num_layers, num_classes):
    bound = 1.0 / (hidden_size ** 0.5)
    layers = []
    for l in range(num_layers):
        d_in = input_size if l == 0 else hidden_size
        key, k1, k2, k3, k4 = jax.random.split(key, 5)
        layers.append(dict(
            w_ih=jax.random.uniform(k1, (3, d_in, hidden_size), jnp.float32,
                                    -bound, bound),
            w_hh=jax.random.uniform(k2, (3, hidden_size, hidden_size), jnp.float32,
                                    -bound, bound),
            b_ih=jax.random.uniform(k3, (3, 1, hidden_size), jnp.float32,
                                    -bound, bound),
            b_hh=jax.random.uniform(k4, (3, 1, hidden_size), jnp.float32,
                                    -bound, bound),
        ))
    key, k5, k6 = jax.random.split(key, 3)
    fc_w = jax.random.uniform(k5, (hidden_size, num_classes), jnp.float32,
                              -bound, bound)
    fc_b = jax.random.uniform(k6, (1, num_classes), jnp.float32, -bound, bound)
    return dict(gru_layers=layers, fc_w=fc_w, fc_b=fc_b)


# ---------------------------------------------------------------------------
# Pure-JAX reference (for the correctness asserts)
# ---------------------------------------------------------------------------
def gru_model_reference(x_btd, params):
    x = jnp.transpose(x_btd, (1, 0, 2)).astype(jnp.float32)   # (T, B, D)
    for layer in params["gru_layers"]:
        w_ih, w_hh = layer["w_ih"], layer["w_hh"]
        b_ih, b_hh = layer["b_ih"], layer["b_hh"]
        H = w_hh.shape[-1]
        B = x.shape[1]

        def step(h, x_t):
            r = jax.nn.sigmoid(x_t @ w_ih[0] + b_ih[0] + h @ w_hh[0] + b_hh[0])
            z = jax.nn.sigmoid(x_t @ w_ih[1] + b_ih[1] + h @ w_hh[1] + b_hh[1])
            n = jnp.tanh(x_t @ w_ih[2] + b_ih[2] + r * (h @ w_hh[2] + b_hh[2]))
            h_new = (1.0 - z) * n + z * h
            return h_new, h_new

        h0 = jnp.zeros((B, H), jnp.float32)
        _, x = jax.lax.scan(step, h0, x)
    return x[-1] @ params["fc_w"] + params["fc_b"]


# ---------------------------------------------------------------------------
if __name__ == "__main__":
    INPUT_SIZE = 16
    HIDDEN_SIZE = 32
    NUM_LAYERS = 2
    NUM_CLASSES = 5
    BATCH = 2
    SEQ = 8

    key = jax.random.PRNGKey(0)
    k_x, k_p = jax.random.split(key)
    x = jax.random.normal(k_x, (BATCH, SEQ, INPUT_SIZE), jnp.float32)
    params = init_params(k_p, INPUT_SIZE, HIDDEN_SIZE, NUM_LAYERS, NUM_CLASSES)

    ref = jax.block_until_ready(gru_model_reference(x, params))

    # f32 MXU path: tight check against the pure-JAX reference.
    out_f32 = jax.block_until_ready(gru_model_forward(x, params, jnp.float32))
    assert out_f32.shape == (BATCH, NUM_CLASSES)
    assert jnp.allclose(out_f32, ref, atol=1e-5, rtol=1e-5), "f32 mismatch vs ref"

    # bf16 MXU operands (v6e/v7x fast path; elementwise stays f32): relaxed check.
    out_bf16 = jax.block_until_ready(gru_model_forward(x, params, jnp.bfloat16))
    assert out_bf16.shape == (BATCH, NUM_CLASSES)
    assert jnp.allclose(out_bf16, ref, atol=5e-2, rtol=5e-2), "bf16 mismatch vs ref"

    print("KERNEL_OK")
</pallas_src>

<mosaic_0001>
module attributes {stable_mosaic.version = 11 : i64} {
  func.func @kernel(%arg0: i32, %arg1: memref<1x64x16xf32, #tpu.memory_space<vmem>>, %arg2: memref<16x384xf32, #tpu.memory_space<vmem>>, %arg3: memref<32x384xf32, #tpu.memory_space<vmem>>, %arg4: memref<1x384xf32, #tpu.memory_space<vmem>>, %arg5: memref<1x32xf32, #tpu.memory_space<vmem>>, %arg6: memref<32x384xf32, #tpu.memory_space<vmem>>, %arg7: memref<32x384xf32, #tpu.memory_space<vmem>>, %arg8: memref<1x384xf32, #tpu.memory_space<vmem>>, %arg9: memref<1x32xf32, #tpu.memory_space<vmem>>, %arg10: memref<32x128xf32, #tpu.memory_space<vmem>>, %arg11: memref<1x128xf32, #tpu.memory_space<vmem>>, %arg12: memref<8x128xf32, #tpu.memory_space<vmem>>, %arg13: memref<64x384xf32, #tpu.memory_space<vmem>>, %arg14: memref<64x32xf32, #tpu.memory_space<vmem>>) attributes {dimension_semantics = [#tpu.dimension_semantics<parallel>], iteration_bounds = array<i64: 1>, scalar_prefetch = 0 : i64, scratch_operands = 2 : i64, tpu.core_type = #tpu.core_type<tc>, window_params = [{transform_indices = @transform_0, window_bounds = array<i64: 1, 64, 16>}, {pipeline_mode = #tpu.pipeline_mode<synchronous>, transform_indices = @transform_1, window_bounds = array<i64: 16, 384>}, {pipeline_mode = #tpu.pipeline_mode<synchronous>, transform_indices = @transform_2, window_bounds = array<i64: 32, 384>}, {pipeline_mode = #tpu.pipeline_mode<synchronous>, transform_indices = @transform_3, window_bounds = array<i64: 1, 384>}, {pipeline_mode = #tpu.pipeline_mode<synchronous>, transform_indices = @transform_4, window_bounds = array<i64: 1, 32>}, {pipeline_mode = #tpu.pipeline_mode<synchronous>, transform_indices = @transform_5, window_bounds = array<i64: 32, 384>}, {pipeline_mode = #tpu.pipeline_mode<synchronous>, transform_indices = @transform_6, window_bounds = array<i64: 32, 384>}, {pipeline_mode = #tpu.pipeline_mode<synchronous>, transform_indices = @transform_7, window_bounds = array<i64: 1, 384>}, {pipeline_mode = #tpu.pipeline_mode<synchronous>, transform_indices = @transform_8, window_bounds = array<i64: 1, 32>}, {pipeline_mode = #tpu.pipeline_mode<synchronous>, transform_indices = @transform_9, window_bounds = array<i64: 32, 128>}, {pipeline_mode = #tpu.pipeline_mode<synchronous>, transform_indices = @transform_10, window_bounds = array<i64: 1, 128>}, {transform_indices = @transform_11, window_bounds = array<i64: 8, 128>}]} {
    %c0 = arith.constant 0 : index
    %c0_0 = arith.constant 0 : index
    %c0_1 = arith.constant 0 : index
    %0 = vector.load %arg1[%c0, %c0_0, %c0_1] : memref<1x64x16xf32, #tpu.memory_space<vmem>>, vector<1x64x16xf32>
    %1 = vector.shape_cast %0 : vector<1x64x16xf32> to vector<64x16xf32>
    %c0_2 = arith.constant 0 : index
    %c0_3 = arith.constant 0 : index
    %2 = vector.load %arg2[%c0_2, %c0_3] : memref<16x384xf32, #tpu.memory_space<vmem>>, vector<16x384xf32>
    %cst = arith.constant dense<0.000000e+00> : vector<64x384xf32>
    %3 = tpu.matmul %1, %2, %cst {dimension_numbers = #tpu.dot_dimension_numbers<[1], [0], [0], [1], [0, 0, 1, 1], [], []>} : vector<64x16xf32>, vector<16x384xf32>, vector<64x384xf32> -> vector<64x384xf32>
    %c0_4 = arith.constant 0 : index
    %c0_5 = arith.constant 0 : index
    %4 = vector.load %arg4[%c0_4, %c0_5] : memref<1x384xf32, #tpu.memory_space<vmem>>, vector<1x384xf32>
    %5 = vector.broadcast %4 : vector<1x384xf32> to vector<64x384xf32>
    %6 = arith.addf %3, %5 : vector<64x384xf32>
    %c0_6 = arith.constant 0 : index
    %c0_7 = arith.constant 0 : index
    %7 = vector.load %arg13[%c0_6, %c0_7] : memref<64x384xf32, #tpu.memory_space<vmem>>, vector<64x384xf32>
    tpu.vector_store %arg13[%c0_6, %c0_7], %6 {strides = array<i32>} : memref<64x384xf32, #tpu.memory_space<vmem>>, vector<64x384xf32>,
    %c0_8 = arith.constant 0 : index
    %c0_9 = arith.constant 0 : index
    %8 = vector.load %arg3[%c0_8, %c0_9] : memref<32x384xf32, #tpu.memory_space<vmem>>, vector<32x384xf32>
    %c0_10 = arith.constant 0 : index
    %c0_11 = arith.constant 0 : index
    %9 = vector.load %arg5[%c0_10, %c0_11] : memref<1x32xf32, #tpu.memory_space<vmem>>, vector<1x32xf32>
    %10 = vector.shape_cast %9 : vector<1x32xf32> to vector<1x32xf32>
    %11 = vector.broadcast %10 : vector<1x32xf32> to vector<8x32xf32>
    %cst_12 = arith.constant 0.000000e+00 : f32
    %12 = vector.broadcast %cst_12 : f32 to vector<8x32xf32>
    %cst_13 = arith.constant dense<0.000000e+00> : vector<8x384xf32>
    %13 = tpu.matmul %12, %8, %cst_13 {dimension_numbers = #tpu.dot_dimension_numbers<[1], [0], [0], [1], [0, 0, 1, 1], [], []>} : vector<8x32xf32>, vector<32x384xf32>, vector<8x384xf32> -> vector<8x384xf32>
    %c0_14 = arith.constant 0 : index
    %c0_15 = arith.constant 0 : index
    %14 = vector.load %arg13[%c0_14, %c0_15] : memref<64x384xf32, #tpu.memory_space<vmem>>, vector<8x384xf32>
    %15 = vector.extract_strided_slice %14 {offsets = [0, 0], sizes = [8, 32], strides = [1, 1]} : vector<8x384xf32> to vector<8x32xf32>
    %16 = vector.extract_strided_slice %13 {offsets = [0, 0], sizes = [8, 32], strides = [1, 1]} : vector<8x384xf32> to vector<8x32xf32>
    %17 = arith.addf %15, %16 : vector<8x32xf32>
    %18 = arith.negf %17 : vector<8x32xf32>
    %19 = math.exp %18 : vector<8x32xf32>
    %cst_16 = arith.constant 1.000000e+00 : f32
    %20 = vector.broadcast %cst_16 : f32 to vector<8x32xf32>
    %21 = arith.addf %20, %19 : vector<8x32xf32>
    %22 = arith.divf %20, %21 : vector<8x32xf32>
    %23 = vector.extract_strided_slice %14 {offsets = [0, 128], sizes = [8, 32], strides = [1, 1]} : vector<8x384xf32> to vector<8x32xf32>
    %24 = vector.extract_strided_slice %13 {offsets = [0, 128], sizes = [8, 32], strides = [1, 1]} : vector<8x384xf32> to vector<8x32xf32>
    %25 = arith.addf %23, %24 : vector<8x32xf32>
    %26 = arith.negf %25 : vector<8x32xf32>
    %27 = math.exp %26 : vector<8x32xf32>
    %cst_17 = arith.constant 1.000000e+00 : f32
    %28 = vector.broadcast %cst_17 : f32 to vector<8x32xf32>
    %29 = arith.addf %28, %27 : vector<8x32xf32>
    %30 = arith.divf %28, %29 : vector<8x32xf32>
    %31 = vector.extract_strided_slice %14 {offsets = [0, 256], sizes = [8, 32], strides = [1, 1]} : vector<8x384xf32> to vector<8x32xf32>
    %32 = vector.extract_strided_slice %13 {offsets = [0, 256], sizes = [8, 32], strides = [1, 1]} : vector<8x384xf32> to vector<8x32xf32>
    %33 = arith.addf %32, %11 : vector<8x32xf32>
    %34 = arith.mulf %22, %33 : vector<8x32xf32>
    %35 = arith.addf %31, %34 : vector<8x32xf32>
    %36 = math.tanh %35 : vector<8x32xf32>
    %cst_18 = arith.constant 1.000000e+00 : f32
    %37 = vector.broadcast %cst_18 : f32 to vector<8x32xf32>
    %38 = arith.subf %37, %30 : vector<8x32xf32>
    %39 = arith.mulf %38, %36 : vector<8x32xf32>
    %40 = arith.mulf %30, %12 : vector<8x32xf32>
    %41 = arith.addf %39, %40 : vector<8x32xf32>
    %c0_19 = arith.constant 0 : index
    %c0_20 = arith.constant 0 : index
    %42 = vector.load %arg14[%c0_19, %c0_20] : memref<64x32xf32, #tpu.memory_space<vmem>>, vector<8x32xf32>
    tpu.vector_store %arg14[%c0_19, %c0_20], %41 {strides = array<i32>} : memref<64x32xf32, #tpu.memory_space<vmem>>, vector<8x32xf32>,
    %cst_21 = arith.constant dense<0.000000e+00> : vector<8x384xf32>
    %43 = tpu.matmul %41, %8, %cst_21 {dimension_numbers = #tpu.dot_dimension_numbers<[1], [0], [0], [1], [0, 0, 1, 1], [], []>} : vector<8x32xf32>, vector<32x384xf32>, vector<8x384xf32> -> vector<8x384xf32>
    %c8 = arith.constant 8 : index
    %c0_22 = arith.constant 0 : index
    %44 = vector.load %arg13[%c8, %c0_22] : memref<64x384xf32, #tpu.memory_space<vmem>>, vector<8x384xf32>
    %45 = vector.extract_strided_slice %44 {offsets = [0, 0], sizes = [8, 32], strides = [1, 1]} : vector<8x384xf32> to vector<8x32xf32>
    %46 = vector.extract_strided_slice %43 {offsets = [0, 0], sizes = [8, 32], strides = [1, 1]} : vector<8x384xf32> to vector<8x32xf32>
    %47 = arith.addf %45, %46 : vector<8x32xf32>
    %48 = arith.negf %47 : vector<8x32xf32>
    %49 = math.exp %48 : vector<8x32xf32>
    %cst_23 = arith.constant 1.000000e+00 : f32
    %50 = vector.broadcast %cst_23 : f32 to vector<8x32xf32>
    %51 = arith.addf %50, %49 : vector<8x32xf32>
    %52 = arith.divf %50, %51 : vector<8x32xf32>
    %53 = vector.extract_strided_slice %44 {offsets = [0, 128], sizes = [8, 32], strides = [1, 1]} : vector<8x384xf32> to vector<8x32xf32>
    %54 = vector.extract_strided_slice %43 {offsets = [0, 128], sizes = [8, 32], strides = [1, 1]} : vector<8x384xf32> to vector<8x32xf32>
    %55 = arith.addf %53, %54 : vector<8x32xf32>
    %56 = arith.negf %55 : vector<8x32xf32>
    %57 = math.exp %56 : vector<8x32xf32>
    %cst_24 = arith.constant 1.000000e+00 : f32
    %58 = vector.broadcast %cst_24 : f32 to vector<8x32xf32>
    %59 = arith.addf %58, %57 : vector<8x32xf32>
    %60 = arith.divf %58, %59 : vector<8x32xf32>
    %61 = vector.extract_strided_slice %44 {offsets = [0, 256], sizes = [8, 32], strides = [1, 1]} : vector<8x384xf32> to vector<8x32xf32>
    %62 = vector.extract_strided_slice %43 {offsets = [0, 256], sizes = [8, 32], strides = [1, 1]} : vector<8x384xf32> to vector<8x32xf32>
    %63 = arith.addf %62, %11 : vector<8x32xf32>
    %64 = arith.mulf %52, %63 : vector<8x32xf32>
    %65 = arith.addf %61, %64 : vector<8x32xf32>
    %66 = math.tanh %65 : vector<8x32xf32>
    %cst_25 = arith.constant 1.000000e+00 : f32
    %67 = vector.broadcast %cst_25 : f32 to vector<8x32xf32>
    %68 = arith.subf %67, %60 : vector<8x32xf32>
    %69 = arith.mulf %68, %66 : vector<8x32xf32>
    %70 = arith.mulf %60, %41 : vector<8x32xf32>
    %71 = arith.addf %69, %70 : vector<8x32xf32>
    %c8_26 = arith.constant 8 : index
    %c0_27 = arith.constant 0 : index
    %72 = vector.load %arg14[%c8_26, %c0_27] : memref<64x32xf32, #tpu.memory_space<vmem>>, vector<8x32xf32>
    tpu.vector_store %arg14[%c8_26, %c0_27], %71 {strides = array<i32>} : memref<64x32xf32, #tpu.memory_space<vmem>>, vector<8x32xf32>,
    %cst_28 = arith.constant dense<0.000000e+00> : vector<8x384xf32>
    %73 = tpu.matmul %71, %8, %cst_28 {dimension_numbers = #tpu.dot_dimension_numbers<[1], [0], [0], [1], [0, 0, 1, 1], [], []>} : vector<8x32xf32>, vector<32x384xf32>, vector<8x384xf32> -> vector<8x384xf32>
    %c16 = arith.constant 16 : index
    %c0_29 = arith.constant 0 : index
    %74 = vector.load %arg13[%c16, %c0_29] : memref<64x384xf32, #tpu.memory_space<vmem>>, vector<8x384xf32>
    %75 = vector.extract_strided_slice %74 {offsets = [0, 0], sizes = [8, 32], strides = [1, 1]} : vector<8x384xf32> to vector<8x32xf32>
    %76 = vector.extract_strided_slice %73 {offsets = [0, 0], sizes = [8, 32], strides = [1, 1]} : vector<8x384xf32> to vector<8x32xf32>
    %77 = arith.addf %75, %76 : vector<8x32xf32>
    %78 = arith.negf %77 : vector<8x32xf32>
    %79 = math.exp %78 : vector<8x32xf32>
    %cst_30 = arith.constant 1.000000e+00 : f32
    %80 = vector.broadcast %cst_30 : f32 to vector<8x32xf32>
    %81 = arith.addf %80, %79 : vector<8x32xf32>
    %82 = arith.divf %80, %81 : vector<8x32xf32>
    %83 = vector.extract_strided_slice %74 {offsets = [0, 128], sizes = [8, 32], strides = [1, 1]} : vector<8x384xf32> to vector<8x32xf32>
    %84 = vector.extract_strided_slice %73 {offsets = [0, 128], sizes = [8, 32], strides = [1, 1]} : vector<8x384xf32> to vector<8x32xf32>
    %85 = arith.addf %83, %84 : vector<8x32xf32>
    %86 = arith.negf %85 : vector<8x32xf32>
    %87 = math.exp %86 : vector<8x32xf32>
    %cst_31 = arith.constant 1.000000e+00 : f32
    %88 = vector.broadcast %cst_31 : f32 to vector<8x32xf32>
    %89 = arith.addf %88, %87 : vector<8x32xf32>
    %90 = arith.divf %88, %89 : vector<8x32xf32>
    %91 = vector.extract_strided_slice %74 {offsets = [0, 256], sizes = [8, 32], strides = [1, 1]} : vector<8x384xf32> to vector<8x32xf32>
    %92 = vector.extract_strided_slice %73 {offsets = [0, 256], sizes = [8, 32], strides = [1, 1]} : vector<8x384xf32> to vector<8x32xf32>
    %93 = arith.addf %92, %11 : vector<8x32xf32>
    %94 = arith.mulf %82, %93 : vector<8x32xf32>
    %95 = arith.addf %91, %94 : vector<8x32xf32>
    %96 = math.tanh %95 : vector<8x32xf32>
    %cst_32 = arith.constant 1.000000e+00 : f32
    %97 = vector.broadcast %cst_32 : f32 to vector<8x32xf32>
    %98 = arith.subf %97, %90 : vector<8x32xf32>
    %99 = arith.mulf %98, %96 : vector<8x32xf32>
    %100 = arith.mulf %90, %71 : vector<8x32xf32>
    %101 = arith.addf %99, %100 : vector<8x32xf32>
    %c16_33 = arith.constant 16 : index
    %c0_34 = arith.constant 0 : index
    %102 = vector.load %arg14[%c16_33, %c0_34] : memref<64x32xf32, #tpu.memory_space<vmem>>, vector<8x32xf32>
    tpu.vector_store %arg14[%c16_33, %c0_34], %101 {strides = array<i32>} : memref<64x32xf32, #tpu.memory_space<vmem>>, vector<8x32xf32>,
    %cst_35 = arith.constant dense<0.000000e+00> : vector<8x384xf32>
    %103 = tpu.matmul %101, %8, %cst_35 {dimension_numbers = #tpu.dot_dimension_numbers<[1], [0], [0], [1], [0, 0, 1, 1], [], []>} : vector<8x32xf32>, vector<32x384xf32>, vector<8x384xf32> -> vector<8x384xf32>
    %c24 = arith.constant 24 : index
    %c0_36 = arith.constant 0 : index
    %104 = vector.load %arg13[%c24, %c0_36] : memref<64x384xf32, #tpu.memory_space<vmem>>, vector<8x384xf32>
    %105 = vector.extract_strided_slice %104 {offsets = [0, 0], sizes = [8, 32], strides = [1, 1]} : vector<8x384xf32> to vector<8x32xf32>
    %106 = vector.extract_strided_slice %103 {offsets = [0, 0], sizes = [8, 32], strides = [1, 1]} : vector<8x384xf32> to vector<8x32xf32>
    %107 = arith.addf %105, %106 : vector<8x32xf32>
    %108 = arith.negf %107 : vector<8x32xf32>
    %109 = math.exp %108 : vector<8x32xf32>
    %cst_37 = arith.constant 1.000000e+00 : f32
    %110 = vector.broadcast %cst_37 : f32 to vector<8x32xf32>
    %111 = arith.addf %110, %109 : vector<8x32xf32>
    %112 = arith.divf %110, %111 : vector<8x32xf32>
    %113 = vector.extract_strided_slice %104 {offsets = [0, 128], sizes = [8, 32], strides = [1, 1]} : vector<8x384xf32> to vector<8x32xf32>
    %114 = vector.extract_strided_slice %103 {offsets = [0, 128], sizes = [8, 32], strides = [1, 1]} : vector<8x384xf32> to vector<8x32xf32>
    %115 = arith.addf %113, %114 : vector<8x32xf32>
    %116 = arith.negf %115 : vector<8x32xf32>
    %117 = math.exp %116 : vector<8x32xf32>
    %cst_38 = arith.constant 1.000000e+00 : f32
    %118 = vector.broadcast %cst_38 : f32 to vector<8x32xf32>
    %119 = arith.addf %118, %117 : vector<8x32xf32>
    %120 = arith.divf %118, %119 : vector<8x32xf32>
    %121 = vector.extract_strided_slice %104 {offsets = [0, 256], sizes = [8, 32], strides = [1, 1]} : vector<8x384xf32> to vector<8x32xf32>
    %122 = vector.extract_strided_slice %103 {offsets = [0, 256], sizes = [8, 32], strides = [1, 1]} : vector<8x384xf32> to vector<8x32xf32>
    %123 = arith.addf %122, %11 : vector<8x32xf32>
    %124 = arith.mulf %112, %123 : vector<8x32xf32>
    %125 = arith.addf %121, %124 : vector<8x32xf32>
    %126 = math.tanh %125 : vector<8x32xf32>
    %cst_39 = arith.constant 1.000000e+00 : f32
    %127 = vector.broadcast %cst_39 : f32 to vector<8x32xf32>
    %128 = arith.subf %127, %120 : vector<8x32xf32>
    %129 = arith.mulf %128, %126 : vector<8x32xf32>
    %130 = arith.mulf %120, %101 : vector<8x32xf32>
    %131 = arith.addf %129, %130 : vector<8x32xf32>
    %c24_40 = arith.constant 24 : index
    %c0_41 = arith.constant 0 : index
    %132 = vector.load %arg14[%c24_40, %c0_41] : memref<64x32xf32, #tpu.memory_space<vmem>>, vector<8x32xf32>
    tpu.vector_store %arg14[%c24_40, %c0_41], %131 {strides = array<i32>} : memref<64x32xf32, #tpu.memory_space<vmem>>, vector<8x32xf32>,
    %cst_42 = arith.constant dense<0.000000e+00> : vector<8x384xf32>
    %133 = tpu.matmul %131, %8, %cst_42 {dimension_numbers = #tpu.dot_dimension_numbers<[1], [0], [0], [1], [0, 0, 1, 1], [], []>} : vector<8x32xf32>, vector<32x384xf32>, vector<8x384xf32> -> vector<8x384xf32>
    %c32 = arith.constant 32 : index
    %c0_43 = arith.constant 0 : index
    %134 = vector.load %arg13[%c32, %c0_43] : memref<64x384xf32, #tpu.memory_space<vmem>>, vector<8x384xf32>
    %135 = vector.extract_strided_slice %134 {offsets = [0, 0], sizes = [8, 32], strides = [1, 1]} : vector<8x384xf32> to vector<8x32xf32>
    %136 = vector.extract_strided_slice %133 {offsets = [0, 0], sizes = [8, 32], strides = [1, 1]} : vector<8x384xf32> to vector<8x32xf32>
    %137 = arith.addf %135, %136 : vector<8x32xf32>
    %138 = arith.negf %137 : vector<8x32xf32>
    %139 = math.exp %138 : vector<8x32xf32>
    %cst_44 = arith.constant 1.000000e+00 : f32
    %140 = vector.broadcast %cst_44 : f32 to vector<8x32xf32>
    %141 = arith.addf %140, %139 : vector<8x32xf32>
    %142 = arith.divf %140, %141 : vector<8x32xf32>
    %143 = vector.extract_strided_slice %134 {offsets = [0, 128], sizes = [8, 32], strides = [1, 1]} : vector<8x384xf32> to vector<8x32xf32>
    %144 = vector.extract_strided_slice %133 {offsets = [0, 128], sizes = [8, 32], strides = [1, 1]} : vector<8x384xf32> to vector<8x32xf32>
    %145 = arith.addf %143, %144 : vector<8x32xf32>
    %146 = arith.negf %145 : vector<8x32xf32>
    %147 = math.exp %146 : vector<8x32xf32>
    %cst_45 = arith.constant 1.000000e+00 : f32
    %148 = vector.broadcast %cst_45 : f32 to vector<8x32xf32>
    %149 = arith.addf %148, %147 : vector<8x32xf32>
    %150 = arith.divf %148, %149 : vector<8x32xf32>
    %151 = vector.extract_strided_slice %134 {offsets = [0, 256], sizes = [8, 32], strides = [1, 1]} : vector<8x384xf32> to vector<8x32xf32>
    %152 = vector.extract_strided_slice %133 {offsets = [0, 256], sizes = [8, 32], strides = [1, 1]} : vector<8x384xf32> to vector<8x32xf32>
    %153 = arith.addf %152, %11 : vector<8x32xf32>
    %154 = arith.mulf %142, %153 : vector<8x32xf32>
    %155 = arith.addf %151, %154 : vector<8x32xf32>
    %156 = math.tanh %155 : vector<8x32xf32>
    %cst_46 = arith.constant 1.000000e+00 : f32
    %157 = vector.broadcast %cst_46 : f32 to vector<8x32xf32>
    %158 = arith.subf %157, %150 : vector<8x32xf32>
    %159 = arith.mulf %158, %156 : vector<8x32xf32>
    %160 = arith.mulf %150, %131 : vector<8x32xf32>
    %161 = arith.addf %159, %160 : vector<8x32xf32>
    %c32_47 = arith.constant 32 : index
    %c0_48 = arith.constant 0 : index
    %162 = vector.load %arg14[%c32_47, %c0_48] : memref<64x32xf32, #tpu.memory_space<vmem>>, vector<8x32xf32>
    tpu.vector_store %arg14[%c32_47, %c0_48], %161 {strides = array<i32>} : memref<64x32xf32, #tpu.memory_space<vmem>>, vector<8x32xf32>,
    %cst_49 = arith.constant dense<0.000000e+00> : vector<8x384xf32>
    %163 = tpu.matmul %161, %8, %cst_49 {dimension_numbers = #tpu.dot_dimension_numbers<[1], [0], [0], [1], [0, 0, 1, 1], [], []>} : vector<8x32xf32>, vector<32x384xf32>, vector<8x384xf32> -> vector<8x384xf32>
    %c40 = arith.constant 40 : index
    %c0_50 = arith.constant 0 : index
    %164 = vector.load %arg13[%c40, %c0_50] : memref<64x384xf32, #tpu.memory_space<vmem>>, vector<8x384xf32>
    %165 = vector.extract_strided_slice %164 {offsets = [0, 0], sizes = [8, 32], strides = [1, 1]} : vector<8x384xf32> to vector<8x32xf32>
    %166 = vector.extract_strided_slice %163 {offsets = [0, 0], sizes = [8, 32], strides = [1, 1]} : vector<8x384xf32> to vector<8x32xf32>
    %167 = arith.addf %165, %166 : vector<8x32xf32>
    %168 = arith.negf %167 : vector<8x32xf32>
    %169 = math.exp %168 : vector<8x32xf32>
    %cst_51 = arith.constant 1.000000e+00 : f32
    %170 = vector.broadcast %cst_51 : f32 to vector<8x32xf32>
    %171 = arith.addf %170, %169 : vector<8x32xf32>
    %172 = arith.divf %170, %171 : vector<8x32xf32>
    %173 = vector.extract_strided_slice %164 {offsets = [0, 128], sizes = [8, 32], strides = [1, 1]} : vector<8x384xf32> to vector<8x32xf32>
    %174 = vector.extract_strided_slice %163 {offsets = [0, 128], sizes = [8, 32], strides = [1, 1]} : vector<8x384xf32> to vector<8x32xf32>
    %175 = arith.addf %173, %174 : vector<8x32xf32>
    %176 = arith.negf %175 : vector<8x32xf32>
    %177 = math.exp %176 : vector<8x32xf32>
    %cst_52 = arith.constant 1.000000e+00 : f32
    %178 = vector.broadcast %cst_52 : f32 to vector<8x32xf32>
    %179 = arith.addf %178, %177 : vector<8x32xf32>
    %180 = arith.divf %178, %179 : vector<8x32xf32>
    %181 = vector.extract_strided_slice %164 {offsets = [0, 256], sizes = [8, 32], strides = [1, 1]} : vector<8x384xf32> to vector<8x32xf32>
    %182 = vector.extract_strided_slice %163 {offsets = [0, 256], sizes = [8, 32], strides = [1, 1]} : vector<8x384xf32> to vector<8x32xf32>
    %183 = arith.addf %182, %11 : vector<8x32xf32>
    %184 = arith.mulf %172, %183 : vector<8x32xf32>
    %185 = arith.addf %181, %184 : vector<8x32xf32>
    %186 = math.tanh %185 : vector<8x32xf32>
    %cst_53 = arith.constant 1.000000e+00 : f32
    %187 = vector.broadcast %cst_53 : f32 to vector<8x32xf32>
    %188 = arith.subf %187, %180 : vector<8x32xf32>
    %189 = arith.mulf %188, %186 : vector<8x32xf32>
    %190 = arith.mulf %180, %161 : vector<8x32xf32>
    %191 = arith.addf %189, %190 : vector<8x32xf32>
    %c40_54 = arith.constant 40 : index
    %c0_55 = arith.constant 0 : index
    %192 = vector.load %arg14[%c40_54, %c0_55] : memref<64x32xf32, #tpu.memory_space<vmem>>, vector<8x32xf32>
    tpu.vector_store %arg14[%c40_54, %c0_55], %191 {strides = array<i32>} : memref<64x32xf32, #tpu.memory_space<vmem>>, vector<8x32xf32>,
    %cst_56 = arith.constant dense<0.000000e+00> : vector<8x384xf32>
    %193 = tpu.matmul %191, %8, %cst_56 {dimension_numbers = #tpu.dot_dimension_numbers<[1], [0], [0], [1], [0, 0, 1, 1], [], []>} : vector<8x32xf32>, vector<32x384xf32>, vector<8x384xf32> -> vector<8x384xf32>
    %c48 = arith.constant 48 : index
    %c0_57 = arith.constant 0 : index
    %194 = vector.load %arg13[%c48, %c0_57] : memref<64x384xf32, #tpu.memory_space<vmem>>, vector<8x384xf32>
    %195 = vector.extract_strided_slice %194 {offsets = [0, 0], sizes = [8, 32], strides = [1, 1]} : vector<8x384xf32> to vector<8x32xf32>
    %196 = vector.extract_strided_slice %193 {offsets = [0, 0], sizes = [8, 32], strides = [1, 1]} : vector<8x384xf32> to vector<8x32xf32>
    %197 = arith.addf %195, %196 : vector<8x32xf32>
    %198 = arith.negf %197 : vector<8x32xf32>
    %199 = math.exp %198 : vector<8x32xf32>
    %cst_58 = arith.constant 1.000000e+00 : f32
    %200 = vector.broadcast %cst_58 : f32 to vector<8x32xf32>
    %201 = arith.addf %200, %199 : vector<8x32xf32>
    %202 = arith.divf %200, %201 : vector<8x32xf32>
    %203 = vector.extract_strided_slice %194 {offsets = [0, 128], sizes = [8, 32], strides = [1, 1]} : vector<8x384xf32> to vector<8x32xf32>
    %204 = vector.extract_strided_slice %193 {offsets = [0, 128], sizes = [8, 32], strides = [1, 1]} : vector<8x384xf32> to vector<8x32xf32>
    %205 = arith.addf %203, %204 : vector<8x32xf32>
    %206 = arith.negf %205 : vector<8x32xf32>
    %207 = math.exp %206 : vector<8x32xf32>
    %cst_59 = arith.constant 1.000000e+00 : f32
    %208 = vector.broadcast %cst_59 : f32 to vector<8x32xf32>
    %209 = arith.addf %208, %207 : vector<8x32xf32>
    %210 = arith.divf %208, %209 : vector<8x32xf32>
    %211 = vector.extract_strided_slice %194 {offsets = [0, 256], sizes = [8, 32], strides = [1, 1]} : vector<8x384xf32> to vector<8x32xf32>
    %212 = vector.extract_strided_slice %193 {offsets = [0, 256], sizes = [8, 32], strides = [1, 1]} : vector<8x384xf32> to vector<8x32xf32>
    %213 = arith.addf %212, %11 : vector<8x32xf32>
    %214 = arith.mulf %202, %213 : vector<8x32xf32>
    %215 = arith.addf %211, %214 : vector<8x32xf32>
    %216 = math.tanh %215 : vector<8x32xf32>
    %cst_60 = arith.constant 1.000000e+00 : f32
    %217 = vector.broadcast %cst_60 : f32 to vector<8x32xf32>
    %218 = arith.subf %217, %210 : vector<8x32xf32>
    %219 = arith.mulf %218, %216 : vector<8x32xf32>
    %220 = arith.mulf %210, %191 : vector<8x32xf32>
    %221 = arith.addf %219, %220 : vector<8x32xf32>
    %c48_61 = arith.constant 48 : index
    %c0_62 = arith.constant 0 : index
    %222 = vector.load %arg14[%c48_61, %c0_62] : memref<64x32xf32, #tpu.memory_space<vmem>>, vector<8x32xf32>
    tpu.vector_store %arg14[%c48_61, %c0_62], %221 {strides = array<i32>} : memref<64x32xf32, #tpu.memory_space<vmem>>, vector<8x32xf32>,
    %cst_63 = arith.constant dense<0.000000e+00> : vector<8x384xf32>
    %223 = tpu.matmul %221, %8, %cst_63 {dimension_numbers = #tpu.dot_dimension_numbers<[1], [0], [0], [1], [0, 0, 1, 1], [], []>} : vector<8x32xf32>, vector<32x384xf32>, vector<8x384xf32> -> vector<8x384xf32>
    %c56 = arith.constant 56 : index
    %c0_64 = arith.constant 0 : index
    %224 = vector.load %arg13[%c56, %c0_64] : memref<64x384xf32, #tpu.memory_space<vmem>>, vector<8x384xf32>
    %225 = vector.extract_strided_slice %224 {offsets = [0, 0], sizes = [8, 32], strides = [1, 1]} : vector<8x384xf32> to vector<8x32xf32>
    %226 = vector.extract_strided_slice %223 {offsets = [0, 0], sizes = [8, 32], strides = [1, 1]} : vector<8x384xf32> to vector<8x32xf32>
    %227 = arith.addf %225, %226 : vector<8x32xf32>
    %228 = arith.negf %227 : vector<8x32xf32>
    %229 = math.exp %228 : vector<8x32xf32>
    %cst_65 = arith.constant 1.000000e+00 : f32
    %230 = vector.broadcast %cst_65 : f32 to vector<8x32xf32>
    %231 = arith.addf %230, %229 : vector<8x32xf32>
    %232 = arith.divf %230, %231 : vector<8x32xf32>
    %233 = vector.extract_strided_slice %224 {offsets = [0, 128], sizes = [8, 32], strides = [1, 1]} : vector<8x384xf32> to vector<8x32xf32>
    %234 = vector.extract_strided_slice %223 {offsets = [0, 128], sizes = [8, 32], strides = [1, 1]} : vector<8x384xf32> to vector<8x32xf32>
    %235 = arith.addf %233, %234 : vector<8x32xf32>
    %236 = arith.negf %235 : vector<8x32xf32>
    %237 = math.exp %236 : vector<8x32xf32>
    %cst_66 = arith.constant 1.000000e+00 : f32
    %238 = vector.broadcast %cst_66 : f32 to vector<8x32xf32>
    %239 = arith.addf %238, %237 : vector<8x32xf32>
    %240 = arith.divf %238, %239 : vector<8x32xf32>
    %241 = vector.extract_strided_slice %224 {offsets = [0, 256], sizes = [8, 32], strides = [1, 1]} : vector<8x384xf32> to vector<8x32xf32>
    %242 = vector.extract_strided_slice %223 {offsets = [0, 256], sizes = [8, 32], strides = [1, 1]} : vector<8x384xf32> to vector<8x32xf32>
    %243 = arith.addf %242, %11 : vector<8x32xf32>
    %244 = arith.mulf %232, %243 : vector<8x32xf32>
    %245 = arith.addf %241, %244 : vector<8x32xf32>
    %246 = math.tanh %245 : vector<8x32xf32>
    %cst_67 = arith.constant 1.000000e+00 : f32
    %247 = vector.broadcast %cst_67 : f32 to vector<8x32xf32>
    %248 = arith.subf %247, %240 : vector<8x32xf32>
    %249 = arith.mulf %248, %246 : vector<8x32xf32>
    %250 = arith.mulf %240, %221 : vector<8x32xf32>
    %251 = arith.addf %249, %250 : vector<8x32xf32>
    %c56_68 = arith.constant 56 : index
    %c0_69 = arith.constant 0 : index
    %252 = vector.load %arg14[%c56_68, %c0_69] : memref<64x32xf32, #tpu.memory_space<vmem>>, vector<8x32xf32>
    tpu.vector_store %arg14[%c56_68, %c0_69], %251 {strides = array<i32>} : memref<64x32xf32, #tpu.memory_space<vmem>>, vector<8x32xf32>,
    %c0_70 = arith.constant 0 : index
    %c0_71 = arith.constant 0 : index
    %253 = vector.load %arg14[%c0_70, %c0_71] : memref<64x32xf32, #tpu.memory_space<vmem>>, vector<64x32xf32>
    %c0_72 = arith.constant 0 : index
    %c0_73 = arith.constant 0 : index
    %254 = vector.load %arg6[%c0_72, %c0_73] : memref<32x384xf32, #tpu.memory_space<vmem>>, vector<32x384xf32>
    %cst_74 = arith.constant dense<0.000000e+00> : vector<64x384xf32>
    %255 = tpu.matmul %253, %254, %cst_74 {dimension_numbers = #tpu.dot_dimension_numbers<[1], [0], [0], [1], [0, 0, 1, 1], [], []>} : vector<64x32xf32>, vector<32x384xf32>, vector<64x384xf32> -> vector<64x384xf32>
    %c0_75 = arith.constant 0 : index
    %c0_76 = arith.constant 0 : index
    %256 = vector.load %arg8[%c0_75, %c0_76] : memref<1x384xf32, #tpu.memory_space<vmem>>, vector<1x384xf32>
    %257 = vector.broadcast %256 : vector<1x384xf32> to vector<64x384xf32>
    %258 = arith.addf %255, %257 : vector<64x384xf32>
    %c0_77 = arith.constant 0 : index
    %c0_78 = arith.constant 0 : index
    %259 = vector.load %arg13[%c0_77, %c0_78] : memref<64x384xf32, #tpu.memory_space<vmem>>, vector<64x384xf32>
    tpu.vector_store %arg13[%c0_77, %c0_78], %258 {strides = array<i32>} : memref<64x384xf32, #tpu.memory_space<vmem>>, vector<64x384xf32>,
    %c0_79 = arith.constant 0 : index
    %c0_80 = arith.constant 0 : index
    %260 = vector.load %arg7[%c0_79, %c0_80] : memref<32x384xf32, #tpu.memory_space<vmem>>, vector<32x384xf32>
    %c0_81 = arith.constant 0 : index
    %c0_82 = arith.constant 0 : index
    %261 = vector.load %arg9[%c0_81, %c0_82] : memref<1x32xf32, #tpu.memory_space<vmem>>, vector<1x32xf32>
    %262 = vector.shape_cast %261 : vector<1x32xf32> to vector<1x32xf32>
    %263 = vector.broadcast %262 : vector<1x32xf32> to vector<8x32xf32>
    %cst_83 = arith.constant 0.000000e+00 : f32
    %264 = vector.broadcast %cst_83 : f32 to vector<8x32xf32>
    %cst_84 = arith.constant dense<0.000000e+00> : vector<8x384xf32>
    %265 = tpu.matmul %264, %260, %cst_84 {dimension_numbers = #tpu.dot_dimension_numbers<[1], [0], [0], [1], [0, 0, 1, 1], [], []>} : vector<8x32xf32>, vector<32x384xf32>, vector<8x384xf32> -> vector<8x384xf32>
    %c0_85 = arith.constant 0 : index
    %c0_86 = arith.constant 0 : index
    %266 = vector.load %arg13[%c0_85, %c0_86] : memref<64x384xf32, #tpu.memory_space<vmem>>, vector<8x384xf32>
    %267 = vector.extract_strided_slice %266 {offsets = [0, 0], sizes = [8, 32], strides = [1, 1]} : vector<8x384xf32> to vector<8x32xf32>
    %268 = vector.extract_strided_slice %265 {offsets = [0, 0], sizes = [8, 32], strides = [1, 1]} : vector<8x384xf32> to vector<8x32xf32>
    %269 = arith.addf %267, %268 : vector<8x32xf32>
    %270 = arith.negf %269 : vector<8x32xf32>
    %271 = math.exp %270 : vector<8x32xf32>
    %cst_87 = arith.constant 1.000000e+00 : f32
    %272 = vector.broadcast %cst_87 : f32 to vector<8x32xf32>
    %273 = arith.addf %272, %271 : vector<8x32xf32>
    %274 = arith.divf %272, %273 : vector<8x32xf32>
    %275 = vector.extract_strided_slice %266 {offsets = [0, 128], sizes = [8, 32], strides = [1, 1]} : vector<8x384xf32> to vector<8x32xf32>
    %276 = vector.extract_strided_slice %265 {offsets = [0, 128], sizes = [8, 32], strides = [1, 1]} : vector<8x384xf32> to vector<8x32xf32>
    %277 = arith.addf %275, %276 : vector<8x32xf32>
    %278 = arith.negf %277 : vector<8x32xf32>
    %279 = math.exp %278 : vector<8x32xf32>
    %cst_88 = arith.constant 1.000000e+00 : f32
    %280 = vector.broadcast %cst_88 : f32 to vector<8x32xf32>
    %281 = arith.addf %280, %279 : vector<8x32xf32>
    %282 = arith.divf %280, %281 : vector<8x32xf32>
    %283 = vector.extract_strided_slice %266 {offsets = [0, 256], sizes = [8, 32], strides = [1, 1]} : vector<8x384xf32> to vector<8x32xf32>
    %284 = vector.extract_strided_slice %265 {offsets = [0, 256], sizes = [8, 32], strides = [1, 1]} : vector<8x384xf32> to vector<8x32xf32>
    %285 = arith.addf %284, %263 : vector<8x32xf32>
    %286 = arith.mulf %274, %285 : vector<8x32xf32>
    %287 = arith.addf %283, %286 : vector<8x32xf32>
    %288 = math.tanh %287 : vector<8x32xf32>
    %cst_89 = arith.constant 1.000000e+00 : f32
    %289 = vector.broadcast %cst_89 : f32 to vector<8x32xf32>
    %290 = arith.subf %289, %282 : vector<8x32xf32>
    %291 = arith.mulf %290, %288 : vector<8x32xf32>
    %292 = arith.mulf %282, %264 : vector<8x32xf32>
    %293 = arith.addf %291, %292 : vector<8x32xf32>
    %cst_90 = arith.constant dense<0.000000e+00> : vector<8x384xf32>
    %294 = tpu.matmul %293, %260, %cst_90 {dimension_numbers = #tpu.dot_dimension_numbers<[1], [0], [0], [1], [0, 0, 1, 1], [], []>} : vector<8x32xf32>, vector<32x384xf32>, vector<8x384xf32> -> vector<8x384xf32>
    %c8_91 = arith.constant 8 : index
    %c0_92 = arith.constant 0 : index
    %295 = vector.load %arg13[%c8_91, %c0_92] : memref<64x384xf32, #tpu.memory_space<vmem>>, vector<8x384xf32>
    %296 = vector.extract_strided_slice %295 {offsets = [0, 0], sizes = [8, 32], strides = [1, 1]} : vector<8x384xf32> to vector<8x32xf32>
    %297 = vector.extract_strided_slice %294 {offsets = [0, 0], sizes = [8, 32], strides = [1, 1]} : vector<8x384xf32> to vector<8x32xf32>
    %298 = arith.addf %296, %297 : vector<8x32xf32>
    %299 = arith.negf %298 : vector<8x32xf32>
    %300 = math.exp %299 : vector<8x32xf32>
    %cst_93 = arith.constant 1.000000e+00 : f32
    %301 = vector.broadcast %cst_93 : f32 to vector<8x32xf32>
    %302 = arith.addf %301, %300 : vector<8x32xf32>
    %303 = arith.divf %301, %302 : vector<8x32xf32>
    %304 = vector.extract_strided_slice %295 {offsets = [0, 128], sizes = [8, 32], strides = [1, 1]} : vector<8x384xf32> to vector<8x32xf32>
    %305 = vector.extract_strided_slice %294 {offsets = [0, 128], sizes = [8, 32], strides = [1, 1]} : vector<8x384xf32> to vector<8x32xf32>
    %306 = arith.addf %304, %305 : vector<8x32xf32>
    %307 = arith.negf %306 : vector<8x32xf32>
    %308 = math.exp %307 : vector<8x32xf32>
    %cst_94 = arith.constant 1.000000e+00 : f32
    %309 = vector.broadcast %cst_94 : f32 to vector<8x32xf32>
    %310 = arith.addf %309, %308 : vector<8x32xf32>
    %311 = arith.divf %309, %310 : vector<8x32xf32>
    %312 = vector.extract_strided_slice %295 {offsets = [0, 256], sizes = [8, 32], strides = [1, 1]} : vector<8x384xf32> to vector<8x32xf32>
    %313 = vector.extract_strided_slice %294 {offsets = [0, 256], sizes = [8, 32], strides = [1, 1]} : vector<8x384xf32> to vector<8x32xf32>
    %314 = arith.addf %313, %263 : vector<8x32xf32>
    %315 = arith.mulf %303, %314 : vector<8x32xf32>
    %316 = arith.addf %312, %315 : vector<8x32xf32>
    %317 = math.tanh %316 : vector<8x32xf32>
    %cst_95 = arith.constant 1.000000e+00 : f32
    %318 = vector.broadcast %cst_95 : f32 to vector<8x32xf32>
    %319 = arith.subf %318, %311 : vector<8x32xf32>
    %320 = arith.mulf %319, %317 : vector<8x32xf32>
    %321 = arith.mulf %311, %293 : vector<8x32xf32>
    %322 = arith.addf %320, %321 : vector<8x32xf32>
    %cst_96 = arith.constant dense<0.000000e+00> : vector<8x384xf32>
    %323 = tpu.matmul %322, %260, %cst_96 {dimension_numbers = #tpu.dot_dimension_numbers<[1], [0], [0], [1], [0, 0, 1, 1], [], []>} : vector<8x32xf32>, vector<32x384xf32>, vector<8x384xf32> -> vector<8x384xf32>
    %c16_97 = arith.constant 16 : index
    %c0_98 = arith.constant 0 : index
    %324 = vector.load %arg13[%c16_97, %c0_98] : memref<64x384xf32, #tpu.memory_space<vmem>>, vector<8x384xf32>
    %325 = vector.extract_strided_slice %324 {offsets = [0, 0], sizes = [8, 32], strides = [1, 1]} : vector<8x384xf32> to vector<8x32xf32>
    %326 = vector.extract_strided_slice %323 {offsets = [0, 0], sizes = [8, 32], strides = [1, 1]} : vector<8x384xf32> to vector<8x32xf32>
    %327 = arith.addf %325, %326 : vector<8x32xf32>
    %328 = arith.negf %327 : vector<8x32xf32>
    %329 = math.exp %328 : vector<8x32xf32>
    %cst_99 = arith.constant 1.000000e+00 : f32
    %330 = vector.broadcast %cst_99 : f32 to vector<8x32xf32>
    %331 = arith.addf %330, %329 : vector<8x32xf32>
    %332 = arith.divf %330, %331 : vector<8x32xf32>
    %333 = vector.extract_strided_slice %324 {offsets = [0, 128], sizes = [8, 32], strides = [1, 1]} : vector<8x384xf32> to vector<8x32xf32>
    %334 = vector.extract_strided_slice %323 {offsets = [0, 128], sizes = [8, 32], strides = [1, 1]} : vector<8x384xf32> to vector<8x32xf32>
    %335 = arith.addf %333, %334 : vector<8x32xf32>
    %336 = arith.negf %335 : vector<8x32xf32>
    %337 = math.exp %336 : vector<8x32xf32>
    %cst_100 = arith.constant 1.000000e+00 : f32
    %338 = vector.broadcast %cst_100 : f32 to vector<8x32xf32>
    %339 = arith.addf %338, %337 : vector<8x32xf32>
    %340 = arith.divf %338, %339 : vector<8x32xf32>
    %341 = vector.extract_strided_slice %324 {offsets = [0, 256], sizes = [8, 32], strides = [1, 1]} : vector<8x384xf32> to vector<8x32xf32>
    %342 = vector.extract_strided_slice %323 {offsets = [0, 256], sizes = [8, 32], strides = [1, 1]} : vector<8x384xf32> to vector<8x32xf32>
    %343 = arith.addf %342, %263 : vector<8x32xf32>
    %344 = arith.mulf %332, %343 : vector<8x32xf32>
    %345 = arith.addf %341, %344 : vector<8x32xf32>
    %346 = math.tanh %345 : vector<8x32xf32>
    %cst_101 = arith.constant 1.000000e+00 : f32
    %347 = vector.broadcast %cst_101 : f32 to vector<8x32xf32>
    %348 = arith.subf %347, %340 : vector<8x32xf32>
    %349 = arith.mulf %348, %346 : vector<8x32xf32>
    %350 = arith.mulf %340, %322 : vector<8x32xf32>
    %351 = arith.addf %349, %350 : vector<8x32xf32>
    %cst_102 = arith.constant dense<0.000000e+00> : vector<8x384xf32>
    %352 = tpu.matmul %351, %260, %cst_102 {dimension_numbers = #tpu.dot_dimension_numbers<[1], [0], [0], [1], [0, 0, 1, 1], [], []>} : vector<8x32xf32>, vector<32x384xf32>, vector<8x384xf32> -> vector<8x384xf32>
    %c24_103 = arith.constant 24 : index
    %c0_104 = arith.constant 0 : index
    %353 = vector.load %arg13[%c24_103, %c0_104] : memref<64x384xf32, #tpu.memory_space<vmem>>, vector<8x384xf32>
    %354 = vector.extract_strided_slice %353 {offsets = [0, 0], sizes = [8, 32], strides = [1, 1]} : vector<8x384xf32> to vector<8x32xf32>
    %355 = vector.extract_strided_slice %352 {offsets = [0, 0], sizes = [8, 32], strides = [1, 1]} : vector<8x384xf32> to vector<8x32xf32>
    %356 = arith.addf %354, %355 : vector<8x32xf32>
    %357 = arith.negf %356 : vector<8x32xf32>
    %358 = math.exp %357 : vector<8x32xf32>
    %cst_105 = arith.constant 1.000000e+00 : f32
    %359 = vector.broadcast %cst_105 : f32 to vector<8x32xf32>
    %360 = arith.addf %359, %358 : vector<8x32xf32>
    %361 = arith.divf %359, %360 : vector<8x32xf32>
    %362 = vector.extract_strided_slice %353 {offsets = [0, 128], sizes = [8, 32], strides = [1, 1]} : vector<8x384xf32> to vector<8x32xf32>
    %363 = vector.extract_strided_slice %352 {offsets = [0, 128], sizes = [8, 32], strides = [1, 1]} : vector<8x384xf32> to vector<8x32xf32>
    %364 = arith.addf %362, %363 : vector<8x32xf32>
    %365 = arith.negf %364 : vector<8x32xf32>
    %366 = math.exp %365 : vector<8x32xf32>
    %cst_106 = arith.constant 1.000000e+00 : f32
    %367 = vector.broadcast %cst_106 : f32 to vector<8x32xf32>
    %368 = arith.addf %367, %366 : vector<8x32xf32>
    %369 = arith.divf %367, %368 : vector<8x32xf32>
    %370 = vector.extract_strided_slice %353 {offsets = [0, 256], sizes = [8, 32], strides = [1, 1]} : vector<8x384xf32> to vector<8x32xf32>
    %371 = vector.extract_strided_slice %352 {offsets = [0, 256], sizes = [8, 32], strides = [1, 1]} : vector<8x384xf32> to vector<8x32xf32>
    %372 = arith.addf %371, %263 : vector<8x32xf32>
    %373 = arith.mulf %361, %372 : vector<8x32xf32>
    %374 = arith.addf %370, %373 : vector<8x32xf32>
    %375 = math.tanh %374 : vector<8x32xf32>
    %cst_107 = arith.constant 1.000000e+00 : f32
    %376 = vector.broadcast %cst_107 : f32 to vector<8x32xf32>
    %377 = arith.subf %376, %369 : vector<8x32xf32>
    %378 = arith.mulf %377, %375 : vector<8x32xf32>
    %379 = arith.mulf %369, %351 : vector<8x32xf32>
    %380 = arith.addf %378, %379 : vector<8x32xf32>
    %cst_108 = arith.constant dense<0.000000e+00> : vector<8x384xf32>
    %381 = tpu.matmul %380, %260, %cst_108 {dimension_numbers = #tpu.dot_dimension_numbers<[1], [0], [0], [1], [0, 0, 1, 1], [], []>} : vector<8x32xf32>, vector<32x384xf32>, vector<8x384xf32> -> vector<8x384xf32>
    %c32_109 = arith.constant 32 : index
    %c0_110 = arith.constant 0 : index
    %382 = vector.load %arg13[%c32_109, %c0_110] : memref<64x384xf32, #tpu.memory_space<vmem>>, vector<8x384xf32>
    %383 = vector.extract_strided_slice %382 {offsets = [0, 0], sizes = [8, 32], strides = [1, 1]} : vector<8x384xf32> to vector<8x32xf32>
    %384 = vector.extract_strided_slice %381 {offsets = [0, 0], sizes = [8, 32], strides = [1, 1]} : vector<8x384xf32> to vector<8x32xf32>
    %385 = arith.addf %383, %384 : vector<8x32xf32>
    %386 = arith.negf %385 : vector<8x32xf32>
    %387 = math.exp %386 : vector<8x32xf32>
    %cst_111 = arith.constant 1.000000e+00 : f32
    %388 = vector.broadcast %cst_111 : f32 to vector<8x32xf32>
    %389 = arith.addf %388, %387 : vector<8x32xf32>
    %390 = arith.divf %388, %389 : vector<8x32xf32>
    %391 = vector.extract_strided_slice %382 {offsets = [0, 128], sizes = [8, 32], strides = [1, 1]} : vector<8x384xf32> to vector<8x32xf32>
    %392 = vector.extract_strided_slice %381 {offsets = [0, 128], sizes = [8, 32], strides = [1, 1]} : vector<8x384xf32> to vector<8x32xf32>
    %393 = arith.addf %391, %392 : vector<8x32xf32>
    %394 = arith.negf %393 : vector<8x32xf32>
    %395 = math.exp %394 : vector<8x32xf32>
    %cst_112 = arith.constant 1.000000e+00 : f32
    %396 = vector.broadcast %cst_112 : f32 to vector<8x32xf32>
    %397 = arith.addf %396, %395 : vector<8x32xf32>
    %398 = arith.divf %396, %397 : vector<8x32xf32>
    %399 = vector.extract_strided_slice %382 {offsets = [0, 256], sizes = [8, 32], strides = [1, 1]} : vector<8x384xf32> to vector<8x32xf32>
    %400 = vector.extract_strided_slice %381 {offsets = [0, 256], sizes = [8, 32], strides = [1, 1]} : vector<8x384xf32> to vector<8x32xf32>
    %401 = arith.addf %400, %263 : vector<8x32xf32>
    %402 = arith.mulf %390, %401 : vector<8x32xf32>
    %403 = arith.addf %399, %402 : vector<8x32xf32>
    %404 = math.tanh %403 : vector<8x32xf32>
    %cst_113 = arith.constant 1.000000e+00 : f32
    %405 = vector.broadcast %cst_113 : f32 to vector<8x32xf32>
    %406 = arith.subf %405, %398 : vector<8x32xf32>
    %407 = arith.mulf %406, %404 : vector<8x32xf32>
    %408 = arith.mulf %398, %380 : vector<8x32xf32>
    %409 = arith.addf %407, %408 : vector<8x32xf32>
    %cst_114 = arith.constant dense<0.000000e+00> : vector<8x384xf32>
    %410 = tpu.matmul %409, %260, %cst_114 {dimension_numbers = #tpu.dot_dimension_numbers<[1], [0], [0], [1], [0, 0, 1, 1], [], []>} : vector<8x32xf32>, vector<32x384xf32>, vector<8x384xf32> -> vector<8x384xf32>
    %c40_115 = arith.constant 40 : index
    %c0_116 = arith.constant 0 : index
    %411 = vector.load %arg13[%c40_115, %c0_116] : memref<64x384xf32, #tpu.memory_space<vmem>>, vector<8x384xf32>
    %412 = vector.extract_strided_slice %411 {offsets = [0, 0], sizes = [8, 32], strides = [1, 1]} : vector<8x384xf32> to vector<8x32xf32>
    %413 = vector.extract_strided_slice %410 {offsets = [0, 0], sizes = [8, 32], strides = [1, 1]} : vector<8x384xf32> to vector<8x32xf32>
    %414 = arith.addf %412, %413 : vector<8x32xf32>
    %415 = arith.negf %414 : vector<8x32xf32>
    %416 = math.exp %415 : vector<8x32xf32>
    %cst_117 = arith.constant 1.000000e+00 : f32
    %417 = vector.broadcast %cst_117 : f32 to vector<8x32xf32>
    %418 = arith.addf %417, %416 : vector<8x32xf32>
    %419 = arith.divf %417, %418 : vector<8x32xf32>
    %420 = vector.extract_strided_slice %411 {offsets = [0, 128], sizes = [8, 32], strides = [1, 1]} : vector<8x384xf32> to vector<8x32xf32>
    %421 = vector.extract_strided_slice %410 {offsets = [0, 128], sizes = [8, 32], strides = [1, 1]} : vector<8x384xf32> to vector<8x32xf32>
    %422 = arith.addf %420, %421 : vector<8x32xf32>
    %423 = arith.negf %422 : vector<8x32xf32>
    %424 = math.exp %423 : vector<8x32xf32>
    %cst_118 = arith.constant 1.000000e+00 : f32
    %425 = vector.broadcast %cst_118 : f32 to vector<8x32xf32>
    %426 = arith.addf %425, %424 : vector<8x32xf32>
    %427 = arith.divf %425, %426 : vector<8x32xf32>
    %428 = vector.extract_strided_slice %411 {offsets = [0, 256], sizes = [8, 32], strides = [1, 1]} : vector<8x384xf32> to vector<8x32xf32>
    %429 = vector.extract_strided_slice %410 {offsets = [0, 256], sizes = [8, 32], strides = [1, 1]} : vector<8x384xf32> to vector<8x32xf32>
    %430 = arith.addf %429, %263 : vector<8x32xf32>
    %431 = arith.mulf %419, %430 : vector<8x32xf32>
    %432 = arith.addf %428, %431 : vector<8x32xf32>
    %433 = math.tanh %432 : vector<8x32xf32>
    %cst_119 = arith.constant 1.000000e+00 : f32
    %434 = vector.broadcast %cst_119 : f32 to vector<8x32xf32>
    %435 = arith.subf %434, %427 : vector<8x32xf32>
    %436 = arith.mulf %435, %433 : vector<8x32xf32>
    %437 = arith.mulf %427, %409 : vector<8x32xf32>
    %438 = arith.addf %436, %437 : vector<8x32xf32>
    %cst_120 = arith.constant dense<0.000000e+00> : vector<8x384xf32>
    %439 = tpu.matmul %438, %260, %cst_120 {dimension_numbers = #tpu.dot_dimension_numbers<[1], [0], [0], [1], [0, 0, 1, 1], [], []>} : vector<8x32xf32>, vector<32x384xf32>, vector<8x384xf32> -> vector<8x384xf32>
    %c48_121 = arith.constant 48 : index
    %c0_122 = arith.constant 0 : index
    %440 = vector.load %arg13[%c48_121, %c0_122] : memref<64x384xf32, #tpu.memory_space<vmem>>, vector<8x384xf32>
    %441 = vector.extract_strided_slice %440 {offsets = [0, 0], sizes = [8, 32], strides = [1, 1]} : vector<8x384xf32> to vector<8x32xf32>
    %442 = vector.extract_strided_slice %439 {offsets = [0, 0], sizes = [8, 32], strides = [1, 1]} : vector<8x384xf32> to vector<8x32xf32>
    %443 = arith.addf %441, %442 : vector<8x32xf32>
    %444 = arith.negf %443 : vector<8x32xf32>
    %445 = math.exp %444 : vector<8x32xf32>
    %cst_123 = arith.constant 1.000000e+00 : f32
    %446 = vector.broadcast %cst_123 : f32 to vector<8x32xf32>
    %447 = arith.addf %446, %445 : vector<8x32xf32>
    %448 = arith.divf %446, %447 : vector<8x32xf32>
    %449 = vector.extract_strided_slice %440 {offsets = [0, 128], sizes = [8, 32], strides = [1, 1]} : vector<8x384xf32> to vector<8x32xf32>
    %450 = vector.extract_strided_slice %439 {offsets = [0, 128], sizes = [8, 32], strides = [1, 1]} : vector<8x384xf32> to vector<8x32xf32>
    %451 = arith.addf %449, %450 : vector<8x32xf32>
    %452 = arith.negf %451 : vector<8x32xf32>
    %453 = math.exp %452 : vector<8x32xf32>
    %cst_124 = arith.constant 1.000000e+00 : f32
    %454 = vector.broadcast %cst_124 : f32 to vector<8x32xf32>
    %455 = arith.addf %454, %453 : vector<8x32xf32>
    %456 = arith.divf %454, %455 : vector<8x32xf32>
    %457 = vector.extract_strided_slice %440 {offsets = [0, 256], sizes = [8, 32], strides = [1, 1]} : vector<8x384xf32> to vector<8x32xf32>
    %458 = vector.extract_strided_slice %439 {offsets = [0, 256], sizes = [8, 32], strides = [1, 1]} : vector<8x384xf32> to vector<8x32xf32>
    %459 = arith.addf %458, %263 : vector<8x32xf32>
    %460 = arith.mulf %448, %459 : vector<8x32xf32>
    %461 = arith.addf %457, %460 : vector<8x32xf32>
    %462 = math.tanh %461 : vector<8x32xf32>
    %cst_125 = arith.constant 1.000000e+00 : f32
    %463 = vector.broadcast %cst_125 : f32 to vector<8x32xf32>
    %464 = arith.subf %463, %456 : vector<8x32xf32>
    %465 = arith.mulf %464, %462 : vector<8x32xf32>
    %466 = arith.mulf %456, %438 : vector<8x32xf32>
    %467 = arith.addf %465, %466 : vector<8x32xf32>
    %cst_126 = arith.constant dense<0.000000e+00> : vector<8x384xf32>
    %468 = tpu.matmul %467, %260, %cst_126 {dimension_numbers = #tpu.dot_dimension_numbers<[1], [0], [0], [1], [0, 0, 1, 1], [], []>} : vector<8x32xf32>, vector<32x384xf32>, vector<8x384xf32> -> vector<8x384xf32>
    %c56_127 = arith.constant 56 : index
    %c0_128 = arith.constant 0 : index
    %469 = vector.load %arg13[%c56_127, %c0_128] : memref<64x384xf32, #tpu.memory_space<vmem>>, vector<8x384xf32>
    %470 = vector.extract_strided_slice %469 {offsets = [0, 0], sizes = [8, 32], strides = [1, 1]} : vector<8x384xf32> to vector<8x32xf32>
    %471 = vector.extract_strided_slice %468 {offsets = [0, 0], sizes = [8, 32], strides = [1, 1]} : vector<8x384xf32> to vector<8x32xf32>
    %472 = arith.addf %470, %471 : vector<8x32xf32>
    %473 = arith.negf %472 : vector<8x32xf32>
    %474 = math.exp %473 : vector<8x32xf32>
    %cst_129 = arith.constant 1.000000e+00 : f32
    %475 = vector.broadcast %cst_129 : f32 to vector<8x32xf32>
    %476 = arith.addf %475, %474 : vector<8x32xf32>
    %477 = arith.divf %475, %476 : vector<8x32xf32>
    %478 = vector.extract_strided_slice %469 {offsets = [0, 128], sizes = [8, 32], strides = [1, 1]} : vector<8x384xf32> to vector<8x32xf32>
    %479 = vector.extract_strided_slice %468 {offsets = [0, 128], sizes = [8, 32], strides = [1, 1]} : vector<8x384xf32> to vector<8x32xf32>
    %480 = arith.addf %478, %479 : vector<8x32xf32>
    %481 = arith.negf %480 : vector<8x32xf32>
    %482 = math.exp %481 : vector<8x32xf32>
    %cst_130 = arith.constant 1.000000e+00 : f32
    %483 = vector.broadcast %cst_130 : f32 to vector<8x32xf32>
    %484 = arith.addf %483, %482 : vector<8x32xf32>
    %485 = arith.divf %483, %484 : vector<8x32xf32>
    %486 = vector.extract_strided_slice %469 {offsets = [0, 256], sizes = [8, 32], strides = [1, 1]} : vector<8x384xf32> to vector<8x32xf32>
    %487 = vector.extract_strided_slice %468 {offsets = [0, 256], sizes = [8, 32], strides = [1, 1]} : vector<8x384xf32> to vector<8x32xf32>
    %488 = arith.addf %487, %263 : vector<8x32xf32>
    %489 = arith.mulf %477, %488 : vector<8x32xf32>
    %490 = arith.addf %486, %489 : vector<8x32xf32>
    %491 = math.tanh %490 : vector<8x32xf32>
    %cst_131 = arith.constant 1.000000e+00 : f32
    %492 = vector.broadcast %cst_131 : f32 to vector<8x32xf32>
    %493 = arith.subf %492, %485 : vector<8x32xf32>
    %494 = arith.mulf %493, %491 : vector<8x32xf32>
    %495 = arith.mulf %485, %467 : vector<8x32xf32>
    %496 = arith.addf %494, %495 : vector<8x32xf32>
    %c0_132 = arith.constant 0 : index
    %c0_133 = arith.constant 0 : index
    %497 = vector.load %arg10[%c0_132, %c0_133] : memref<32x128xf32, #tpu.memory_space<vmem>>, vector<32x128xf32>
    %cst_134 = arith.constant dense<0.000000e+00> : vector<8x128xf32>
    %498 = tpu.matmul %496, %497, %cst_134 {dimension_numbers = #tpu.dot_dimension_numbers<[1], [0], [0], [1], [0, 0, 1, 1], [], []>} : vector<8x32xf32>, vector<32x128xf32>, vector<8x128xf32> -> vector<8x128xf32>
    %c0_135 = arith.constant 0 : index
    %c0_136 = arith.constant 0 : index
    %499 = vector.load %arg11[%c0_135, %c0_136] : memref<1x128xf32, #tpu.memory_space<vmem>>, vector<1x128xf32>
    %500 = vector.broadcast %499 : vector<1x128xf32> to vector<8x128xf32>
    %501 = arith.addf %498, %500 : vector<8x128xf32>
    %c0_137 = arith.constant 0 : index
    %c0_138 = arith.constant 0 : index
    %502 = vector.load %arg12[%c0_137, %c0_138] : memref<8x128xf32, #tpu.memory_space<vmem>>, vector<8x128xf32>
    tpu.vector_store %arg12[%c0_137, %c0_138], %501 {strides = array<i32>} : memref<8x128xf32, #tpu.memory_space<vmem>>, vector<8x128xf32>,
    return
  }
  func.func @transform_0(%arg0: i32) -> (i32, i32, i32) {
    %c0_i32 = arith.constant 0 : i32
    %c0_i32_0 = arith.constant 0 : i32
    %c0_i32_1 = arith.constant 0 : i32
    return %arg0, %c0_i32, %c0_i32_0 : i32, i32, i32
  }
  func.func @transform_1(%arg0: i32) -> (i32, i32) {
    %c0_i32 = arith.constant 0 : i32
    %c0_i32_0 = arith.constant 0 : i32
    %c0_i32_1 = arith.constant 0 : i32
    return %c0_i32, %c0_i32_0 : i32, i32
  }
  func.func @transform_2(%arg0: i32) -> (i32, i32) {
    %c0_i32 = arith.constant 0 : i32
    %c0_i32_0 = arith.constant 0 : i32
    %c0_i32_1 = arith.constant 0 : i32
    return %c0_i32, %c0_i32_0 : i32, i32
  }
  func.func @transform_3(%arg0: i32) -> (i32, i32) {
    %c0_i32 = arith.constant 0 : i32
    %c0_i32_0 = arith.constant 0 : i32
    %c0_i32_1 = arith.constant 0 : i32
    return %c0_i32, %c0_i32_0 : i32, i32
  }
  func.func @transform_4(%arg0: i32) -> (i32, i32) {
    %c0_i32 = arith.constant 0 : i32
    %c0_i32_0 = arith.constant 0 : i32
    %c0_i32_1 = arith.constant 0 : i32
    return %c0_i32, %c0_i32_0 : i32, i32
  }
  func.func @transform_5(%arg0: i32) -> (i32, i32) {
    %c0_i32 = arith.constant 0 : i32
    %c0_i32_0 = arith.constant 0 : i32
    %c0_i32_1 = arith.constant 0 : i32
    return %c0_i32, %c0_i32_0 : i32, i32
  }
  func.func @transform_6(%arg0: i32) -> (i32, i32) {
    %c0_i32 = arith.constant 0 : i32
    %c0_i32_0 = arith.constant 0 : i32
    %c0_i32_1 = arith.constant 0 : i32
    return %c0_i32, %c0_i32_0 : i32, i32
  }
  func.func @transform_7(%arg0: i32) -> (i32, i32) {
    %c0_i32 = arith.constant 0 : i32
    %c0_i32_0 = arith.constant 0 : i32
    %c0_i32_1 = arith.constant 0 : i32
    return %c0_i32, %c0_i32_0 : i32, i32
  }
  func.func @transform_8(%arg0: i32) -> (i32, i32) {
    %c0_i32 = arith.constant 0 : i32
    %c0_i32_0 = arith.constant 0 : i32
    %c0_i32_1 = arith.constant 0 : i32
    return %c0_i32, %c0_i32_0 : i32, i32
  }
  func.func @transform_9(%arg0: i32) -> (i32, i32) {
    %c0_i32 = arith.constant 0 : i32
    %c0_i32_0 = arith.constant 0 : i32
    %c0_i32_1 = arith.constant 0 : i32
    return %c0_i32, %c0_i32_0 : i32, i32
  }
  func.func @transform_10(%arg0: i32) -> (i32, i32) {
    %c0_i32 = arith.constant 0 : i32
    %c0_i32_0 = arith.constant 0 : i32
    %c0_i32_1 = arith.constant 0 : i32
    return %c0_i32, %c0_i32_0 : i32, i32
  }
  func.func @transform_11(%arg0: i32) -> (i32, i32) {
    %c0_i32 = arith.constant 0 : i32
    %c0_i32_0 = arith.constant 0 : i32
    return %arg0, %c0_i32 : i32, i32
  }
}

</mosaic_0001>

<llo_original>
// kernel: tpu_custom_call.1
$region0: #{tpu_custom_call.1}
  #allocation0 [shape = 'u32[]', space=smem, size = 0x4, offset = 0x4, fixed_abs, tag = 'smem constant byte address 0x4 - core index']
  #allocation1 [shape = 'u32[144,128]{1,0:T(1,128)}', space=vmem, size = 0x12000, scoped, tag = 'internal scratch']
  #allocation2 [shape = 'f32[64,384]{1,0:T(8,128)}', space=vmem, size = 0x18000, scoped, tag = 'scratch operand']
  #allocation3 [shape = 'f32[64,32]{1,0:T(8,128)}', space=vmem, size = 0x8000, scoped, tag = 'scratch operand']
  %s0 = inlined_call_operand.vmem [shape: f32[1,64,16], index: 0, kind: input, shape index: {}]
  %s1 = inlined_call_operand.vmem [shape: f32[16,384], index: 1, kind: input, shape index: {}]
  %s2 = inlined_call_operand.hbm [shape: f32[32,384], index: 2, kind: input, shape index: {}]
  %s3 = inlined_call_operand.vmem [shape: f32[1,384], index: 3, kind: input, shape index: {}]
  %s4 = inlined_call_operand.vmem [shape: f32[1,32], index: 4, kind: input, shape index: {}]
  %s5 = inlined_call_operand.hbm [shape: f32[32,384], index: 5, kind: input, shape index: {}]
  %s6 = inlined_call_operand.hbm [shape: f32[32,384], index: 6, kind: input, shape index: {}]
  %s7 = inlined_call_operand.vmem [shape: f32[1,384], index: 7, kind: input, shape index: {}]
  %s8 = inlined_call_operand.vmem [shape: f32[1,32], index: 8, kind: input, shape index: {}]
  %s9 = inlined_call_operand.vmem [shape: f32[32,128], index: 9, kind: input, shape index: {}]
  %s10 = inlined_call_operand.vmem [shape: f32[1,128], index: 10, kind: input, shape index: {}]
  %s11 = inlined_call_operand.hbm [shape: f32[8,128], index: 11, kind: output, shape index: {}]
  %s12 = sld [smem:[#allocation0]]
  $region66: #{tpu_custom_call.1} parent=0
    _
  %s14 = ssub.s32 1, %s12
  %s15 = scalar_select 0, %s14, %s12
  $region1: #{tpu_custom_call.1} parent=0
    #allocation4 [shape = 'u8[49152]{0}', space=vmem, size = 0xc000, scoped, tag = 'input window, operand 2, single buffered']
    #allocation5 [shape = 's32[1]{0}', space=sflag, size = 0x4, scoped, tag = 'scoped memory for tpu_custom_call.1']
    #allocation6 [shape = 's32[1]{0}', space=sflag, size = 0x4, scoped, tag = 'scoped memory for tpu_custom_call.1']
    #allocation7 [shape = 'u8[49152]{0}', space=vmem, size = 0xc000, scoped, tag = 'input window, operand 5, single buffered']
    #allocation8 [shape = 's32[1]{0}', space=sflag, size = 0x4, scoped, tag = 'scoped memory for tpu_custom_call.1']
    #allocation9 [shape = 'u8[49152]{0}', space=vmem, size = 0xc000, scoped, tag = 'input window, operand 6, single buffered']
    #allocation10 [shape = 'u8[4096]{0}', space=vmem, size = 0x1000, scoped, tag = 'output window, operand 0, single buffered']
    %16 = vsyncpa [#allocation5], 0
    %17 = vsyncpa [#allocation8], 0
    %18 = vsyncpa [#allocation6], 0
    // Predicated region
    $region2: #{tpu_custom_call.1} parent=1 // pred_check
      _
    $region3: #{tpu_custom_call.1} parent=1 // pred_check_branch
      %20 = sbr.rel (0) target = $region5
    $region4: #{tpu_custom_call.1} parent=1 // pred_region
      _
    $region5: #{tpu_custom_call.1} parent=1 // pred_fallthru
      _
    // Predicated region
    $region6: #{tpu_custom_call.1} parent=1 // pred_check
      _
    $region7: #{tpu_custom_call.1} parent=1 // pred_check_branch
      %22 = sbr.rel (0) target = $region9
    $region8: #{tpu_custom_call.1} parent=1 // pred_region
      _
    $region9: #{tpu_custom_call.1} parent=1 // pred_fallthru
      _
    // Predicated region
    $region10: #{tpu_custom_call.1} parent=1 // pred_check
      _
    $region11: #{tpu_custom_call.1} parent=1 // pred_check_branch
      %24 = sbr.rel (0) target = $region13
    $region12: #{tpu_custom_call.1} parent=1 // pred_region
      %s26 = ssub.s32 1536, 1536
      %27 = vsyncadd [#allocation5], %s26
      %s28 = sshll.u32 [#allocation4], 4
      %s29 = int_to_ptr.vmem [resolvable:$true] %s28
      %34 = dma.hbm_to_vmem [thread:$0]  %s2, 1536, %s29, [#allocation5], 384, 384, 24
    $region13: #{tpu_custom_call.1} parent=1 // pred_fallthru
      _
    // Predicated region
    $region14: #{tpu_custom_call.1} parent=1 // pred_check
      _
    $region15: #{tpu_custom_call.1} parent=1 // pred_check_branch
      %36 = sbr.rel (0) target = $region17
    $region16: #{tpu_custom_call.1} parent=1 // pred_region
      _
    $region17: #{tpu_custom_call.1} parent=1 // pred_fallthru
      _
    // Predicated region
    $region18: #{tpu_custom_call.1} parent=1 // pred_check
      _
    $region19: #{tpu_custom_call.1} parent=1 // pred_check_branch
      %38 = sbr.rel (0) target = $region21
    $region20: #{tpu_custom_call.1} parent=1 // pred_region
      _
    $region21: #{tpu_custom_call.1} parent=1 // pred_fallthru
      _
    // Predicated region
    $region22: #{tpu_custom_call.1} parent=1 // pred_check
      _
    $region23: #{tpu_custom_call.1} parent=1 // pred_check_branch
      %40 = sbr.rel (0) target = $region25
    $region24: #{tpu_custom_call.1} parent=1 // pred_region
      %s42 = ssub.s32 1536, 1536
      %43 = vsyncadd [#allocation8], %s42
      %s44 = sshll.u32 [#allocation7], 4
      %s45 = int_to_ptr.vmem [resolvable:$true] %s44
      %50 = dma.hbm_to_vmem [thread:$0]  %s5, 1536, %s45, [#allocation8], 384, 384, 24
    $region25: #{tpu_custom_call.1} parent=1 // pred_fallthru
      _
    // Predicated region
    $region26: #{tpu_custom_call.1} parent=1 // pred_check
      _
    $region27: #{tpu_custom_call.1} parent=1 // pred_check_branch
      %52 = sbr.rel (0) target = $region29
    $region28: #{tpu_custom_call.1} parent=1 // pred_region
      %s54 = ssub.s32 1536, 1536
      %55 = vsyncadd [#allocation8], %s54
      %s56 = sshll.u32 [#allocation9], 4
      %s57 = int_to_ptr.vmem [resolvable:$true] %s56
      %62 = dma.hbm_to_vmem [thread:$0]  %s6, 1536, %s57, [#allocation8], 384, 384, 24
    $region29: #{tpu_custom_call.1} parent=1 // pred_fallthru
      _
    // Predicated region
    $region30: #{tpu_custom_call.1} parent=1 // pred_check
      _
    $region31: #{tpu_custom_call.1} parent=1 // pred_check_branch
      %64 = sbr.rel (0) target = $region33
    $region32: #{tpu_custom_call.1} parent=1 // pred_region
      _
    $region33: #{tpu_custom_call.1} parent=1 // pred_fallthru
      _
    // Predicated region
    $region34: #{tpu_custom_call.1} parent=1 // pred_check
      _
    $region35: #{tpu_custom_call.1} parent=1 // pred_check_branch
      %66 = sbr.rel (0) target = $region37
    $region36: #{tpu_custom_call.1} parent=1 // pred_region
      _
    $region37: #{tpu_custom_call.1} parent=1 // pred_fallthru
      _
    // Predicated region
    $region38: #{tpu_custom_call.1} parent=1 // pred_check
      _
    $region39: #{tpu_custom_call.1} parent=1 // pred_check_branch
      %68 = sbr.rel (0) target = $region41
    $region40: #{tpu_custom_call.1} parent=1 // pred_region
      _
    $region41: #{tpu_custom_call.1} parent=1 // pred_fallthru
      _
    // Predicated region
    $region42: #{tpu_custom_call.1} parent=1 // pred_check
      _
    $region43: #{tpu_custom_call.1} parent=1 // pred_check_branch
      %70 = sbr.rel (0) target = $region45
    $region44: #{tpu_custom_call.1} parent=1 // pred_region
      _
    $region45: #{tpu_custom_call.1} parent=1 // pred_fallthru
      _
    // Predicated region
    $region46: #{tpu_custom_call.1} parent=1 // pred_check
      _
    $region47: #{tpu_custom_call.1} parent=1 // pred_check_branch
      %72 = sbr.rel (0) target = $region49
    $region48: #{tpu_custom_call.1} parent=1 // pred_region
      %73 = dma.done [#allocation5], 1536
    $region49: #{tpu_custom_call.1} parent=1 // pred_fallthru
      _
    // Predicated region
    $region50: #{tpu_custom_call.1} parent=1 // pred_check
      _
    $region51: #{tpu_custom_call.1} parent=1 // pred_check_branch
      %75 = sbr.rel (0) target = $region53
    $region52: #{tpu_custom_call.1} parent=1 // pred_region
      %76 = dma.done [#allocation8], 1536
    $region53: #{tpu_custom_call.1} parent=1 // pred_fallthru
      _
    // Predicated region
    $region54: #{tpu_custom_call.1} parent=1 // pred_check
      _
    $region55: #{tpu_custom_call.1} parent=1 // pred_check_branch
      %78 = sbr.rel (0) target = $region57
    $region56: #{tpu_custom_call.1} parent=1 // pred_region
      %79 = dma.done [#allocation8], 1536
    $region57: #{tpu_custom_call.1} parent=1 // pred_fallthru
      _
    %v80 = vld [vmem:[%s0] sm:$0xff]
    %v81 = vld [vmem:[%s0 + $0x8] sm:$0xff]
    %v82 = vld [vmem:[%s0 + $0x10] sm:$0xff]
    %v83 = vld [vmem:[%s0 + $0x18] sm:$0xff]
    %v84 = vld [vmem:[%s0 + $0x20] sm:$0xff]
    %v85 = vld [vmem:[%s0 + $0x28] sm:$0xff]
    %v86 = vld [vmem:[%s0 + $0x30] sm:$0xff]
    %v87 = vld [vmem:[%s0 + $0x38] sm:$0xff]
    %v88 = vld [vmem:[%s1] sm:$0xff]
    %v89 = vld [vmem:[%s1 + $0x8] sm:$0xff]
    %v90 = vld [vmem:[%s1 + $0x10] sm:$0xff]
    %v91 = vld [vmem:[%s1 + $0x18] sm:$0xff]
    %v92 = vld [vmem:[%s1 + $0x20] sm:$0xff]
    %v93 = vld [vmem:[%s1 + $0x28] sm:$0xff]
    %v94 = vld [vmem:[%s3] sm:$0x7]
    %v96 = vlaneseq
    %v97 = vshrl.u32 %v96, 7
    %v98 = vsub.s32 0, %v97
    %v99 = vrot.slane %v94, %v98
    %v100 = vlaneseq
    %v101 = vshrl.u32 %v100, 7
    %v102 = vsub.s32 1, %v101
    %v103 = vrot.slane %v94, %v102
    %v104 = vlaneseq
    %v105 = vshrl.u32 %v104, 7
    %v106 = vsub.s32 2, %v105
    %v107 = vrot.slane %v94, %v106
    %vm111 = vcmask 130048
    %v113 = vsel %vm111, %v80, 0
    %v116 = vsel %vm111, %v81, 0
    %v119 = vsel %vm111, %v82, 0
    %v122 = vsel %vm111, %v83, 0
    %v125 = vsel %vm111, %v84, 0
    %v128 = vsel %vm111, %v85, 0
    %v131 = vsel %vm111, %v86, 0
    %v134 = vsel %vm111, %v87, 0
    %136 = vmatprep.subr.mxu0 0.0
    %137 = vmatpush1.msra.mxu0 0.0
    %138 = vmatprep.subr.mxu0 0.0
    %139 = vmatpush1.msra.mxu0 0.0
    %140 = vmatprep.subr.mxu0 0.0
    %141 = vmatpush1.msra.mxu0 0.0
    %142 = vmatprep.subr.mxu0 0.0
    %143 = vmatpush1.msra.mxu0 0.0
    %144 = vmatprep.subr.mxu0 0.0
    %145 = vmatpush1.msra.mxu0 0.0
    %146 = vmatprep.subr.mxu0 0.0
    %147 = vmatpush1.msra.mxu0 0.0
    %148 = vmatprep.subr.mxu0 0.0
    %149 = vmatpush1.msra.mxu0 0.0
    %150 = vmatprep.subr.mxu0 0.0
    %151 = vmatpush1.msra.mxu0 0.0
    %152 = vmatprep.subr.mxu0 0.0
    %153 = vmatpush1.msra.mxu0 0.0
    %154 = vmatprep.subr.mxu0 0.0
    %155 = vmatpush1.msra.mxu0 0.0
    %156 = vmatprep.subr.mxu0 0.0
    %157 = vmatpush1.msra.mxu0 0.0
    %158 = vmatprep.subr.mxu0 0.0
    %159 = vmatpush1.msra.mxu0 0.0
    %160 = vmatprep.subr.mxu0 0.0
    %161 = vmatpush1.msra.mxu0 0.0
    %162 = vmatprep.subr.mxu0 0.0
    %163 = vmatpush1.msra.mxu0 0.0
    %164 = vmatprep.subr.mxu0 %v92
    %165 = vmatpush1.msra.mxu0 %v91
    %166 = vmatprep.subr.mxu0 %v89
    %167 = vmatpush1.msra.mxu0 %v88
    %168 = vmatprep.subr.mxu0 0.0
    %169 = vmatpush2.msra.mxu0 0.0
    %170 = vmatprep.subr.mxu0 0.0
    %171 = vmatpush2.msra.mxu0 0.0
    %172 = vmatprep.subr.mxu0 0.0
    %173 = vmatpush2.msra.mxu0 0.0
    %174 = vmatprep.subr.mxu0 0.0
    %175 = vmatpush2.msra.mxu0 0.0
    %176 = vmatprep.subr.mxu0 0.0
    %177 = vmatpush2.msra.mxu0 0.0
    %178 = vmatprep.subr.mxu0 0.0
    %179 = vmatpush2.msra.mxu0 0.0
    %180 = vmatprep.subr.mxu0 0.0
    %181 = vmatpush2.msra.mxu0 0.0
    %182 = vmatprep.subr.mxu0 0.0
    %183 = vmatpush2.msra.mxu0 0.0
    %184 = vmatprep.subr.mxu0 0.0
    %185 = vmatpush2.msra.mxu0 0.0
    %186 = vmatprep.subr.mxu0 0.0
    %187 = vmatpush2.msra.mxu0 0.0
    %188 = vmatprep.subr.mxu0 0.0
    %189 = vmatpush2.msra.mxu0 0.0
    %190 = vmatprep.subr.mxu0 0.0
    %191 = vmatpush2.msra.mxu0 0.0
    %192 = vmatprep.subr.mxu0 0.0
    %193 = vmatpush2.msra.mxu0 0.0
    %194 = vmatprep.subr.mxu0 0.0
    %195 = vmatpush2.msra.mxu0 0.0
    %196 = vmatprep.subr.mxu0 0.0
    %197 = vmatpush2.msra.mxu0 0.0
    %198 = vmatprep.subr.mxu0 0.0
    %199 = vmatpush2.msra.mxu0 0.0
    %200 = vmatprep.mubr.f32.mxu0 0.0
    %201 = vmatmul.mubr.f32.gmra.mxu0 %v113
    %v202 = vpop.f32.mrf.mxu0
    %v203 = vadd.f32 %v99, %v202
    %v204 = vpop.f32.mrf.mxu0
    %v205 = vadd.f32 %v103, %v204
    %206 = vmatprep.mubr.f32.mxu0 0.0
    %207 = vmatmul.mubr.f32.gmra.mxu0 %v116
    %v208 = vpop.f32.mrf.mxu0
    %v209 = vadd.f32 %v99, %v208
    %v210 = vpop.f32.mrf.mxu0
    %v211 = vadd.f32 %v103, %v210
    %212 = vmatprep.mubr.f32.mxu0 0.0
    %213 = vmatmul.mubr.f32.gmra.mxu0 %v119
    %v214 = vpop.f32.mrf.mxu0
    %v215 = vadd.f32 %v99, %v214
    %v216 = vpop.f32.mrf.mxu0
    %v217 = vadd.f32 %v103, %v216
    %218 = vmatprep.mubr.f32.mxu0 0.0
    %219 = vmatmul.mubr.f32.gmra.mxu0 %v122
    %v220 = vpop.f32.mrf.mxu0
    %v221 = vadd.f32 %v99, %v220
    %v222 = vpop.f32.mrf.mxu0
    %v223 = vadd.f32 %v103, %v222
    %224 = vmatprep.mubr.f32.mxu0 0.0
    %225 = vmatmul.mubr.f32.gmra.mxu0 %v125
    %v226 = vpop.f32.mrf.mxu0
    %v227 = vadd.f32 %v99, %v226
    %v228 = vpop.f32.mrf.mxu0
    %v229 = vadd.f32 %v103, %v228
    %230 = vmatprep.mubr.f32.mxu0 0.0
    %231 = vmatmul.mubr.f32.gmra.mxu0 %v128
    %v232 = vpop.f32.mrf.mxu0
    %v233 = vadd.f32 %v99, %v232
    %v234 = vpop.f32.mrf.mxu0
    %v235 = vadd.f32 %v103, %v234
    %236 = vmatprep.mubr.f32.mxu0 0.0
    %237 = vmatmul.mubr.f32.gmra.mxu0 %v131
    %v238 = vpop.f32.mrf.mxu0
    %v239 = vadd.f32 %v99, %v238
    %v240 = vpop.f32.mrf.mxu0
    %v241 = vadd.f32 %v103, %v240
    %242 = vmatprep.mubr.f32.mxu0 0.0
    %243 = vmatmul.mubr.f32.gmra.mxu0 %v134
    %v244 = vpop.f32.mrf.mxu0
    %v245 = vadd.f32 %v99, %v244
    %v246 = vpop.f32.mrf.mxu0
    %v247 = vadd.f32 %v103, %v246
    %248 = vdwg.mxu0
    %249 = vmatprep.subr.mxu0 0.0
    %250 = vmatpush1.msra.mxu0 0.0
    %251 = vmatprep.subr.mxu0 0.0
    %252 = vmatpush1.msra.mxu0 0.0
    %253 = vmatprep.subr.mxu0 0.0
    %254 = vmatpush1.msra.mxu0 0.0
    %255 = vmatprep.subr.mxu0 0.0
    %256 = vmatpush1.msra.mxu0 0.0
    %257 = vmatprep.subr.mxu0 0.0
    %258 = vmatpush1.msra.mxu0 0.0
    %259 = vmatprep.subr.mxu0 0.0
    %260 = vmatpush1.msra.mxu0 0.0
    %261 = vmatprep.subr.mxu0 0.0
    %262 = vmatpush1.msra.mxu0 0.0
    %263 = vmatprep.subr.mxu0 0.0
    %264 = vmatpush1.msra.mxu0 0.0
    %265 = vmatprep.subr.mxu0 0.0
    %266 = vmatpush1.msra.mxu0 0.0
    %267 = vmatprep.subr.mxu0 0.0
    %268 = vmatpush1.msra.mxu0 0.0
    %269 = vmatprep.subr.mxu0 0.0
    %270 = vmatpush1.msra.mxu0 0.0
    %271 = vmatprep.subr.mxu0 0.0
    %272 = vmatpush1.msra.mxu0 0.0
    %273 = vmatprep.subr.mxu0 0.0
    %274 = vmatpush1.msra.mxu0 0.0
    %275 = vmatprep.subr.mxu0 0.0
    %276 = vmatpush1.msra.mxu0 0.0
    %277 = vmatprep.subr.mxu0 0.0
    %278 = vmatpush1.msra.mxu0 %v93
    %279 = vmatprep.subr.mxu0 0.0
    %280 = vmatpush1.msra.mxu0 %v90
    %281 = vmatprep.subr.mxu0 0.0
    %282 = vmatpush2.msra.mxu0 0.0
    %283 = vmatprep.subr.mxu0 0.0
    %284 = vmatpush2.msra.mxu0 0.0
    %285 = vmatprep.subr.mxu0 0.0
    %286 = vmatpush2.msra.mxu0 0.0
    %287 = vmatprep.subr.mxu0 0.0
    %288 = vmatpush2.msra.mxu0 0.0
    %289 = vmatprep.subr.mxu0 0.0
    %290 = vmatpush2.msra.mxu0 0.0
    %291 = vmatprep.subr.mxu0 0.0
    %292 = vmatpush2.msra.mxu0 0.0
    %293 = vmatprep.subr.mxu0 0.0
    %294 = vmatpush2.msra.mxu0 0.0
    %295 = vmatprep.subr.mxu0 0.0
    %296 = vmatpush2.msra.mxu0 0.0
    %297 = vmatprep.subr.mxu0 0.0
    %298 = vmatpush2.msra.mxu0 0.0
    %299 = vmatprep.subr.mxu0 0.0
    %300 = vmatpush2.msra.mxu0 0.0
    %301 = vmatprep.subr.mxu0 0.0
    %302 = vmatpush2.msra.mxu0 0.0
    %303 = vmatprep.subr.mxu0 0.0
    %304 = vmatpush2.msra.mxu0 0.0
    %305 = vmatprep.subr.mxu0 0.0
    %306 = vmatpush2.msra.mxu0 0.0
    %307 = vmatprep.subr.mxu0 0.0
    %308 = vmatpush2.msra.mxu0 0.0
    %309 = vmatprep.subr.mxu0 0.0
    %310 = vmatpush2.msra.mxu0 0.0
    %311 = vmatprep.subr.mxu0 0.0
    %312 = vmatpush2.msra.mxu0 0.0
    %313 = vmatprep.mubr.f32.mxu0 0.0
    %314 = vmatmul.mubr.f32.gmra.mxu0 %v113
    %v315 = vpop.f32.mrf.mxu0
    %v316 = vadd.f32 %v107, %v315
    %v317 = vpop.f32.mrf.mxu0
    %318 = vmatprep.mubr.f32.mxu0 0.0
    %319 = vmatmul.mubr.f32.gmra.mxu0 %v116
    %v320 = vpop.f32.mrf.mxu0
    %v321 = vadd.f32 %v107, %v320
    %v322 = vpop.f32.mrf.mxu0
    %323 = vmatprep.mubr.f32.mxu0 0.0
    %324 = vmatmul.mubr.f32.gmra.mxu0 %v119
    %v325 = vpop.f32.mrf.mxu0
    %v326 = vadd.f32 %v107, %v325
    %v327 = vpop.f32.mrf.mxu0
    %328 = vmatprep.mubr.f32.mxu0 0.0
    %329 = vmatmul.mubr.f32.gmra.mxu0 %v122
    %v330 = vpop.f32.mrf.mxu0
    %v331 = vadd.f32 %v107, %v330
    %v332 = vpop.f32.mrf.mxu0
    %333 = vmatprep.mubr.f32.mxu0 0.0
    %334 = vmatmul.mubr.f32.gmra.mxu0 %v125
    %v335 = vpop.f32.mrf.mxu0
    %v336 = vadd.f32 %v107, %v335
    %v337 = vpop.f32.mrf.mxu0
    %338 = vmatprep.mubr.f32.mxu0 0.0
    %339 = vmatmul.mubr.f32.gmra.mxu0 %v128
    %v340 = vpop.f32.mrf.mxu0
    %v341 = vadd.f32 %v107, %v340
    %v342 = vpop.f32.mrf.mxu0
    %343 = vmatprep.mubr.f32.mxu0 0.0
    %344 = vmatmul.mubr.f32.gmra.mxu0 %v131
    %v345 = vpop.f32.mrf.mxu0
    %v346 = vadd.f32 %v107, %v345
    %v347 = vpop.f32.mrf.mxu0
    %348 = vmatprep.mubr.f32.mxu0 0.0
    %349 = vmatmul.mubr.f32.gmra.mxu0 %v134
    %v350 = vpop.f32.mrf.mxu0
    %v351 = vadd.f32 %v107, %v350
    %v352 = vpop.f32.mrf.mxu0
    %353 = vdwg.mxu0
    %354 = vst [vmem:[#allocation2] sm:$0xff] %v203
    %355 = vst [vmem:[#allocation2 + $0x8] sm:$0xff] %v205
    %356 = vst [vmem:[#allocation2 + $0x10] sm:$0xff] %v316
    %357 = vst [vmem:[#allocation2 + $0x18] sm:$0xff] %v209
    %358 = vst [vmem:[#allocation2 + $0x20] sm:$0xff] %v211
    %359 = vst [vmem:[#allocation2 + $0x28] sm:$0xff] %v321
    %360 = vst [vmem:[#allocation2 + $0x30] sm:$0xff] %v215
    %361 = vst [vmem:[#allocation2 + $0x38] sm:$0xff] %v217
    %362 = vst [vmem:[#allocation2 + $0x40] sm:$0xff] %v326
    %363 = vst [vmem:[#allocation2 + $0x48] sm:$0xff] %v221
    %364 = vst [vmem:[#allocation2 + $0x50] sm:$0xff] %v223
    %365 = vst [vmem:[#allocation2 + $0x58] sm:$0xff] %v331
    %366 = vst [vmem:[#allocation2 + $0x60] sm:$0xff] %v227
    %367 = vst [vmem:[#allocation2 + $0x68] sm:$0xff] %v229
    %368 = vst [vmem:[#allocation2 + $0x70] sm:$0xff] %v336
    %369 = vst [vmem:[#allocation2 + $0x78] sm:$0xff] %v233
    %370 = vst [vmem:[#allocation2 + $0x80] sm:$0xff] %v235
    %371 = vst [vmem:[#allocation2 + $0x88] sm:$0xff] %v341
    %372 = vst [vmem:[#allocation2 + $0x90] sm:$0xff] %v239
    %373 = vst [vmem:[#allocation2 + $0x98] sm:$0xff] %v241
    %374 = vst [vmem:[#allocation2 + $0xa0] sm:$0xff] %v346
    %375 = vst [vmem:[#allocation2 + $0xa8] sm:$0xff] %v245
    %376 = vst [vmem:[#allocation2 + $0xb0] sm:$0xff] %v247
    %377 = vst [vmem:[#allocation2 + $0xb8] sm:$0xff] %v351
    %v378 = vld [vmem:[#allocation4] sm:$0xff]
    %v379 = vld [vmem:[#allocation4 + $0x8] sm:$0xff]
    %v380 = vld [vmem:[#allocation4 + $0x10] sm:$0xff]
    %v381 = vld [vmem:[#allocation4 + $0x18] sm:$0xff]
    %v382 = vld [vmem:[#allocation4 + $0x20] sm:$0xff]
    %v383 = vld [vmem:[#allocation4 + $0x28] sm:$0xff]
    %v384 = vld [vmem:[#allocation4 + $0x30] sm:$0xff]
    %v385 = vld [vmem:[#allocation4 + $0x38] sm:$0xff]
    %v386 = vld [vmem:[#allocation4 + $0x40] sm:$0xff]
    %v387 = vld [vmem:[#allocation4 + $0x48] sm:$0xff]
    %v388 = vld [vmem:[#allocation4 + $0x50] sm:$0xff]
    %v389 = vld [vmem:[#allocation4 + $0x58] sm:$0xff]
    %v390 = vld [vmem:[%s4] sm:$0x1]
    %v392 = vlaneseq
    %v393 = vshrl.u32 %v392, 7
    %v394 = vsub.s32 0, %v393
    %v395 = vrot.slane %v390, %v394
    %vm397 = vcmask 261120
    %v399 = vsel %vm397, 0.0, 0
    %401 = vmatprep.subr.mxu0 0.0
    %402 = vmatpush1.msra.mxu0 0.0
    %403 = vmatprep.subr.mxu0 0.0
    %404 = vmatpush1.msra.mxu0 0.0
    %405 = vmatprep.subr.mxu0 0.0
    %406 = vmatpush1.msra.mxu0 0.0
    %407 = vmatprep.subr.mxu0 0.0
    %408 = vmatpush1.msra.mxu0 0.0
    %409 = vmatprep.subr.mxu0 0.0
    %410 = vmatpush1.msra.mxu0 0.0
    %411 = vmatprep.subr.mxu0 0.0
    %412 = vmatpush1.msra.mxu0 0.0
    %413 = vmatprep.subr.mxu0 0.0
    %414 = vmatpush1.msra.mxu0 0.0
    %415 = vmatprep.subr.mxu0 0.0
    %416 = vmatpush1.msra.mxu0 0.0
    %417 = vmatprep.subr.mxu0 0.0
    %418 = vmatpush1.msra.mxu0 0.0
    %419 = vmatprep.subr.mxu0 0.0
    %420 = vmatpush1.msra.mxu0 0.0
    %421 = vmatprep.subr.mxu0 0.0
    %422 = vmatpush1.msra.mxu0 0.0
    %423 = vmatprep.subr.mxu0 0.0
    %424 = vmatpush1.msra.mxu0 0.0
    %425 = vmatprep.subr.mxu0 %v388
    %426 = vmatpush1.msra.mxu0 %v387
    %427 = vmatprep.subr.mxu0 %v385
    %428 = vmatpush1.msra.mxu0 %v384
    %429 = vmatprep.subr.mxu0 %v382
    %430 = vmatpush1.msra.mxu0 %v381
    %431 = vmatprep.subr.mxu0 %v379
    %432 = vmatpush1.msra.mxu0 %v378
    %433 = vmatprep.subr.mxu0 0.0
    %434 = vmatpush2.msra.mxu0 0.0
    %435 = vmatprep.subr.mxu0 0.0
    %436 = vmatpush2.msra.mxu0 0.0
    %437 = vmatprep.subr.mxu0 0.0
    %438 = vmatpush2.msra.mxu0 0.0
    %439 = vmatprep.subr.mxu0 0.0
    %440 = vmatpush2.msra.mxu0 0.0
    %441 = vmatprep.subr.mxu0 0.0
    %442 = vmatpush2.msra.mxu0 0.0
    %443 = vmatprep.subr.mxu0 0.0
    %444 = vmatpush2.msra.mxu0 0.0
    %445 = vmatprep.subr.mxu0 0.0
    %446 = vmatpush2.msra.mxu0 0.0
    %447 = vmatprep.subr.mxu0 0.0
    %448 = vmatpush2.msra.mxu0 0.0
    %449 = vmatprep.subr.mxu0 0.0
    %450 = vmatpush2.msra.mxu0 0.0
    %451 = vmatprep.subr.mxu0 0.0
    %452 = vmatpush2.msra.mxu0 0.0
    %453 = vmatprep.subr.mxu0 0.0
    %454 = vmatpush2.msra.mxu0 0.0
    %455 = vmatprep.subr.mxu0 0.0
    %456 = vmatpush2.msra.mxu0 0.0
    %457 = vmatprep.subr.mxu0 0.0
    %458 = vmatpush2.msra.mxu0 0.0
    %459 = vmatprep.subr.mxu0 0.0
    %460 = vmatpush2.msra.mxu0 0.0
    %461 = vmatprep.subr.mxu0 0.0
    %462 = vmatpush2.msra.mxu0 0.0
    %463 = vmatprep.subr.mxu0 0.0
    %464 = vmatpush2.msra.mxu0 0.0
    %465 = vmatprep.mubr.f32.mxu0 0.0
    %466 = vmatmul.mubr.f32.gmra.mxu0 %v399
    %v467 = vpop.f32.mrf.mxu0
    %v468 = vadd.f32 0.0, %v467
    %v469 = vpop.f32.mrf.mxu0
    %v470 = vadd.f32 0.0, %v469
    %471 = vdwg.mxu0
    %472 = vmatprep.subr.mxu0 0.0
    %473 = vmatpush1.msra.mxu0 0.0
    %474 = vmatprep.subr.mxu0 0.0
    %475 = vmatpush1.msra.mxu0 0.0
    %476 = vmatprep.subr.mxu0 0.0
    %477 = vmatpush1.msra.mxu0 0.0
    %478 = vmatprep.subr.mxu0 0.0
    %479 = vmatpush1.msra.mxu0 0.0
    %480 = vmatprep.subr.mxu0 0.0
    %481 = vmatpush1.msra.mxu0 0.0
    %482 = vmatprep.subr.mxu0 0.0
    %483 = vmatpush1.msra.mxu0 0.0
    %484 = vmatprep.subr.mxu0 0.0
    %485 = vmatpush1.msra.mxu0 0.0
    %486 = vmatprep.subr.mxu0 0.0
    %487 = vmatpush1.msra.mxu0 0.0
    %488 = vmatprep.subr.mxu0 0.0
    %489 = vmatpush1.msra.mxu0 0.0
    %490 = vmatprep.subr.mxu0 0.0
    %491 = vmatpush1.msra.mxu0 0.0
    %492 = vmatprep.subr.mxu0 0.0
    %493 = vmatpush1.msra.mxu0 0.0
    %494 = vmatprep.subr.mxu0 0.0
    %495 = vmatpush1.msra.mxu0 0.0
    %496 = vmatprep.subr.mxu0 0.0
    %497 = vmatpush1.msra.mxu0 %v389
    %498 = vmatprep.subr.mxu0 0.0
    %499 = vmatpush1.msra.mxu0 %v386
    %500 = vmatprep.subr.mxu0 0.0
    %501 = vmatpush1.msra.mxu0 %v383
    %502 = vmatprep.subr.mxu0 0.0
    %503 = vmatpush1.msra.mxu0 %v380
    %504 = vmatprep.subr.mxu0 0.0
    %505 = vmatpush2.msra.mxu0 0.0
    %506 = vmatprep.subr.mxu0 0.0
    %507 = vmatpush2.msra.mxu0 0.0
    %508 = vmatprep.subr.mxu0 0.0
    %509 = vmatpush2.msra.mxu0 0.0
    %510 = vmatprep.subr.mxu0 0.0
    %511 = vmatpush2.msra.mxu0 0.0
    %512 = vmatprep.subr.mxu0 0.0
    %513 = vmatpush2.msra.mxu0 0.0
    %514 = vmatprep.subr.mxu0 0.0
    %515 = vmatpush2.msra.mxu0 0.0
    %516 = vmatprep.subr.mxu0 0.0
    %517 = vmatpush2.msra.mxu0 0.0
    %518 = vmatprep.subr.mxu0 0.0
    %519 = vmatpush2.msra.mxu0 0.0
    %520 = vmatprep.subr.mxu0 0.0
    %521 = vmatpush2.msra.mxu0 0.0
    %522 = vmatprep.subr.mxu0 0.0
    %523 = vmatpush2.msra.mxu0 0.0
    %524 = vmatprep.subr.mxu0 0.0
    %525 = vmatpush2.msra.mxu0 0.0
    %526 = vmatprep.subr.mxu0 0.0
    %527 = vmatpush2.msra.mxu0 0.0
    %528 = vmatprep.subr.mxu0 0.0
    %529 = vmatpush2.msra.mxu0 0.0
    %530 = vmatprep.subr.mxu0 0.0
    %531 = vmatpush2.msra.mxu0 0.0
    %532 = vmatprep.subr.mxu0 0.0
    %533 = vmatpush2.msra.mxu0 0.0
    %534 = vmatprep.subr.mxu0 0.0
    %535 = vmatpush2.msra.mxu0 0.0
    %536 = vmatprep.mubr.f32.mxu0 0.0
    %537 = vmatmul.mubr.f32.gmra.mxu0 %v399
    %v538 = vpop.f32.mrf.mxu0
    %v539 = vadd.f32 0.0, %v538
    %v540 = vpop.f32.mrf.mxu0
    %541 = vdwg.mxu0
    %v542 = vld [vmem:[#allocation2] sm:$0xff]
    %v543 = vld [vmem:[#allocation2 + $0x8] sm:$0xff]
    %v544 = vld [vmem:[#allocation2 + $0x10] sm:$0xff]
    %v545 = vadd.f32 %v542, %v468
    %v546 = vxor.u32 %v545, 2147483648
    %v547 = vmul.f32 %v546, 1.442695
    %v548 = vpow.pop %v547
    %v549 = vadd.f32 %v548, 1.0
    %v550 = vrcp.pop %v549
    %v551 = vmul.f32 1.0, %v550
    %v552 = vadd.f32 %v543, %v470
    %v553 = vxor.u32 %v552, 2147483648
    %v554 = vmul.f32 %v553, 1.442695
    %v555 = vpow.pop %v554
    %v556 = vadd.f32 %v555, 1.0
    %v557 = vrcp.pop %v556
    %v558 = vmul.f32 1.0, %v557
    %v559 = vadd.f32 %v539, %v395
    %v560 = vmul.f32 %v551, %v559
    %v561 = vadd.f32 %v544, %v560
    %v562 = vtanh.pop %v561
    %v563 = vsub.f32 1.0, %v558
    %v564 = vmul.f32 %v563, %v562
    %v565 = vmul.f32 %v558, 0.0
    %v566 = vadd.f32 %v564, %v565
    %567 = vst.msk [vmem:[#allocation3] sm:$0xff] %vm397, %v566
    %v569 = vsel %vm397, %v566, 0
    %571 = vmatprep.subr.mxu0 0.0
    %572 = vmatpush1.msra.mxu0 0.0
    %573 = vmatprep.subr.mxu0 0.0
    %574 = vmatpush1.msra.mxu0 0.0
    %575 = vmatprep.subr.mxu0 0.0
    %576 = vmatpush1.msra.mxu0 0.0
    %577 = vmatprep.subr.mxu0 0.0
    %578 = vmatpush1.msra.mxu0 0.0
    %579 = vmatprep.subr.mxu0 0.0
    %580 = vmatpush1.msra.mxu0 0.0
    %581 = vmatprep.subr.mxu0 0.0
    %582 = vmatpush1.msra.mxu0 0.0
    %583 = vmatprep.subr.mxu0 0.0
    %584 = vmatpush1.msra.mxu0 0.0
    %585 = vmatprep.subr.mxu0 0.0
    %586 = vmatpush1.msra.mxu0 0.0
    %587 = vmatprep.subr.mxu0 0.0
    %588 = vmatpush1.msra.mxu0 0.0
    %589 = vmatprep.subr.mxu0 0.0
    %590 = vmatpush1.msra.mxu0 0.0
    %591 = vmatprep.subr.mxu0 0.0
    %592 = vmatpush1.msra.mxu0 0.0
    %593 = vmatprep.subr.mxu0 0.0
    %594 = vmatpush1.msra.mxu0 0.0
    %595 = vmatprep.subr.mxu0 %v388
    %596 = vmatpush1.msra.mxu0 %v387
    %597 = vmatprep.subr.mxu0 %v385
    %598 = vmatpush1.msra.mxu0 %v384
    %599 = vmatprep.subr.mxu0 %v382
    %600 = vmatpush1.msra.mxu0 %v381
    %601 = vmatprep.subr.mxu0 %v379
    %602 = vmatpush1.msra.mxu0 %v378
    %603 = vmatprep.subr.mxu0 0.0
    %604 = vmatpush2.msra.mxu0 0.0
    %605 = vmatprep.subr.mxu0 0.0
    %606 = vmatpush2.msra.mxu0 0.0
    %607 = vmatprep.subr.mxu0 0.0
    %608 = vmatpush2.msra.mxu0 0.0
    %609 = vmatprep.subr.mxu0 0.0
    %610 = vmatpush2.msra.mxu0 0.0
    %611 = vmatprep.subr.mxu0 0.0
    %612 = vmatpush2.msra.mxu0 0.0
    %613 = vmatprep.subr.mxu0 0.0
    %614 = vmatpush2.msra.mxu0 0.0
    %615 = vmatprep.subr.mxu0 0.0
    %616 = vmatpush2.msra.mxu0 0.0
    %617 = vmatprep.subr.mxu0 0.0
    %618 = vmatpush2.msra.mxu0 0.0
    %619 = vmatprep.subr.mxu0 0.0
    %620 = vmatpush2.msra.mxu0 0.0
    %621 = vmatprep.subr.mxu0 0.0
    %622 = vmatpush2.msra.mxu0 0.0
    %623 = vmatprep.subr.mxu0 0.0
    %624 = vmatpush2.msra.mxu0 0.0
    %625 = vmatprep.subr.mxu0 0.0
    %626 = vmatpush2.msra.mxu0 0.0
    %627 = vmatprep.subr.mxu0 0.0
    %628 = vmatpush2.msra.mxu0 0.0
    %629 = vmatprep.subr.mxu0 0.0
    %630 = vmatpush2.msra.mxu0 0.0
    %631 = vmatprep.subr.mxu0 0.0
    %632 = vmatpush2.msra.mxu0 0.0
    %633 = vmatprep.subr.mxu0 0.0
    %634 = vmatpush2.msra.mxu0 0.0
    %635 = vmatprep.mubr.f32.mxu0 0.0
    %636 = vmatmul.mubr.f32.gmra.mxu0 %v569
    %v637 = vpop.f32.mrf.mxu0
    %v638 = vadd.f32 0.0, %v637
    %v639 = vpop.f32.mrf.mxu0
    %v640 = vadd.f32 0.0, %v639
    %641 = vdwg.mxu0
    %642 = vmatprep.subr.mxu0 0.0
    %643 = vmatpush1.msra.mxu0 0.0
    %644 = vmatprep.subr.mxu0 0.0
    %645 = vmatpush1.msra.mxu0 0.0
    %646 = vmatprep.subr.mxu0 0.0
    %647 = vmatpush1.msra.mxu0 0.0
    %648 = vmatprep.subr.mxu0 0.0
    %649 = vmatpush1.msra.mxu0 0.0
    %650 = vmatprep.subr.mxu0 0.0
    %651 = vmatpush1.msra.mxu0 0.0
    %652 = vmatprep.subr.mxu0 0.0
    %653 = vmatpush1.msra.mxu0 0.0
    %654 = vmatprep.subr.mxu0 0.0
    %655 = vmatpush1.msra.mxu0 0.0
    %656 = vmatprep.subr.mxu0 0.0
    %657 = vmatpush1.msra.mxu0 0.0
    %658 = vmatprep.subr.mxu0 0.0
    %659 = vmatpush1.msra.mxu0 0.0
    %660 = vmatprep.subr.mxu0 0.0
    %661 = vmatpush1.msra.mxu0 0.0
    %662 = vmatprep.subr.mxu0 0.0
    %663 = vmatpush1.msra.mxu0 0.0
    %664 = vmatprep.subr.mxu0 0.0
    %665 = vmatpush1.msra.mxu0 0.0
    %666 = vmatprep.subr.mxu0 0.0
    %667 = vmatpush1.msra.mxu0 %v389
    %668 = vmatprep.subr.mxu0 0.0
    %669 = vmatpush1.msra.mxu0 %v386
    %670 = vmatprep.subr.mxu0 0.0
    %671 = vmatpush1.msra.mxu0 %v383
    %672 = vmatprep.subr.mxu0 0.0
    %673 = vmatpush1.msra.mxu0 %v380
    %674 = vmatprep.subr.mxu0 0.0
    %675 = vmatpush2.msra.mxu0 0.0
    %676 = vmatprep.subr.mxu0 0.0
    %677 = vmatpush2.msra.mxu0 0.0
    %678 = vmatprep.subr.mxu0 0.0
    %679 = vmatpush2.msra.mxu0 0.0
    %680 = vmatprep.subr.mxu0 0.0
    %681 = vmatpush2.msra.mxu0 0.0
    %682 = vmatprep.subr.mxu0 0.0
    %683 = vmatpush2.msra.mxu0 0.0
    %684 = vmatprep.subr.mxu0 0.0
    %685 = vmatpush2.msra.mxu0 0.0
    %686 = vmatprep.subr.mxu0 0.0
    %687 = vmatpush2.msra.mxu0 0.0
    %688 = vmatprep.subr.mxu0 0.0
    %689 = vmatpush2.msra.mxu0 0.0
    %690 = vmatprep.subr.mxu0 0.0
    %691 = vmatpush2.msra.mxu0 0.0
    %692 = vmatprep.subr.mxu0 0.0
    %693 = vmatpush2.msra.mxu0 0.0
    %694 = vmatprep.subr.mxu0 0.0
    %695 = vmatpush2.msra.mxu0 0.0
    %696 = vmatprep.subr.mxu0 0.0
    %697 = vmatpush2.msra.mxu0 0.0
    %698 = vmatprep.subr.mxu0 0.0
    %699 = vmatpush2.msra.mxu0 0.0
    %700 = vmatprep.subr.mxu0 0.0
    %701 = vmatpush2.msra.mxu0 0.0
    %702 = vmatprep.subr.mxu0 0.0
    %703 = vmatpush2.msra.mxu0 0.0
    %704 = vmatprep.subr.mxu0 0.0
    %705 = vmatpush2.msra.mxu0 0.0
    %706 = vmatprep.mubr.f32.mxu0 0.0
    %707 = vmatmul.mubr.f32.gmra.mxu0 %v569
    %v708 = vpop.f32.mrf.mxu0
    %v709 = vadd.f32 0.0, %v708
    %v710 = vpop.f32.mrf.mxu0
    %711 = vdwg.mxu0
    %v712 = vld [vmem:[#allocation2 + $0x18] sm:$0xff]
    %v713 = vld [vmem:[#allocation2 + $0x20] sm:$0xff]
    %v714 = vld [vmem:[#allocation2 + $0x28] sm:$0xff]
    %v715 = vadd.f32 %v712, %v638
    %v716 = vxor.u32 %v715, 2147483648
    %v717 = vmul.f32 %v716, 1.442695
    %v718 = vpow.pop %v717
    %v719 = vadd.f32 %v718, 1.0
    %v720 = vrcp.pop %v719
    %v721 = vmul.f32 1.0, %v720
    %v722 = vadd.f32 %v713, %v640
    %v723 = vxor.u32 %v722, 2147483648
    %v724 = vmul.f32 %v723, 1.442695
    %v725 = vpow.pop %v724
    %v726 = vadd.f32 %v725, 1.0
    %v727 = vrcp.pop %v726
    %v728 = vmul.f32 1.0, %v727
    %v729 = vadd.f32 %v709, %v395
    %v730 = vmul.f32 %v721, %v729
    %v731 = vadd.f32 %v714, %v730
    %v732 = vtanh.pop %v731
    %v733 = vsub.f32 1.0, %v728
    %v734 = vmul.f32 %v733, %v732
    %v735 = vmul.f32 %v728, %v566
    %v736 = vadd.f32 %v734, %v735
    %737 = vst.msk [vmem:[#allocation3 + $0x8] sm:$0xff] %vm397, %v736
    %v739 = vsel %vm397, %v736, 0
    %741 = vmatprep.subr.mxu0 0.0
    %742 = vmatpush1.msra.mxu0 0.0
    %743 = vmatprep.subr.mxu0 0.0
    %744 = vmatpush1.msra.mxu0 0.0
    %745 = vmatprep.subr.mxu0 0.0
    %746 = vmatpush1.msra.mxu0 0.0
    %747 = vmatprep.subr.mxu0 0.0
    %748 = vmatpush1.msra.mxu0 0.0
    %749 = vmatprep.subr.mxu0 0.0
    %750 = vmatpush1.msra.mxu0 0.0
    %751 = vmatprep.subr.mxu0 0.0
    %752 = vmatpush1.msra.mxu0 0.0
    %753 = vmatprep.subr.mxu0 0.0
    %754 = vmatpush1.msra.mxu0 0.0
    %755 = vmatprep.subr.mxu0 0.0
    %756 = vmatpush1.msra.mxu0 0.0
    %757 = vmatprep.subr.mxu0 0.0
    %758 = vmatpush1.msra.mxu0 0.0
    %759 = vmatprep.subr.mxu0 0.0
    %760 = vmatpush1.msra.mxu0 0.0
    %761 = vmatprep.subr.mxu0 0.0
    %762 = vmatpush1.msra.mxu0 0.0
    %763 = vmatprep.subr.mxu0 0.0
    %764 = vmatpush1.msra.mxu0 0.0
    %765 = vmatprep.subr.mxu0 %v388
    %766 = vmatpush1.msra.mxu0 %v387
    %767 = vmatprep.subr.mxu0 %v385
    %768 = vmatpush1.msra.mxu0 %v384
    %769 = vmatprep.subr.mxu0 %v382
    %770 = vmatpush1.msra.mxu0 %v381
    %771 = vmatprep.subr.mxu0 %v379
    %772 = vmatpush1.msra.mxu0 %v378
    %773 = vmatprep.subr.mxu0 0.0
    %774 = vmatpush2.msra.mxu0 0.0
    %775 = vmatprep.subr.mxu0 0.0
    %776 = vmatpush2.msra.mxu0 0.0
    %777 = vmatprep.subr.mxu0 0.0
    %778 = vmatpush2.msra.mxu0 0.0
    %779 = vmatprep.subr.mxu0 0.0
    %780 = vmatpush2.msra.mxu0 0.0
    %781 = vmatprep.subr.mxu0 0.0
    %782 = vmatpush2.msra.mxu0 0.0
    %783 = vmatprep.subr.mxu0 0.0
    %784 = vmatpush2.msra.mxu0 0.0
    %785 = vmatprep.subr.mxu0 0.0
    %786 = vmatpush2.msra.mxu0 0.0
    %787 = vmatprep.subr.mxu0 0.0
    %788 = vmatpush2.msra.mxu0 0.0
    %789 = vmatprep.subr.mxu0 0.0
    %790 = vmatpush2.msra.mxu0 0.0
    %791 = vmatprep.subr.mxu0 0.0
    %792 = vmatpush2.msra.mxu0 0.0
    %793 = vmatprep.subr.mxu0 0.0
    %794 = vmatpush2.msra.mxu0 0.0
    %795 = vmatprep.subr.mxu0 0.0
    %796 = vmatpush2.msra.mxu0 0.0
    %797 = vmatprep.subr.mxu0 0.0
    %798 = vmatpush2.msra.mxu0 0.0
    %799 = vmatprep.subr.mxu0 0.0
    %800 = vmatpush2.msra.mxu0 0.0
    %801 = vmatprep.subr.mxu0 0.0
    %802 = vmatpush2.msra.mxu0 0.0
    %803 = vmatprep.subr.mxu0 0.0
    %804 = vmatpush2.msra.mxu0 0.0
    %805 = vmatprep.mubr.f32.mxu0 0.0
    %806 = vmatmul.mubr.f32.gmra.mxu0 %v739
    %v807 = vpop.f32.mrf.mxu0
    %v808 = vadd.f32 0.0, %v807
    %v809 = vpop.f32.mrf.mxu0
    %v810 = vadd.f32 0.0, %v809
    %811 = vdwg.mxu0
    %812 = vmatprep.subr.mxu0 0.0
    %813 = vmatpush1.msra.mxu0 0.0
    %814 = vmatprep.subr.mxu0 0.0
    %815 = vmatpush1.msra.mxu0 0.0
    %816 = vmatprep.subr.mxu0 0.0
    %817 = vmatpush1.msra.mxu0 0.0
    %818 = vmatprep.subr.mxu0 0.0
    %819 = vmatpush1.msra.mxu0 0.0
    %820 = vmatprep.subr.mxu0 0.0
    %821 = vmatpush1.msra.mxu0 0.0
    %822 = vmatprep.subr.mxu0 0.0
    %823 = vmatpush1.msra.mxu0 0.0
    %824 = vmatprep.subr.mxu0 0.0
    %825 = vmatpush1.msra.mxu0 0.0
    %826 = vmatprep.subr.mxu0 0.0
    %827 = vmatpush1.msra.mxu0 0.0
    %828 = vmatprep.subr.mxu0 0.0
    %829 = vmatpush1.msra.mxu0 0.0
    %830 = vmatprep.subr.mxu0 0.0
    %831 = vmatpush1.msra.mxu0 0.0
    %832 = vmatprep.subr.mxu0 0.0
    %833 = vmatpush1.msra.mxu0 0.0
    %834 = vmatprep.subr.mxu0 0.0
    %835 = vmatpush1.msra.mxu0 0.0
    %836 = vmatprep.subr.mxu0 0.0
    %837 = vmatpush1.msra.mxu0 %v389
    %838 = vmatprep.subr.mxu0 0.0
    %839 = vmatpush1.msra.mxu0 %v386
    %840 = vmatprep.subr.mxu0 0.0
    %841 = vmatpush1.msra.mxu0 %v383
    %842 = vmatprep.subr.mxu0 0.0
    %843 = vmatpush1.msra.mxu0 %v380
    %844 = vmatprep.subr.mxu0 0.0
    %845 = vmatpush2.msra.mxu0 0.0
    %846 = vmatprep.subr.mxu0 0.0
    %847 = vmatpush2.msra.mxu0 0.0
    %848 = vmatprep.subr.mxu0 0.0
    %849 = vmatpush2.msra.mxu0 0.0
    %850 = vmatprep.subr.mxu0 0.0
    %851 = vmatpush2.msra.mxu0 0.0
    %852 = vmatprep.subr.mxu0 0.0
    %853 = vmatpush2.msra.mxu0 0.0
    %854 = vmatprep.subr.mxu0 0.0
    %855 = vmatpush2.msra.mxu0 0.0
    %856 = vmatprep.subr.mxu0 0.0
    %857 = vmatpush2.msra.mxu0 0.0
    %858 = vmatprep.subr.mxu0 0.0
    %859 = vmatpush2.msra.mxu0 0.0
    %860 = vmatprep.subr.mxu0 0.0
    %861 = vmatpush2.msra.mxu0 0.0
    %862 = vmatprep.subr.mxu0 0.0
    %863 = vmatpush2.msra.mxu0 0.0
    %864 = vmatprep.subr.mxu0 0.0
    %865 = vmatpush2.msra.mxu0 0.0
    %866 = vmatprep.subr.mxu0 0.0
    %867 = vmatpush2.msra.mxu0 0.0
    %868 = vmatprep.subr.mxu0 0.0
    %869 = vmatpush2.msra.mxu0 0.0
    %870 = vmatprep.subr.mxu0 0.0
    %871 = vmatpush2.msra.mxu0 0.0
    %872 = vmatprep.subr.mxu0 0.0
    %873 = vmatpush2.msra.mxu0 0.0
    %874 = vmatprep.subr.mxu0 0.0
    %875 = vmatpush2.msra.mxu0 0.0
    %876 = vmatprep.mubr.f32.mxu0 0.0
    %877 = vmatmul.mubr.f32.gmra.mxu0 %v739
    %v878 = vpop.f32.mrf.mxu0
    %v879 = vadd.f32 0.0, %v878
    %v880 = vpop.f32.mrf.mxu0
    %881 = vdwg.mxu0
    %v882 = vld [vmem:[#allocation2 + $0x30] sm:$0xff]
    %v883 = vld [vmem:[#allocation2 + $0x38] sm:$0xff]
    %v884 = vld [vmem:[#allocation2 + $0x40] sm:$0xff]
    %v885 = vadd.f32 %v882, %v808
    %v886 = vxor.u32 %v885, 2147483648
    %v887 = vmul.f32 %v886, 1.442695
    %v888 = vpow.pop %v887
    %v889 = vadd.f32 %v888, 1.0
    %v890 = vrcp.pop %v889
    %v891 = vmul.f32 1.0, %v890
    %v892 = vadd.f32 %v883, %v810
    %v893 = vxor.u32 %v892, 2147483648
    %v894 = vmul.f32 %v893, 1.442695
    %v895 = vpow.pop %v894
    %v896 = vadd.f32 %v895, 1.0
    %v897 = vrcp.pop %v896
    %v898 = vmul.f32 1.0, %v897
    %v899 = vadd.f32 %v879, %v395
    %v900 = vmul.f32 %v891, %v899
    %v901 = vadd.f32 %v884, %v900
    %v902 = vtanh.pop %v901
    %v903 = vsub.f32 1.0, %v898
    %v904 = vmul.f32 %v903, %v902
    %v905 = vmul.f32 %v898, %v736
    %v906 = vadd.f32 %v904, %v905
    %907 = vst.msk [vmem:[#allocation3 + $0x10] sm:$0xff] %vm397, %v906
    %v909 = vsel %vm397, %v906, 0
    %911 = vmatprep.subr.mxu0 0.0
    %912 = vmatpush1.msra.mxu0 0.0
    %913 = vmatprep.subr.mxu0 0.0
    %914 = vmatpush1.msra.mxu0 0.0
    %915 = vmatprep.subr.mxu0 0.0
    %916 = vmatpush1.msra.mxu0 0.0
    %917 = vmatprep.subr.mxu0 0.0
    %918 = vmatpush1.msra.mxu0 0.0
    %919 = vmatprep.subr.mxu0 0.0
    %920 = vmatpush1.msra.mxu0 0.0
    %921 = vmatprep.subr.mxu0 0.0
    %922 = vmatpush1.msra.mxu0 0.0
    %923 = vmatprep.subr.mxu0 0.0
    %924 = vmatpush1.msra.mxu0 0.0
    %925 = vmatprep.subr.mxu0 0.0
    %926 = vmatpush1.msra.mxu0 0.0
    %927 = vmatprep.subr.mxu0 0.0
    %928 = vmatpush1.msra.mxu0 0.0
    %929 = vmatprep.subr.mxu0 0.0
    %930 = vmatpush1.msra.mxu0 0.0
    %931 = vmatprep.subr.mxu0 0.0
    %932 = vmatpush1.msra.mxu0 0.0
    %933 = vmatprep.subr.mxu0 0.0
    %934 = vmatpush1.msra.mxu0 0.0
    %935 = vmatprep.subr.mxu0 %v388
    %936 = vmatpush1.msra.mxu0 %v387
    %937 = vmatprep.subr.mxu0 %v385
    %938 = vmatpush1.msra.mxu0 %v384
    %939 = vmatprep.subr.mxu0 %v382
    %940 = vmatpush1.msra.mxu0 %v381
    %941 = vmatprep.subr.mxu0 %v379
    %942 = vmatpush1.msra.mxu0 %v378
    %943 = vmatprep.subr.mxu0 0.0
    %944 = vmatpush2.msra.mxu0 0.0
    %945 = vmatprep.subr.mxu0 0.0
    %946 = vmatpush2.msra.mxu0 0.0
    %947 = vmatprep.subr.mxu0 0.0
    %948 = vmatpush2.msra.mxu0 0.0
    %949 = vmatprep.subr.mxu0 0.0
    %950 = vmatpush2.msra.mxu0 0.0
    %951 = vmatprep.subr.mxu0 0.0
    %952 = vmatpush2.msra.mxu0 0.0
    %953 = vmatprep.subr.mxu0 0.0
    %954 = vmatpush2.msra.mxu0 0.0
    %955 = vmatprep.subr.mxu0 0.0
    %956 = vmatpush2.msra.mxu0 0.0
    %957 = vmatprep.subr.mxu0 0.0
    %958 = vmatpush2.msra.mxu0 0.0
    %959 = vmatprep.subr.mxu0 0.0
    %960 = vmatpush2.msra.mxu0 0.0
    %961 = vmatprep.subr.mxu0 0.0
    %962 = vmatpush2.msra.mxu0 0.0
    %963 = vmatprep.subr.mxu0 0.0
    %964 = vmatpush2.msra.mxu0 0.0
    %965 = vmatprep.subr.mxu0 0.0
    %966 = vmatpush2.msra.mxu0 0.0
    %967 = vmatprep.subr.mxu0 0.0
    %968 = vmatpush2.msra.mxu0 0.0
    %969 = vmatprep.subr.mxu0 0.0
    %970 = vmatpush2.msra.mxu0 0.0
    %971 = vmatprep.subr.mxu0 0.0
    %972 = vmatpush2.msra.mxu0 0.0
    %973 = vmatprep.subr.mxu0 0.0
    %974 = vmatpush2.msra.mxu0 0.0
    %975 = vmatprep.mubr.f32.mxu0 0.0
    %976 = vmatmul.mubr.f32.gmra.mxu0 %v909
    %v977 = vpop.f32.mrf.mxu0
    %v978 = vadd.f32 0.0, %v977
    %v979 = vpop.f32.mrf.mxu0
    %v980 = vadd.f32 0.0, %v979
    %981 = vdwg.mxu0
    %982 = vmatprep.subr.mxu0 0.0
    %983 = vmatpush1.msra.mxu0 0.0
    %984 = vmatprep.subr.mxu0 0.0
    %985 = vmatpush1.msra.mxu0 0.0
    %986 = vmatprep.subr.mxu0 0.0
    %987 = vmatpush1.msra.mxu0 0.0
    %988 = vmatprep.subr.mxu0 0.0
    %989 = vmatpush1.msra.mxu0 0.0
    %990 = vmatprep.subr.mxu0 0.0
    %991 = vmatpush1.msra.mxu0 0.0
    %992 = vmatprep.subr.mxu0 0.0
    %993 = vmatpush1.msra.mxu0 0.0
    %994 = vmatprep.subr.mxu0 0.0
    %995 = vmatpush1.msra.mxu0 0.0
    %996 = vmatprep.subr.mxu0 0.0
    %997 = vmatpush1.msra.mxu0 0.0
    %998 = vmatprep.subr.mxu0 0.0
    %999 = vmatpush1.msra.mxu0 0.0
    %1000 = vmatprep.subr.mxu0 0.0
    %1001 = vmatpush1.msra.mxu0 0.0
    %1002 = vmatprep.subr.mxu0 0.0
    %1003 = vmatpush1.msra.mxu0 0.0
    %1004 = vmatprep.subr.mxu0 0.0
    %1005 = vmatpush1.msra.mxu0 0.0
    %1006 = vmatprep.subr.mxu0 0.0
    %1007 = vmatpush1.msra.mxu0 %v389
    %1008 = vmatprep.subr.mxu0 0.0
    %1009 = vmatpush1.msra.mxu0 %v386
    %1010 = vmatprep.subr.mxu0 0.0
    %1011 = vmatpush1.msra.mxu0 %v383
    %1012 = vmatprep.subr.mxu0 0.0
    %1013 = vmatpush1.msra.mxu0 %v380
    %1014 = vmatprep.subr.mxu0 0.0
    %1015 = vmatpush2.msra.mxu0 0.0
    %1016 = vmatprep.subr.mxu0 0.0
    %1017 = vmatpush2.msra.mxu0 0.0
    %1018 = vmatprep.subr.mxu0 0.0
    %1019 = vmatpush2.msra.mxu0 0.0
    %1020 = vmatprep.subr.mxu0 0.0
    %1021 = vmatpush2.msra.mxu0 0.0
    %1022 = vmatprep.subr.mxu0 0.0
    %1023 = vmatpush2.msra.mxu0 0.0
    %1024 = vmatprep.subr.mxu0 0.0
    %1025 = vmatpush2.msra.mxu0 0.0
    %1026 = vmatprep.subr.mxu0 0.0
    %1027 = vmatpush2.msra.mxu0 0.0
    %1028 = vmatprep.subr.mxu0 0.0
    %1029 = vmatpush2.msra.mxu0 0.0
    %1030 = vmatprep.subr.mxu0 0.0
    %1031 = vmatpush2.msra.mxu0 0.0
    %1032 = vmatprep.subr.mxu0 0.0
    %1033 = vmatpush2.msra.mxu0 0.0
    %1034 = vmatprep.subr.mxu0 0.0
    %1035 = vmatpush2.msra.mxu0 0.0
    %1036 = vmatprep.subr.mxu0 0.0
    %1037 = vmatpush2.msra.mxu0 0.0
    %1038 = vmatprep.subr.mxu0 0.0
    %1039 = vmatpush2.msra.mxu0 0.0
    %1040 = vmatprep.subr.mxu0 0.0
    %1041 = vmatpush2.msra.mxu0 0.0
    %1042 = vmatprep.subr.mxu0 0.0
    %1043 = vmatpush2.msra.mxu0 0.0
    %1044 = vmatprep.subr.mxu0 0.0
    %1045 = vmatpush2.msra.mxu0 0.0
    %1046 = vmatprep.mubr.f32.mxu0 0.0
    %1047 = vmatmul.mubr.f32.gmra.mxu0 %v909
    %v1048 = vpop.f32.mrf.mxu0
    %v1049 = vadd.f32 0.0, %v1048
    %v1050 = vpop.f32.mrf.mxu0
    %1051 = vdwg.mxu0
    %v1052 = vld [vmem:[#allocation2 + $0x48] sm:$0xff]
    %v1053 = vld [vmem:[#allocation2 + $0x50] sm:$0xff]
    %v1054 = vld [vmem:[#allocation2 + $0x58] sm:$0xff]
    %v1055 = vadd.f32 %v1052, %v978
    %v1056 = vxor.u32 %v1055, 2147483648
    %v1057 = vmul.f32 %v1056, 1.442695
    %v1058 = vpow.pop %v1057
    %v1059 = vadd.f32 %v1058, 1.0
    %v1060 = vrcp.pop %v1059
    %v1061 = vmul.f32 1.0, %v1060
    %v1062 = vadd.f32 %v1053, %v980
    %v1063 = vxor.u32 %v1062, 2147483648
    %v1064 = vmul.f32 %v1063, 1.442695
    %v1065 = vpow.pop %v1064
    %v1066 = vadd.f32 %v1065, 1.0
    %v1067 = vrcp.pop %v1066
    %v1068 = vmul.f32 1.0, %v1067
    %v1069 = vadd.f32 %v1049, %v395
    %v1070 = vmul.f32 %v1061, %v1069
    %v1071 = vadd.f32 %v1054, %v1070
    %v1072 = vtanh.pop %v1071
    %v1073 = vsub.f32 1.0, %v1068
    %v1074 = vmul.f32 %v1073, %v1072
    %v1075 = vmul.f32 %v1068, %v906
    %v1076 = vadd.f32 %v1074, %v1075
    %1077 = vst.msk [vmem:[#allocation3 + $0x18] sm:$0xff] %vm397, %v1076
    %v1079 = vsel %vm397, %v1076, 0
    %1081 = vmatprep.subr.mxu0 0.0
    %1082 = vmatpush1.msra.mxu0 0.0
    %1083 = vmatprep.subr.mxu0 0.0
    %1084 = vmatpush1.msra.mxu0 0.0
    %1085 = vmatprep.subr.mxu0 0.0
    %1086 = vmatpush1.msra.mxu0 0.0
    %1087 = vmatprep.subr.mxu0 0.0
    %1088 = vmatpush1.msra.mxu0 0.0
    %1089 = vmatprep.subr.mxu0 0.0
    %1090 = vmatpush1.msra.mxu0 0.0
    %1091 = vmatprep.subr.mxu0 0.0
    %1092 = vmatpush1.msra.mxu0 0.0
    %1093 = vmatprep.subr.mxu0 0.0
    %1094 = vmatpush1.msra.mxu0 0.0
    %1095 = vmatprep.subr.mxu0 0.0
    %1096 = vmatpush1.msra.mxu0 0.0
    %1097 = vmatprep.subr.mxu0 0.0
    %1098 = vmatpush1.msra.mxu0 0.0
    %1099 = vmatprep.subr.mxu0 0.0
    %1100 = vmatpush1.msra.mxu0 0.0
    %1101 = vmatprep.subr.mxu0 0.0
    %1102 = vmatpush1.msra.mxu0 0.0
    %1103 = vmatprep.subr.mxu0 0.0
    %1104 = vmatpush1.msra.mxu0 0.0
    %1105 = vmatprep.subr.mxu0 %v388
    %1106 = vmatpush1.msra.mxu0 %v387
    %1107 = vmatprep.subr.mxu0 %v385
    %1108 = vmatpush1.msra.mxu0 %v384
    %1109 = vmatprep.subr.mxu0 %v382
    %1110 = vmatpush1.msra.mxu0 %v381
    %1111 = vmatprep.subr.mxu0 %v379
    %1112 = vmatpush1.msra.mxu0 %v378
    %1113 = vmatprep.subr.mxu0 0.0
    %1114 = vmatpush2.msra.mxu0 0.0
    %1115 = vmatprep.subr.mxu0 0.0
    %1116 = vmatpush2.msra.mxu0 0.0
    %1117 = vmatprep.subr.mxu0 0.0
    %1118 = vmatpush2.msra.mxu0 0.0
    %1119 = vmatprep.subr.mxu0 0.0
    %1120 = vmatpush2.msra.mxu0 0.0
    %1121 = vmatprep.subr.mxu0 0.0
    %1122 = vmatpush2.msra.mxu0 0.0
    %1123 = vmatprep.subr.mxu0 0.0
    %1124 = vmatpush2.msra.mxu0 0.0
    %1125 = vmatprep.subr.mxu0 0.0
    %1126 = vmatpush2.msra.mxu0 0.0
    %1127 = vmatprep.subr.mxu0 0.0
    %1128 = vmatpush2.msra.mxu0 0.0
    %1129 = vmatprep.subr.mxu0 0.0
    %1130 = vmatpush2.msra.mxu0 0.0
    %1131 = vmatprep.subr.mxu0 0.0
    %1132 = vmatpush2.msra.mxu0 0.0
    %1133 = vmatprep.subr.mxu0 0.0
    %1134 = vmatpush2.msra.mxu0 0.0
    %1135 = vmatprep.subr.mxu0 0.0
    %1136 = vmatpush2.msra.mxu0 0.0
    %1137 = vmatprep.subr.mxu0 0.0
    %1138 = vmatpush2.msra.mxu0 0.0
    %1139 = vmatprep.subr.mxu0 0.0
    %1140 = vmatpush2.msra.mxu0 0.0
    %1141 = vmatprep.subr.mxu0 0.0
    %1142 = vmatpush2.msra.mxu0 0.0
    %1143 = vmatprep.subr.mxu0 0.0
    %1144 = vmatpush2.msra.mxu0 0.0
    %1145 = vmatprep.mubr.f32.mxu0 0.0
    %1146 = vmatmul.mubr.f32.gmra.mxu0 %v1079
    %v1147 = vpop.f32.mrf.mxu0
    %v1148 = vadd.f32 0.0, %v1147
    %v1149 = vpop.f32.mrf.mxu0
    %v1150 = vadd.f32 0.0, %v1149
    %1151 = vdwg.mxu0
    %1152 = vmatprep.subr.mxu0 0.0
    %1153 = vmatpush1.msra.mxu0 0.0
    %1154 = vmatprep.subr.mxu0 0.0
    %1155 = vmatpush1.msra.mxu0 0.0
    %1156 = vmatprep.subr.mxu0 0.0
    %1157 = vmatpush1.msra.mxu0 0.0
    %1158 = vmatprep.subr.mxu0 0.0
    %1159 = vmatpush1.msra.mxu0 0.0
    %1160 = vmatprep.subr.mxu0 0.0
    %1161 = vmatpush1.msra.mxu0 0.0
    %1162 = vmatprep.subr.mxu0 0.0
    %1163 = vmatpush1.msra.mxu0 0.0
    %1164 = vmatprep.subr.mxu0 0.0
    %1165 = vmatpush1.msra.mxu0 0.0
    %1166 = vmatprep.subr.mxu0 0.0
    %1167 = vmatpush1.msra.mxu0 0.0
    %1168 = vmatprep.subr.mxu0 0.0
    %1169 = vmatpush1.msra.mxu0 0.0
    %1170 = vmatprep.subr.mxu0 0.0
    %1171 = vmatpush1.msra.mxu0 0.0
    %1172 = vmatprep.subr.mxu0 0.0
    %1173 = vmatpush1.msra.mxu0 0.0
    %1174 = vmatprep.subr.mxu0 0.0
    %1175 = vmatpush1.msra.mxu0 0.0
    %1176 = vmatprep.subr.mxu0 0.0
    %1177 = vmatpush1.msra.mxu0 %v389
    %1178 = vmatprep.subr.mxu0 0.0
    %1179 = vmatpush1.msra.mxu0 %v386
    %1180 = vmatprep.subr.mxu0 0.0
    %1181 = vmatpush1.msra.mxu0 %v383
    %1182 = vmatprep.subr.mxu0 0.0
    %1183 = vmatpush1.msra.mxu0 %v380
    %1184 = vmatprep.subr.mxu0 0.0
    %1185 = vmatpush2.msra.mxu0 0.0
    %1186 = vmatprep.subr.mxu0 0.0
    %1187 = vmatpush2.msra.mxu0 0.0
    %1188 = vmatprep.subr.mxu0 0.0
    %1189 = vmatpush2.msra.mxu0 0.0
    %1190 = vmatprep.subr.mxu0 0.0
    %1191 = vmatpush2.msra.mxu0 0.0
    %1192 = vmatprep.subr.mxu0 0.0
    %1193 = vmatpush2.msra.mxu0 0.0
    %1194 = vmatprep.subr.mxu0 0.0
    %1195 = vmatpush2.msra.mxu0 0.0
    %1196 = vmatprep.subr.mxu0 0.0
    %1197 = vmatpush2.msra.mxu0 0.0
    %1198 = vmatprep.subr.mxu0 0.0
    %1199 = vmatpush2.msra.mxu0 0.0
    %1200 = vmatprep.subr.mxu0 0.0
    %1201 = vmatpush2.msra.mxu0 0.0
    %1202 = vmatprep.subr.mxu0 0.0
    %1203 = vmatpush2.msra.mxu0 0.0
    %1204 = vmatprep.subr.mxu0 0.0
    %1205 = vmatpush2.msra.mxu0 0.0
    %1206 = vmatprep.subr.mxu0 0.0
    %1207 = vmatpush2.msra.mxu0 0.0
    %1208 = vmatprep.subr.mxu0 0.0
    %1209 = vmatpush2.msra.mxu0 0.0
    %1210 = vmatprep.subr.mxu0 0.0
    %1211 = vmatpush2.msra.mxu0 0.0
    %1212 = vmatprep.subr.mxu0 0.0
    %1213 = vmatpush2.msra.mxu0 0.0
    %1214 = vmatprep.subr.mxu0 0.0
    %1215 = vmatpush2.msra.mxu0 0.0
    %1216 = vmatprep.mubr.f32.mxu0 0.0
    %1217 = vmatmul.mubr.f32.gmra.mxu0 %v1079
    %v1218 = vpop.f32.mrf.mxu0
    %v1219 = vadd.f32 0.0, %v1218
    %v1220 = vpop.f32.mrf.mxu0
    %1221 = vdwg.mxu0
    %v1222 = vld [vmem:[#allocation2 + $0x60] sm:$0xff]
    %v1223 = vld [vmem:[#allocation2 + $0x68] sm:$0xff]
    %v1224 = vld [vmem:[#allocation2 + $0x70] sm:$0xff]
    %v1225 = vadd.f32 %v1222, %v1148
    %v1226 = vxor.u32 %v1225, 2147483648
    %v1227 = vmul.f32 %v1226, 1.442695
    %v1228 = vpow.pop %v1227
    %v1229 = vadd.f32 %v1228, 1.0
    %v1230 = vrcp.pop %v1229
    %v1231 = vmul.f32 1.0, %v1230
    %v1232 = vadd.f32 %v1223, %v1150
    %v1233 = vxor.u32 %v1232, 2147483648
    %v1234 = vmul.f32 %v1233, 1.442695
    %v1235 = vpow.pop %v1234
    %v1236 = vadd.f32 %v1235, 1.0
    %v1237 = vrcp.pop %v1236
    %v1238 = vmul.f32 1.0, %v1237
    %v1239 = vadd.f32 %v1219, %v395
    %v1240 = vmul.f32 %v1231, %v1239
    %v1241 = vadd.f32 %v1224, %v1240
    %v1242 = vtanh.pop %v1241
    %v1243 = vsub.f32 1.0, %v1238
    %v1244 = vmul.f32 %v1243, %v1242
    %v1245 = vmul.f32 %v1238, %v1076
    %v1246 = vadd.f32 %v1244, %v1245
    %1247 = vst.msk [vmem:[#allocation3 + $0x20] sm:$0xff] %vm397, %v1246
    %v1249 = vsel %vm397, %v1246, 0
    %1251 = vmatprep.subr.mxu0 0.0
    %1252 = vmatpush1.msra.mxu0 0.0
    %1253 = vmatprep.subr.mxu0 0.0
    %1254 = vmatpush1.msra.mxu0 0.0
    %1255 = vmatprep.subr.mxu0 0.0
    %1256 = vmatpush1.msra.mxu0 0.0
    %1257 = vmatprep.subr.mxu0 0.0
    %1258 = vmatpush1.msra.mxu0 0.0
    %1259 = vmatprep.subr.mxu0 0.0
    %1260 = vmatpush1.msra.mxu0 0.0
    %1261 = vmatprep.subr.mxu0 0.0
    %1262 = vmatpush1.msra.mxu0 0.0
    %1263 = vmatprep.subr.mxu0 0.0
    %1264 = vmatpush1.msra.mxu0 0.0
    %1265 = vmatprep.subr.mxu0 0.0
    %1266 = vmatpush1.msra.mxu0 0.0
    %1267 = vmatprep.subr.mxu0 0.0
    %1268 = vmatpush1.msra.mxu0 0.0
    %1269 = vmatprep.subr.mxu0 0.0
    %1270 = vmatpush1.msra.mxu0 0.0
    %1271 = vmatprep.subr.mxu0 0.0
    %1272 = vmatpush1.msra.mxu0 0.0
    %1273 = vmatprep.subr.mxu0 0.0
    %1274 = vmatpush1.msra.mxu0 0.0
    %1275 = vmatprep.subr.mxu0 %v388
    %1276 = vmatpush1.msra.mxu0 %v387
    %1277 = vmatprep.subr.mxu0 %v385
    %1278 = vmatpush1.msra.mxu0 %v384
    %1279 = vmatprep.subr.mxu0 %v382
    %1280 = vmatpush1.msra.mxu0 %v381
    %1281 = vmatprep.subr.mxu0 %v379
    %1282 = vmatpush1.msra.mxu0 %v378
    %1283 = vmatprep.subr.mxu0 0.0
    %1284 = vmatpush2.msra.mxu0 0.0
    %1285 = vmatprep.subr.mxu0 0.0
    %1286 = vmatpush2.msra.mxu0 0.0
    %1287 = vmatprep.subr.mxu0 0.0
    %1288 = vmatpush2.msra.mxu0 0.0
    %1289 = vmatprep.subr.mxu0 0.0
    %1290 = vmatpush2.msra.mxu0 0.0
    %1291 = vmatprep.subr.mxu0 0.0
    %1292 = vmatpush2.msra.mxu0 0.0
    %1293 = vmatprep.subr.mxu0 0.0
    %1294 = vmatpush2.msra.mxu0 0.0
    %1295 = vmatprep.subr.mxu0 0.0
    %1296 = vmatpush2.msra.mxu0 0.0
    %1297 = vmatprep.subr.mxu0 0.0
    %1298 = vmatpush2.msra.mxu0 0.0
    %1299 = vmatprep.subr.mxu0 0.0
    %1300 = vmatpush2.msra.mxu0 0.0
    %1301 = vmatprep.subr.mxu0 0.0
    %1302 = vmatpush2.msra.mxu0 0.0
    %1303 = vmatprep.subr.mxu0 0.0
    %1304 = vmatpush2.msra.mxu0 0.0
    %1305 = vmatprep.subr.mxu0 0.0
    %1306 = vmatpush2.msra.mxu0 0.0
    %1307 = vmatprep.subr.mxu0 0.0
    %1308 = vmatpush2.msra.mxu0 0.0
    %1309 = vmatprep.subr.mxu0 0.0
    %1310 = vmatpush2.msra.mxu0 0.0
    %1311 = vmatprep.subr.mxu0 0.0
    %1312 = vmatpush2.msra.mxu0 0.0
    %1313 = vmatprep.subr.mxu0 0.0
    %1314 = vmatpush2.msra.mxu0 0.0
    %1315 = vmatprep.mubr.f32.mxu0 0.0
    %1316 = vmatmul.mubr.f32.gmra.mxu0 %v1249
    %v1317 = vpop.f32.mrf.mxu0
    %v1318 = vadd.f32 0.0, %v1317
    %v1319 = vpop.f32.mrf.mxu0
    %v1320 = vadd.f32 0.0, %v1319
    %1321 = vdwg.mxu0
    %1322 = vmatprep.subr.mxu0 0.0
    %1323 = vmatpush1.msra.mxu0 0.0
    %1324 = vmatprep.subr.mxu0 0.0
    %1325 = vmatpush1.msra.mxu0 0.0
    %1326 = vmatprep.subr.mxu0 0.0
    %1327 = vmatpush1.msra.mxu0 0.0
    %1328 = vmatprep.subr.mxu0 0.0
    %1329 = vmatpush1.msra.mxu0 0.0
    %1330 = vmatprep.subr.mxu0 0.0
    %1331 = vmatpush1.msra.mxu0 0.0
    %1332 = vmatprep.subr.mxu0 0.0
    %1333 = vmatpush1.msra.mxu0 0.0
    %1334 = vmatprep.subr.mxu0 0.0
    %1335 = vmatpush1.msra.mxu0 0.0
    %1336 = vmatprep.subr.mxu0 0.0
    %1337 = vmatpush1.msra.mxu0 0.0
    %1338 = vmatprep.subr.mxu0 0.0
    %1339 = vmatpush1.msra.mxu0 0.0
    %1340 = vmatprep.subr.mxu0 0.0
    %1341 = vmatpush1.msra.mxu0 0.0
    %1342 = vmatprep.subr.mxu0 0.0
    %1343 = vmatpush1.msra.mxu0 0.0
    %1344 = vmatprep.subr.mxu0 0.0
    %1345 = vmatpush1.msra.mxu0 0.0
    %1346 = vmatprep.subr.mxu0 0.0
    %1347 = vmatpush1.msra.mxu0 %v389
    %1348 = vmatprep.subr.mxu0 0.0
    %1349 = vmatpush1.msra.mxu0 %v386
    %1350 = vmatprep.subr.mxu0 0.0
    %1351 = vmatpush1.msra.mxu0 %v383
    %1352 = vmatprep.subr.mxu0 0.0
    %1353 = vmatpush1.msra.mxu0 %v380
    %1354 = vmatprep.subr.mxu0 0.0
    %1355 = vmatpush2.msra.mxu0 0.0
    %1356 = vmatprep.subr.mxu0 0.0
    %1357 = vmatpush2.msra.mxu0 0.0
    %1358 = vmatprep.subr.mxu0 0.0
    %1359 = vmatpush2.msra.mxu0 0.0
    %1360 = vmatprep.subr.mxu0 0.0
    %1361 = vmatpush2.msra.mxu0 0.0
    %1362 = vmatprep.subr.mxu0 0.0
    %1363 = vmatpush2.msra.mxu0 0.0
    %1364 = vmatprep.subr.mxu0 0.0
    %1365 = vmatpush2.msra.mxu0 0.0
    %1366 = vmatprep.subr.mxu0 0.0
    %1367 = vmatpush2.msra.mxu0 0.0
    %1368 = vmatprep.subr.mxu0 0.0
    %1369 = vmatpush2.msra.mxu0 0.0
    %1370 = vmatprep.subr.mxu0 0.0
    %1371 = vmatpush2.msra.mxu0 0.0
    %1372 = vmatprep.subr.mxu0 0.0
    %1373 = vmatpush2.msra.mxu0 0.0
    %1374 = vmatprep.subr.mxu0 0.0
    %1375 = vmatpush2.msra.mxu0 0.0
    %1376 = vmatprep.subr.mxu0 0.0
    %1377 = vmatpush2.msra.mxu0 0.0
    %1378 = vmatprep.subr.mxu0 0.0
    %1379 = vmatpush2.msra.mxu0 0.0
    %1380 = vmatprep.subr.mxu0 0.0
    %1381 = vmatpush2.msra.mxu0 0.0
    %1382 = vmatprep.subr.mxu0 0.0
    %1383 = vmatpush2.msra.mxu0 0.0
    %1384 = vmatprep.subr.mxu0 0.0
    %1385 = vmatpush2.msra.mxu0 0.0
    %1386 = vmatprep.mubr.f32.mxu0 0.0
    %1387 = vmatmul.mubr.f32.gmra.mxu0 %v1249
    %v1388 = vpop.f32.mrf.mxu0
    %v1389 = vadd.f32 0.0, %v1388
    %v1390 = vpop.f32.mrf.mxu0
    %1391 = vdwg.mxu0
    %v1392 = vld [vmem:[#allocation2 + $0x78] sm:$0xff]
    %v1393 = vld [vmem:[#allocation2 + $0x80] sm:$0xff]
    %v1394 = vld [vmem:[#allocation2 + $0x88] sm:$0xff]
    %v1395 = vadd.f32 %v1392, %v1318
    %v1396 = vxor.u32 %v1395, 2147483648
    %v1397 = vmul.f32 %v1396, 1.442695
    %v1398 = vpow.pop %v1397
    %v1399 = vadd.f32 %v1398, 1.0
    %v1400 = vrcp.pop %v1399
    %v1401 = vmul.f32 1.0, %v1400
    %v1402 = vadd.f32 %v1393, %v1320
    %v1403 = vxor.u32 %v1402, 2147483648
    %v1404 = vmul.f32 %v1403, 1.442695
    %v1405 = vpow.pop %v1404
    %v1406 = vadd.f32 %v1405, 1.0
    %v1407 = vrcp.pop %v1406
    %v1408 = vmul.f32 1.0, %v1407
    %v1409 = vadd.f32 %v1389, %v395
    %v1410 = vmul.f32 %v1401, %v1409
    %v1411 = vadd.f32 %v1394, %v1410
    %v1412 = vtanh.pop %v1411
    %v1413 = vsub.f32 1.0, %v1408
    %v1414 = vmul.f32 %v1413, %v1412
    %v1415 = vmul.f32 %v1408, %v1246
    %v1416 = vadd.f32 %v1414, %v1415
    %1417 = vst.msk [vmem:[#allocation3 + $0x28] sm:$0xff] %vm397, %v1416
    %v1419 = vsel %vm397, %v1416, 0
    %1421 = vmatprep.subr.mxu0 0.0
    %1422 = vmatpush1.msra.mxu0 0.0
    %1423 = vmatprep.subr.mxu0 0.0
    %1424 = vmatpush1.msra.mxu0 0.0
    %1425 = vmatprep.subr.mxu0 0.0
    %1426 = vmatpush1.msra.mxu0 0.0
    %1427 = vmatprep.subr.mxu0 0.0
    %1428 = vmatpush1.msra.mxu0 0.0
    %1429 = vmatprep.subr.mxu0 0.0
    %1430 = vmatpush1.msra.mxu0 0.0
    %1431 = vmatprep.subr.mxu0 0.0
    %1432 = vmatpush1.msra.mxu0 0.0
    %1433 = vmatprep.subr.mxu0 0.0
    %1434 = vmatpush1.msra.mxu0 0.0
    %1435 = vmatprep.subr.mxu0 0.0
    %1436 = vmatpush1.msra.mxu0 0.0
    %1437 = vmatprep.subr.mxu0 0.0
    %1438 = vmatpush1.msra.mxu0 0.0
    %1439 = vmatprep.subr.mxu0 0.0
    %1440 = vmatpush1.msra.mxu0 0.0
    %1441 = vmatprep.subr.mxu0 0.0
    %1442 = vmatpush1.msra.mxu0 0.0
    %1443 = vmatprep.subr.mxu0 0.0
    %1444 = vmatpush1.msra.mxu0 0.0
    %1445 = vmatprep.subr.mxu0 %v388
    %1446 = vmatpush1.msra.mxu0 %v387
    %1447 = vmatprep.subr.mxu0 %v385
    %1448 = vmatpush1.msra.mxu0 %v384
    %1449 = vmatprep.subr.mxu0 %v382
    %1450 = vmatpush1.msra.mxu0 %v381
    %1451 = vmatprep.subr.mxu0 %v379
    %1452 = vmatpush1.msra.mxu0 %v378
    %1453 = vmatprep.subr.mxu0 0.0
    %1454 = vmatpush2.msra.mxu0 0.0
    %1455 = vmatprep.subr.mxu0 0.0
    %1456 = vmatpush2.msra.mxu0 0.0
    %1457 = vmatprep.subr.mxu0 0.0
    %1458 = vmatpush2.msra.mxu0 0.0
    %1459 = vmatprep.subr.mxu0 0.0
    %1460 = vmatpush2.msra.mxu0 0.0
    %1461 = vmatprep.subr.mxu0 0.0
    %1462 = vmatpush2.msra.mxu0 0.0
    %1463 = vmatprep.subr.mxu0 0.0
    %1464 = vmatpush2.msra.mxu0 0.0
    %1465 = vmatprep.subr.mxu0 0.0
    %1466 = vmatpush2.msra.mxu0 0.0
    %1467 = vmatprep.subr.mxu0 0.0
    %1468 = vmatpush2.msra.mxu0 0.0
    %1469 = vmatprep.subr.mxu0 0.0
    %1470 = vmatpush2.msra.mxu0 0.0
    %1471 = vmatprep.subr.mxu0 0.0
    %1472 = vmatpush2.msra.mxu0 0.0
    %1473 = vmatprep.subr.mxu0 0.0
    %1474 = vmatpush2.msra.mxu0 0.0
    %1475 = vmatprep.subr.mxu0 0.0
    %1476 = vmatpush2.msra.mxu0 0.0
    %1477 = vmatprep.subr.mxu0 0.0
    %1478 = vmatpush2.msra.mxu0 0.0
    %1479 = vmatprep.subr.mxu0 0.0
    %1480 = vmatpush2.msra.mxu0 0.0
    %1481 = vmatprep.subr.mxu0 0.0
    %1482 = vmatpush2.msra.mxu0 0.0
    %1483 = vmatprep.subr.mxu0 0.0
    %1484 = vmatpush2.msra.mxu0 0.0
    %1485 = vmatprep.mubr.f32.mxu0 0.0
    %1486 = vmatmul.mubr.f32.gmra.mxu0 %v1419
    %v1487 = vpop.f32.mrf.mxu0
    %v1488 = vadd.f32 0.0, %v1487
    %v1489 = vpop.f32.mrf.mxu0
    %v1490 = vadd.f32 0.0, %v1489
    %1491 = vdwg.mxu0
    %1492 = vmatprep.subr.mxu0 0.0
    %1493 = vmatpush1.msra.mxu0 0.0
    %1494 = vmatprep.subr.mxu0 0.0
    %1495 = vmatpush1.msra.mxu0 0.0
    %1496 = vmatprep.subr.mxu0 0.0
    %1497 = vmatpush1.msra.mxu0 0.0
    %1498 = vmatprep.subr.mxu0 0.0
    %1499 = vmatpush1.msra.mxu0 0.0
    %1500 = vmatprep.subr.mxu0 0.0
    %1501 = vmatpush1.msra.mxu0 0.0
    %1502 = vmatprep.subr.mxu0 0.0
    %1503 = vmatpush1.msra.mxu0 0.0
    %1504 = vmatprep.subr.mxu0 0.0
    %1505 = vmatpush1.msra.mxu0 0.0
    %1506 = vmatprep.subr.mxu0 0.0
    %1507 = vmatpush1.msra.mxu0 0.0
    %1508 = vmatprep.subr.mxu0 0.0
    %1509 = vmatpush1.msra.mxu0 0.0
    %1510 = vmatprep.subr.mxu0 0.0
    %1511 = vmatpush1.msra.mxu0 0.0
    %1512 = vmatprep.subr.mxu0 0.0
    %1513 = vmatpush1.msra.mxu0 0.0
    %1514 = vmatprep.subr.mxu0 0.0
    %1515 = vmatpush1.msra.mxu0 0.0
    %1516 = vmatprep.subr.mxu0 0.0
    %1517 = vmatpush1.msra.mxu0 %v389
    %1518 = vmatprep.subr.mxu0 0.0
    %1519 = vmatpush1.msra.mxu0 %v386
    %1520 = vmatprep.subr.mxu0 0.0
    %1521 = vmatpush1.msra.mxu0 %v383
    %1522 = vmatprep.subr.mxu0 0.0
    %1523 = vmatpush1.msra.mxu0 %v380
    %1524 = vmatprep.subr.mxu0 0.0
    %1525 = vmatpush2.msra.mxu0 0.0
    %1526 = vmatprep.subr.mxu0 0.0
    %1527 = vmatpush2.msra.mxu0 0.0
    %1528 = vmatprep.subr.mxu0 0.0
    %1529 = vmatpush2.msra.mxu0 0.0
    %1530 = vmatprep.subr.mxu0 0.0
    %1531 = vmatpush2.msra.mxu0 0.0
    %1532 = vmatprep.subr.mxu0 0.0
    %1533 = vmatpush2.msra.mxu0 0.0
    %1534 = vmatprep.subr.mxu0 0.0
    %1535 = vmatpush2.msra.mxu0 0.0
    %1536 = vmatprep.subr.mxu0 0.0
    %1537 = vmatpush2.msra.mxu0 0.0
    %1538 = vmatprep.subr.mxu0 0.0
    %1539 = vmatpush2.msra.mxu0 0.0
    %1540 = vmatprep.subr.mxu0 0.0
    %1541 = vmatpush2.msra.mxu0 0.0
    %1542 = vmatprep.subr.mxu0 0.0
    %1543 = vmatpush2.msra.mxu0 0.0
    %1544 = vmatprep.subr.mxu0 0.0
    %1545 = vmatpush2.msra.mxu0 0.0
    %1546 = vmatprep.subr.mxu0 0.0
    %1547 = vmatpush2.msra.mxu0 0.0
    %1548 = vmatprep.subr.mxu0 0.0
    %1549 = vmatpush2.msra.mxu0 0.0
    %1550 = vmatprep.subr.mxu0 0.0
    %1551 = vmatpush2.msra.mxu0 0.0
    %1552 = vmatprep.subr.mxu0 0.0
    %1553 = vmatpush2.msra.mxu0 0.0
    %1554 = vmatprep.subr.mxu0 0.0
    %1555 = vmatpush2.msra.mxu0 0.0
    %1556 = vmatprep.mubr.f32.mxu0 0.0
    %1557 = vmatmul.mubr.f32.gmra.mxu0 %v1419
    %v1558 = vpop.f32.mrf.mxu0
    %v1559 = vadd.f32 0.0, %v1558
    %v1560 = vpop.f32.mrf.mxu0
    %1561 = vdwg.mxu0
    %v1562 = vld [vmem:[#allocation2 + $0x90] sm:$0xff]
    %v1563 = vld [vmem:[#allocation2 + $0x98] sm:$0xff]
    %v1564 = vld [vmem:[#allocation2 + $0xa0] sm:$0xff]
    %v1565 = vadd.f32 %v1562, %v1488
    %v1566 = vxor.u32 %v1565, 2147483648
    %v1567 = vmul.f32 %v1566, 1.442695
    %v1568 = vpow.pop %v1567
    %v1569 = vadd.f32 %v1568, 1.0
    %v1570 = vrcp.pop %v1569
    %v1571 = vmul.f32 1.0, %v1570
    %v1572 = vadd.f32 %v1563, %v1490
    %v1573 = vxor.u32 %v1572, 2147483648
    %v1574 = vmul.f32 %v1573, 1.442695
    %v1575 = vpow.pop %v1574
    %v1576 = vadd.f32 %v1575, 1.0
    %v1577 = vrcp.pop %v1576
    %v1578 = vmul.f32 1.0, %v1577
    %v1579 = vadd.f32 %v1559, %v395
    %v1580 = vmul.f32 %v1571, %v1579
    %v1581 = vadd.f32 %v1564, %v1580
    %v1582 = vtanh.pop %v1581
    %v1583 = vsub.f32 1.0, %v1578
    %v1584 = vmul.f32 %v1583, %v1582
    %v1585 = vmul.f32 %v1578, %v1416
    %v1586 = vadd.f32 %v1584, %v1585
    %1587 = vst.msk [vmem:[#allocation3 + $0x30] sm:$0xff] %vm397, %v1586
    %v1589 = vsel %vm397, %v1586, 0
    %1591 = vmatprep.subr.mxu0 0.0
    %1592 = vmatpush1.msra.mxu0 0.0
    %1593 = vmatprep.subr.mxu0 0.0
    %1594 = vmatpush1.msra.mxu0 0.0
    %1595 = vmatprep.subr.mxu0 0.0
    %1596 = vmatpush1.msra.mxu0 0.0
    %1597 = vmatprep.subr.mxu0 0.0
    %1598 = vmatpush1.msra.mxu0 0.0
    %1599 = vmatprep.subr.mxu0 0.0
    %1600 = vmatpush1.msra.mxu0 0.0
    %1601 = vmatprep.subr.mxu0 0.0
    %1602 = vmatpush1.msra.mxu0 0.0
    %1603 = vmatprep.subr.mxu0 0.0
    %1604 = vmatpush1.msra.mxu0 0.0
    %1605 = vmatprep.subr.mxu0 0.0
    %1606 = vmatpush1.msra.mxu0 0.0
    %1607 = vmatprep.subr.mxu0 0.0
    %1608 = vmatpush1.msra.mxu0 0.0
    %1609 = vmatprep.subr.mxu0 0.0
    %1610 = vmatpush1.msra.mxu0 0.0
    %1611 = vmatprep.subr.mxu0 0.0
    %1612 = vmatpush1.msra.mxu0 0.0
    %1613 = vmatprep.subr.mxu0 0.0
    %1614 = vmatpush1.msra.mxu0 0.0
    %1615 = vmatprep.subr.mxu0 %v388
    %1616 = vmatpush1.msra.mxu0 %v387
    %1617 = vmatprep.subr.mxu0 %v385
    %1618 = vmatpush1.msra.mxu0 %v384
    %1619 = vmatprep.subr.mxu0 %v382
    %1620 = vmatpush1.msra.mxu0 %v381
    %1621 = vmatprep.subr.mxu0 %v379
    %1622 = vmatpush1.msra.mxu0 %v378
    %1623 = vmatprep.subr.mxu0 0.0
    %1624 = vmatpush2.msra.mxu0 0.0
    %1625 = vmatprep.subr.mxu0 0.0
    %1626 = vmatpush2.msra.mxu0 0.0
    %1627 = vmatprep.subr.mxu0 0.0
    %1628 = vmatpush2.msra.mxu0 0.0
    %1629 = vmatprep.subr.mxu0 0.0
    %1630 = vmatpush2.msra.mxu0 0.0
    %1631 = vmatprep.subr.mxu0 0.0
    %1632 = vmatpush2.msra.mxu0 0.0
    %1633 = vmatprep.subr.mxu0 0.0
    %1634 = vmatpush2.msra.mxu0 0.0
    %1635 = vmatprep.subr.mxu0 0.0
    %1636 = vmatpush2.msra.mxu0 0.0
    %1637 = vmatprep.subr.mxu0 0.0
    %1638 = vmatpush2.msra.mxu0 0.0
    %1639 = vmatprep.subr.mxu0 0.0
    %1640 = vmatpush2.msra.mxu0 0.0
    %1641 = vmatprep.subr.mxu0 0.0
    %1642 = vmatpush2.msra.mxu0 0.0
    %1643 = vmatprep.subr.mxu0 0.0
    %1644 = vmatpush2.msra.mxu0 0.0
    %1645 = vmatprep.subr.mxu0 0.0
    %1646 = vmatpush2.msra.mxu0 0.0
    %1647 = vmatprep.subr.mxu0 0.0
    %1648 = vmatpush2.msra.mxu0 0.0
    %1649 = vmatprep.subr.mxu0 0.0
    %1650 = vmatpush2.msra.mxu0 0.0
    %1651 = vmatprep.subr.mxu0 0.0
    %1652 = vmatpush2.msra.mxu0 0.0
    %1653 = vmatprep.subr.mxu0 0.0
    %1654 = vmatpush2.msra.mxu0 0.0
    %1655 = vmatprep.mubr.f32.mxu0 0.0
    %1656 = vmatmul.mubr.f32.gmra.mxu0 %v1589
    %v1657 = vpop.f32.mrf.mxu0
    %v1658 = vadd.f32 0.0, %v1657
    %v1659 = vpop.f32.mrf.mxu0
    %v1660 = vadd.f32 0.0, %v1659
    %1661 = vdwg.mxu0
    %1662 = vmatprep.subr.mxu0 0.0
    %1663 = vmatpush1.msra.mxu0 0.0
    %1664 = vmatprep.subr.mxu0 0.0
    %1665 = vmatpush1.msra.mxu0 0.0
    %1666 = vmatprep.subr.mxu0 0.0
    %1667 = vmatpush1.msra.mxu0 0.0
    %1668 = vmatprep.subr.mxu0 0.0
    %1669 = vmatpush1.msra.mxu0 0.0
    %1670 = vmatprep.subr.mxu0 0.0
    %1671 = vmatpush1.msra.mxu0 0.0
    %1672 = vmatprep.subr.mxu0 0.0
    %1673 = vmatpush1.msra.mxu0 0.0
    %1674 = vmatprep.subr.mxu0 0.0
    %1675 = vmatpush1.msra.mxu0 0.0
    %1676 = vmatprep.subr.mxu0 0.0
    %1677 = vmatpush1.msra.mxu0 0.0
    %1678 = vmatprep.subr.mxu0 0.0
    %1679 = vmatpush1.msra.mxu0 0.0
    %1680 = vmatprep.subr.mxu0 0.0
    %1681 = vmatpush1.msra.mxu0 0.0
    %1682 = vmatprep.subr.mxu0 0.0
    %1683 = vmatpush1.msra.mxu0 0.0
    %1684 = vmatprep.subr.mxu0 0.0
    %1685 = vmatpush1.msra.mxu0 0.0
    %1686 = vmatprep.subr.mxu0 0.0
    %1687 = vmatpush1.msra.mxu0 %v389
    %1688 = vmatprep.subr.mxu0 0.0
    %1689 = vmatpush1.msra.mxu0 %v386
    %1690 = vmatprep.subr.mxu0 0.0
    %1691 = vmatpush1.msra.mxu0 %v383
    %1692 = vmatprep.subr.mxu0 0.0
    %1693 = vmatpush1.msra.mxu0 %v380
    %1694 = vmatprep.subr.mxu0 0.0
    %1695 = vmatpush2.msra.mxu0 0.0
    %1696 = vmatprep.subr.mxu0 0.0
    %1697 = vmatpush2.msra.mxu0 0.0
    %1698 = vmatprep.subr.mxu0 0.0
    %1699 = vmatpush2.msra.mxu0 0.0
    %1700 = vmatprep.subr.mxu0 0.0
    %1701 = vmatpush2.msra.mxu0 0.0
    %1702 = vmatprep.subr.mxu0 0.0
    %1703 = vmatpush2.msra.mxu0 0.0
    %1704 = vmatprep.subr.mxu0 0.0
    %1705 = vmatpush2.msra.mxu0 0.0
    %1706 = vmatprep.subr.mxu0 0.0
    %1707 = vmatpush2.msra.mxu0 0.0
    %1708 = vmatprep.subr.mxu0 0.0
    %1709 = vmatpush2.msra.mxu0 0.0
    %1710 = vmatprep.subr.mxu0 0.0
    %1711 = vmatpush2.msra.mxu0 0.0
    %1712 = vmatprep.subr.mxu0 0.0
    %1713 = vmatpush2.msra.mxu0 0.0
    %1714 = vmatprep.subr.mxu0 0.0
    %1715 = vmatpush2.msra.mxu0 0.0
    %1716 = vmatprep.subr.mxu0 0.0
    %1717 = vmatpush2.msra.mxu0 0.0
    %1718 = vmatprep.subr.mxu0 0.0
    %1719 = vmatpush2.msra.mxu0 0.0
    %1720 = vmatprep.subr.mxu0 0.0
    %1721 = vmatpush2.msra.mxu0 0.0
    %1722 = vmatprep.subr.mxu0 0.0
    %1723 = vmatpush2.msra.mxu0 0.0
    %1724 = vmatprep.subr.mxu0 0.0
    %1725 = vmatpush2.msra.mxu0 0.0
    %1726 = vmatprep.mubr.f32.mxu0 0.0
    %1727 = vmatmul.mubr.f32.gmra.mxu0 %v1589
    %v1728 = vpop.f32.mrf.mxu0
    %v1729 = vadd.f32 0.0, %v1728
    %v1730 = vpop.f32.mrf.mxu0
    %1731 = vdwg.mxu0
    %v1732 = vld [vmem:[#allocation2 + $0xa8] sm:$0xff]
    %v1733 = vld [vmem:[#allocation2 + $0xb0] sm:$0xff]
    %v1734 = vld [vmem:[#allocation2 + $0xb8] sm:$0xff]
    %v1735 = vadd.f32 %v1732, %v1658
    %v1736 = vxor.u32 %v1735, 2147483648
    %v1737 = vmul.f32 %v1736, 1.442695
    %v1738 = vpow.pop %v1737
    %v1739 = vadd.f32 %v1738, 1.0
    %v1740 = vrcp.pop %v1739
    %v1741 = vmul.f32 1.0, %v1740
    %v1742 = vadd.f32 %v1733, %v1660
    %v1743 = vxor.u32 %v1742, 2147483648
    %v1744 = vmul.f32 %v1743, 1.442695
    %v1745 = vpow.pop %v1744
    %v1746 = vadd.f32 %v1745, 1.0
    %v1747 = vrcp.pop %v1746
    %v1748 = vmul.f32 1.0, %v1747
    %v1749 = vadd.f32 %v1729, %v395
    %v1750 = vmul.f32 %v1741, %v1749
    %v1751 = vadd.f32 %v1734, %v1750
    %v1752 = vtanh.pop %v1751
    %v1753 = vsub.f32 1.0, %v1748
    %v1754 = vmul.f32 %v1753, %v1752
    %v1755 = vmul.f32 %v1748, %v1586
    %v1756 = vadd.f32 %v1754, %v1755
    %1757 = vst.msk [vmem:[#allocation3 + $0x38] sm:$0xff] %vm397, %v1756
    %v1758 = vld [vmem:[#allocation3] sm:$0xff]
    %v1759 = vld [vmem:[#allocation3 + $0x8] sm:$0xff]
    %v1760 = vld [vmem:[#allocation3 + $0x10] sm:$0xff]
    %v1761 = vld [vmem:[#allocation3 + $0x18] sm:$0xff]
    %v1762 = vld [vmem:[#allocation3 + $0x20] sm:$0xff]
    %v1763 = vld [vmem:[#allocation3 + $0x28] sm:$0xff]
    %v1764 = vld [vmem:[#allocation3 + $0x30] sm:$0xff]
    %v1765 = vld [vmem:[#allocation3 + $0x38] sm:$0xff]
    %v1766 = vld [vmem:[#allocation7] sm:$0xff]
    %v1767 = vld [vmem:[#allocation7 + $0x8] sm:$0xff]
    %v1768 = vld [vmem:[#allocation7 + $0x10] sm:$0xff]
    %v1769 = vld [vmem:[#allocation7 + $0x18] sm:$0xff]
    %v1770 = vld [vmem:[#allocation7 + $0x20] sm:$0xff]
    %v1771 = vld [vmem:[#allocation7 + $0x28] sm:$0xff]
    %v1772 = vld [vmem:[#allocation7 + $0x30] sm:$0xff]
    %v1773 = vld [vmem:[#allocation7 + $0x38] sm:$0xff]
    %v1774 = vld [vmem:[#allocation7 + $0x40] sm:$0xff]
    %v1775 = vld [vmem:[#allocation7 + $0x48] sm:$0xff]
    %v1776 = vld [vmem:[#allocation7 + $0x50] sm:$0xff]
    %v1777 = vld [vmem:[#allocation7 + $0x58] sm:$0xff]
    %v1778 = vld [vmem:[%s7] sm:$0x7]
    %v1780 = vlaneseq
    %v1781 = vshrl.u32 %v1780, 7
    %v1782 = vsub.s32 0, %v1781
    %v1783 = vrot.slane %v1778, %v1782
    %v1784 = vlaneseq
    %v1785 = vshrl.u32 %v1784, 7
    %v1786 = vsub.s32 1, %v1785
    %v1787 = vrot.slane %v1778, %v1786
    %v1788 = vlaneseq
    %v1789 = vshrl.u32 %v1788, 7
    %v1790 = vsub.s32 2, %v1789
    %v1791 = vrot.slane %v1778, %v1790
    %v1796 = vsel %vm397, %v1758, 0
    %v1799 = vsel %vm397, %v1759, 0
    %v1802 = vsel %vm397, %v1760, 0
    %v1805 = vsel %vm397, %v1761, 0
    %v1808 = vsel %vm397, %v1762, 0
    %v1811 = vsel %vm397, %v1763, 0
    %v1814 = vsel %vm397, %v1764, 0
    %v1817 = vsel %vm397, %v1765, 0
    %1819 = vmatprep.subr.mxu0 0.0
    %1820 = vmatpush1.msra.mxu0 0.0
    %1821 = vmatprep.subr.mxu0 0.0
    %1822 = vmatpush1.msra.mxu0 0.0
    %1823 = vmatprep.subr.mxu0 0.0
    %1824 = vmatpush1.msra.mxu0 0.0
    %1825 = vmatprep.subr.mxu0 0.0
    %1826 = vmatpush1.msra.mxu0 0.0
    %1827 = vmatprep.subr.mxu0 0.0
    %1828 = vmatpush1.msra.mxu0 0.0
    %1829 = vmatprep.subr.mxu0 0.0
    %1830 = vmatpush1.msra.mxu0 0.0
    %1831 = vmatprep.subr.mxu0 0.0
    %1832 = vmatpush1.msra.mxu0 0.0
    %1833 = vmatprep.subr.mxu0 0.0
    %1834 = vmatpush1.msra.mxu0 0.0
    %1835 = vmatprep.subr.mxu0 0.0
    %1836 = vmatpush1.msra.mxu0 0.0
    %1837 = vmatprep.subr.mxu0 0.0
    %1838 = vmatpush1.msra.mxu0 0.0
    %1839 = vmatprep.subr.mxu0 0.0
    %1840 = vmatpush1.msra.mxu0 0.0
    %1841 = vmatprep.subr.mxu0 0.0
    %1842 = vmatpush1.msra.mxu0 0.0
    %1843 = vmatprep.subr.mxu0 %v1776
    %1844 = vmatpush1.msra.mxu0 %v1775
    %1845 = vmatprep.subr.mxu0 %v1773
    %1846 = vmatpush1.msra.mxu0 %v1772
    %1847 = vmatprep.subr.mxu0 %v1770
    %1848 = vmatpush1.msra.mxu0 %v1769
    %1849 = vmatprep.subr.mxu0 %v1767
    %1850 = vmatpush1.msra.mxu0 %v1766
    %1851 = vmatprep.subr.mxu0 0.0
    %1852 = vmatpush2.msra.mxu0 0.0
    %1853 = vmatprep.subr.mxu0 0.0
    %1854 = vmatpush2.msra.mxu0 0.0
    %1855 = vmatprep.subr.mxu0 0.0
    %1856 = vmatpush2.msra.mxu0 0.0
    %1857 = vmatprep.subr.mxu0 0.0
    %1858 = vmatpush2.msra.mxu0 0.0
    %1859 = vmatprep.subr.mxu0 0.0
    %1860 = vmatpush2.msra.mxu0 0.0
    %1861 = vmatprep.subr.mxu0 0.0
    %1862 = vmatpush2.msra.mxu0 0.0
    %1863 = vmatprep.subr.mxu0 0.0
    %1864 = vmatpush2.msra.mxu0 0.0
    %1865 = vmatprep.subr.mxu0 0.0
    %1866 = vmatpush2.msra.mxu0 0.0
    %1867 = vmatprep.subr.mxu0 0.0
    %1868 = vmatpush2.msra.mxu0 0.0
    %1869 = vmatprep.subr.mxu0 0.0
    %1870 = vmatpush2.msra.mxu0 0.0
    %1871 = vmatprep.subr.mxu0 0.0
    %1872 = vmatpush2.msra.mxu0 0.0
    %1873 = vmatprep.subr.mxu0 0.0
    %1874 = vmatpush2.msra.mxu0 0.0
    %1875 = vmatprep.subr.mxu0 0.0
    %1876 = vmatpush2.msra.mxu0 0.0
    %1877 = vmatprep.subr.mxu0 0.0
    %1878 = vmatpush2.msra.mxu0 0.0
    %1879 = vmatprep.subr.mxu0 0.0
    %1880 = vmatpush2.msra.mxu0 0.0
    %1881 = vmatprep.subr.mxu0 0.0
    %1882 = vmatpush2.msra.mxu0 0.0
    %1883 = vmatprep.mubr.f32.mxu0 0.0
    %1884 = vmatmul.mubr.f32.gmra.mxu0 %v1796
    %v1885 = vpop.f32.mrf.mxu0
    %v1886 = vadd.f32 %v1783, %v1885
    %v1887 = vpop.f32.mrf.mxu0
    %v1888 = vadd.f32 %v1787, %v1887
    %1889 = vmatprep.mubr.f32.mxu0 0.0
    %1890 = vmatmul.mubr.f32.gmra.mxu0 %v1799
    %v1891 = vpop.f32.mrf.mxu0
    %v1892 = vadd.f32 %v1783, %v1891
    %v1893 = vpop.f32.mrf.mxu0
    %v1894 = vadd.f32 %v1787, %v1893
    %1895 = vmatprep.mubr.f32.mxu0 0.0
    %1896 = vmatmul.mubr.f32.gmra.mxu0 %v1802
    %v1897 = vpop.f32.mrf.mxu0
    %v1898 = vadd.f32 %v1783, %v1897
    %v1899 = vpop.f32.mrf.mxu0
    %v1900 = vadd.f32 %v1787, %v1899
    %1901 = vmatprep.mubr.f32.mxu0 0.0
    %1902 = vmatmul.mubr.f32.gmra.mxu0 %v1805
    %v1903 = vpop.f32.mrf.mxu0
    %v1904 = vadd.f32 %v1783, %v1903
    %v1905 = vpop.f32.mrf.mxu0
    %v1906 = vadd.f32 %v1787, %v1905
    %1907 = vmatprep.mubr.f32.mxu0 0.0
    %1908 = vmatmul.mubr.f32.gmra.mxu0 %v1808
    %v1909 = vpop.f32.mrf.mxu0
    %v1910 = vadd.f32 %v1783, %v1909
    %v1911 = vpop.f32.mrf.mxu0
    %v1912 = vadd.f32 %v1787, %v1911
    %1913 = vmatprep.mubr.f32.mxu0 0.0
    %1914 = vmatmul.mubr.f32.gmra.mxu0 %v1811
    %v1915 = vpop.f32.mrf.mxu0
    %v1916 = vadd.f32 %v1783, %v1915
    %v1917 = vpop.f32.mrf.mxu0
    %v1918 = vadd.f32 %v1787, %v1917
    %1919 = vmatprep.mubr.f32.mxu0 0.0
    %1920 = vmatmul.mubr.f32.gmra.mxu0 %v1814
    %v1921 = vpop.f32.mrf.mxu0
    %v1922 = vadd.f32 %v1783, %v1921
    %v1923 = vpop.f32.mrf.mxu0
    %v1924 = vadd.f32 %v1787, %v1923
    %1925 = vmatprep.mubr.f32.mxu0 0.0
    %1926 = vmatmul.mubr.f32.gmra.mxu0 %v1817
    %v1927 = vpop.f32.mrf.mxu0
    %v1928 = vadd.f32 %v1783, %v1927
    %v1929 = vpop.f32.mrf.mxu0
    %v1930 = vadd.f32 %v1787, %v1929
    %1931 = vdwg.mxu0
    %1932 = vmatprep.subr.mxu0 0.0
    %1933 = vmatpush1.msra.mxu0 0.0
    %1934 = vmatprep.subr.mxu0 0.0
    %1935 = vmatpush1.msra.mxu0 0.0
    %1936 = vmatprep.subr.mxu0 0.0
    %1937 = vmatpush1.msra.mxu0 0.0
    %1938 = vmatprep.subr.mxu0 0.0
    %1939 = vmatpush1.msra.mxu0 0.0
    %1940 = vmatprep.subr.mxu0 0.0
    %1941 = vmatpush1.msra.mxu0 0.0
    %1942 = vmatprep.subr.mxu0 0.0
    %1943 = vmatpush1.msra.mxu0 0.0
    %1944 = vmatprep.subr.mxu0 0.0
    %1945 = vmatpush1.msra.mxu0 0.0
    %1946 = vmatprep.subr.mxu0 0.0
    %1947 = vmatpush1.msra.mxu0 0.0
    %1948 = vmatprep.subr.mxu0 0.0
    %1949 = vmatpush1.msra.mxu0 0.0
    %1950 = vmatprep.subr.mxu0 0.0
    %1951 = vmatpush1.msra.mxu0 0.0
    %1952 = vmatprep.subr.mxu0 0.0
    %1953 = vmatpush1.msra.mxu0 0.0
    %1954 = vmatprep.subr.mxu0 0.0
    %1955 = vmatpush1.msra.mxu0 0.0
    %1956 = vmatprep.subr.mxu0 0.0
    %1957 = vmatpush1.msra.mxu0 %v1777
    %1958 = vmatprep.subr.mxu0 0.0
    %1959 = vmatpush1.msra.mxu0 %v1774
    %1960 = vmatprep.subr.mxu0 0.0
    %1961 = vmatpush1.msra.mxu0 %v1771
    %1962 = vmatprep.subr.mxu0 0.0
    %1963 = vmatpush1.msra.mxu0 %v1768
    %1964 = vmatprep.subr.mxu0 0.0
    %1965 = vmatpush2.msra.mxu0 0.0
    %1966 = vmatprep.subr.mxu0 0.0
    %1967 = vmatpush2.msra.mxu0 0.0
    %1968 = vmatprep.subr.mxu0 0.0
    %1969 = vmatpush2.msra.mxu0 0.0
    %1970 = vmatprep.subr.mxu0 0.0
    %1971 = vmatpush2.msra.mxu0 0.0
    %1972 = vmatprep.subr.mxu0 0.0
    %1973 = vmatpush2.msra.mxu0 0.0
    %1974 = vmatprep.subr.mxu0 0.0
    %1975 = vmatpush2.msra.mxu0 0.0
    %1976 = vmatprep.subr.mxu0 0.0
    %1977 = vmatpush2.msra.mxu0 0.0
    %1978 = vmatprep.subr.mxu0 0.0
    %1979 = vmatpush2.msra.mxu0 0.0
    %1980 = vmatprep.subr.mxu0 0.0
    %1981 = vmatpush2.msra.mxu0 0.0
    %1982 = vmatprep.subr.mxu0 0.0
    %1983 = vmatpush2.msra.mxu0 0.0
    %1984 = vmatprep.subr.mxu0 0.0
    %1985 = vmatpush2.msra.mxu0 0.0
    %1986 = vmatprep.subr.mxu0 0.0
    %1987 = vmatpush2.msra.mxu0 0.0
    %1988 = vmatprep.subr.mxu0 0.0
    %1989 = vmatpush2.msra.mxu0 0.0
    %1990 = vmatprep.subr.mxu0 0.0
    %1991 = vmatpush2.msra.mxu0 0.0
    %1992 = vmatprep.subr.mxu0 0.0
    %1993 = vmatpush2.msra.mxu0 0.0
    %1994 = vmatprep.subr.mxu0 0.0
    %1995 = vmatpush2.msra.mxu0 0.0
    %1996 = vmatprep.mubr.f32.mxu0 0.0
    %1997 = vmatmul.mubr.f32.gmra.mxu0 %v1796
    %v1998 = vpop.f32.mrf.mxu0
    %v1999 = vadd.f32 %v1791, %v1998
    %v2000 = vpop.f32.mrf.mxu0
    %2001 = vmatprep.mubr.f32.mxu0 0.0
    %2002 = vmatmul.mubr.f32.gmra.mxu0 %v1799
    %v2003 = vpop.f32.mrf.mxu0
    %v2004 = vadd.f32 %v1791, %v2003
    %v2005 = vpop.f32.mrf.mxu0
    %2006 = vmatprep.mubr.f32.mxu0 0.0
    %2007 = vmatmul.mubr.f32.gmra.mxu0 %v1802
    %v2008 = vpop.f32.mrf.mxu0
    %v2009 = vadd.f32 %v1791, %v2008
    %v2010 = vpop.f32.mrf.mxu0
    %2011 = vmatprep.mubr.f32.mxu0 0.0
    %2012 = vmatmul.mubr.f32.gmra.mxu0 %v1805
    %v2013 = vpop.f32.mrf.mxu0
    %v2014 = vadd.f32 %v1791, %v2013
    %v2015 = vpop.f32.mrf.mxu0
    %2016 = vmatprep.mubr.f32.mxu0 0.0
    %2017 = vmatmul.mubr.f32.gmra.mxu0 %v1808
    %v2018 = vpop.f32.mrf.mxu0
    %v2019 = vadd.f32 %v1791, %v2018
    %v2020 = vpop.f32.mrf.mxu0
    %2021 = vmatprep.mubr.f32.mxu0 0.0
    %2022 = vmatmul.mubr.f32.gmra.mxu0 %v1811
    %v2023 = vpop.f32.mrf.mxu0
    %v2024 = vadd.f32 %v1791, %v2023
    %v2025 = vpop.f32.mrf.mxu0
    %2026 = vmatprep.mubr.f32.mxu0 0.0
    %2027 = vmatmul.mubr.f32.gmra.mxu0 %v1814
    %v2028 = vpop.f32.mrf.mxu0
    %v2029 = vadd.f32 %v1791, %v2028
    %v2030 = vpop.f32.mrf.mxu0
    %2031 = vmatprep.mubr.f32.mxu0 0.0
    %2032 = vmatmul.mubr.f32.gmra.mxu0 %v1817
    %v2033 = vpop.f32.mrf.mxu0
    %v2034 = vadd.f32 %v1791, %v2033
    %v2035 = vpop.f32.mrf.mxu0
    %2036 = vdwg.mxu0
    %2037 = vst [vmem:[#allocation2] sm:$0xff] %v1886
    %2038 = vst [vmem:[#allocation2 + $0x8] sm:$0xff] %v1888
    %2039 = vst [vmem:[#allocation2 + $0x10] sm:$0xff] %v1999
    %2040 = vst [vmem:[#allocation2 + $0x18] sm:$0xff] %v1892
    %2041 = vst [vmem:[#allocation2 + $0x20] sm:$0xff] %v1894
    %2042 = vst [vmem:[#allocation2 + $0x28] sm:$0xff] %v2004
    %2043 = vst [vmem:[#allocation2 + $0x30] sm:$0xff] %v1898
    %2044 = vst [vmem:[#allocation2 + $0x38] sm:$0xff] %v1900
    %2045 = vst [vmem:[#allocation2 + $0x40] sm:$0xff] %v2009
    %2046 = vst [vmem:[#allocation2 + $0x48] sm:$0xff] %v1904
    %2047 = vst [vmem:[#allocation2 + $0x50] sm:$0xff] %v1906
    %2048 = vst [vmem:[#allocation2 + $0x58] sm:$0xff] %v2014
    %2049 = vst [vmem:[#allocation2 + $0x60] sm:$0xff] %v1910
    %2050 = vst [vmem:[#allocation2 + $0x68] sm:$0xff] %v1912
    %2051 = vst [vmem:[#allocation2 + $0x70] sm:$0xff] %v2019
    %2052 = vst [vmem:[#allocation2 + $0x78] sm:$0xff] %v1916
    %2053 = vst [vmem:[#allocation2 + $0x80] sm:$0xff] %v1918
    %2054 = vst [vmem:[#allocation2 + $0x88] sm:$0xff] %v2024
    %2055 = vst [vmem:[#allocation2 + $0x90] sm:$0xff] %v1922
    %2056 = vst [vmem:[#allocation2 + $0x98] sm:$0xff] %v1924
    %2057 = vst [vmem:[#allocation2 + $0xa0] sm:$0xff] %v2029
    %2058 = vst [vmem:[#allocation2 + $0xa8] sm:$0xff] %v1928
    %2059 = vst [vmem:[#allocation2 + $0xb0] sm:$0xff] %v1930
    %2060 = vst [vmem:[#allocation2 + $0xb8] sm:$0xff] %v2034
    %v2061 = vld [vmem:[#allocation9] sm:$0xff]
    %v2062 = vld [vmem:[#allocation9 + $0x8] sm:$0xff]
    %v2063 = vld [vmem:[#allocation9 + $0x10] sm:$0xff]
    %v2064 = vld [vmem:[#allocation9 + $0x18] sm:$0xff]
    %v2065 = vld [vmem:[#allocation9 + $0x20] sm:$0xff]
    %v2066 = vld [vmem:[#allocation9 + $0x28] sm:$0xff]
    %v2067 = vld [vmem:[#allocation9 + $0x30] sm:$0xff]
    %v2068 = vld [vmem:[#allocation9 + $0x38] sm:$0xff]
    %v2069 = vld [vmem:[#allocation9 + $0x40] sm:$0xff]
    %v2070 = vld [vmem:[#allocation9 + $0x48] sm:$0xff]
    %v2071 = vld [vmem:[#allocation9 + $0x50] sm:$0xff]
    %v2072 = vld [vmem:[#allocation9 + $0x58] sm:$0xff]
    %v2073 = vld [vmem:[%s8] sm:$0x1]
    %v2075 = vlaneseq
    %v2076 = vshrl.u32 %v2075, 7
    %v2077 = vsub.s32 0, %v2076
    %v2078 = vrot.slane %v2073, %v2077
    %2080 = vmatprep.subr.mxu0 0.0
    %2081 = vmatpush1.msra.mxu0 0.0
    %2082 = vmatprep.subr.mxu0 0.0
    %2083 = vmatpush1.msra.mxu0 0.0
    %2084 = vmatprep.subr.mxu0 0.0
    %2085 = vmatpush1.msra.mxu0 0.0
    %2086 = vmatprep.subr.mxu0 0.0
    %2087 = vmatpush1.msra.mxu0 0.0
    %2088 = vmatprep.subr.mxu0 0.0
    %2089 = vmatpush1.msra.mxu0 0.0
    %2090 = vmatprep.subr.mxu0 0.0
    %2091 = vmatpush1.msra.mxu0 0.0
    %2092 = vmatprep.subr.mxu0 0.0
    %2093 = vmatpush1.msra.mxu0 0.0
    %2094 = vmatprep.subr.mxu0 0.0
    %2095 = vmatpush1.msra.mxu0 0.0
    %2096 = vmatprep.subr.mxu0 0.0
    %2097 = vmatpush1.msra.mxu0 0.0
    %2098 = vmatprep.subr.mxu0 0.0
    %2099 = vmatpush1.msra.mxu0 0.0
    %2100 = vmatprep.subr.mxu0 0.0
    %2101 = vmatpush1.msra.mxu0 0.0
    %2102 = vmatprep.subr.mxu0 0.0
    %2103 = vmatpush1.msra.mxu0 0.0
    %2104 = vmatprep.subr.mxu0 %v2071
    %2105 = vmatpush1.msra.mxu0 %v2070
    %2106 = vmatprep.subr.mxu0 %v2068
    %2107 = vmatpush1.msra.mxu0 %v2067
    %2108 = vmatprep.subr.mxu0 %v2065
    %2109 = vmatpush1.msra.mxu0 %v2064
    %2110 = vmatprep.subr.mxu0 %v2062
    %2111 = vmatpush1.msra.mxu0 %v2061
    %2112 = vmatprep.subr.mxu0 0.0
    %2113 = vmatpush2.msra.mxu0 0.0
    %2114 = vmatprep.subr.mxu0 0.0
    %2115 = vmatpush2.msra.mxu0 0.0
    %2116 = vmatprep.subr.mxu0 0.0
    %2117 = vmatpush2.msra.mxu0 0.0
    %2118 = vmatprep.subr.mxu0 0.0
    %2119 = vmatpush2.msra.mxu0 0.0
    %2120 = vmatprep.subr.mxu0 0.0
    %2121 = vmatpush2.msra.mxu0 0.0
    %2122 = vmatprep.subr.mxu0 0.0
    %2123 = vmatpush2.msra.mxu0 0.0
    %2124 = vmatprep.subr.mxu0 0.0
    %2125 = vmatpush2.msra.mxu0 0.0
    %2126 = vmatprep.subr.mxu0 0.0
    %2127 = vmatpush2.msra.mxu0 0.0
    %2128 = vmatprep.subr.mxu0 0.0
    %2129 = vmatpush2.msra.mxu0 0.0
    %2130 = vmatprep.subr.mxu0 0.0
    %2131 = vmatpush2.msra.mxu0 0.0
    %2132 = vmatprep.subr.mxu0 0.0
    %2133 = vmatpush2.msra.mxu0 0.0
    %2134 = vmatprep.subr.mxu0 0.0
    %2135 = vmatpush2.msra.mxu0 0.0
    %2136 = vmatprep.subr.mxu0 0.0
    %2137 = vmatpush2.msra.mxu0 0.0
    %2138 = vmatprep.subr.mxu0 0.0
    %2139 = vmatpush2.msra.mxu0 0.0
    %2140 = vmatprep.subr.mxu0 0.0
    %2141 = vmatpush2.msra.mxu0 0.0
    %2142 = vmatprep.subr.mxu0 0.0
    %2143 = vmatpush2.msra.mxu0 0.0
    %2144 = vmatprep.mubr.f32.mxu0 0.0
    %2145 = vmatmul.mubr.f32.gmra.mxu0 %v399
    %v2146 = vpop.f32.mrf.mxu0
    %v2147 = vadd.f32 0.0, %v2146
    %v2148 = vpop.f32.mrf.mxu0
    %v2149 = vadd.f32 0.0, %v2148
    %2150 = vdwg.mxu0
    %2151 = vmatprep.subr.mxu0 0.0
    %2152 = vmatpush1.msra.mxu0 0.0
    %2153 = vmatprep.subr.mxu0 0.0
    %2154 = vmatpush1.msra.mxu0 0.0
    %2155 = vmatprep.subr.mxu0 0.0
    %2156 = vmatpush1.msra.mxu0 0.0
    %2157 = vmatprep.subr.mxu0 0.0
    %2158 = vmatpush1.msra.mxu0 0.0
    %2159 = vmatprep.subr.mxu0 0.0
    %2160 = vmatpush1.msra.mxu0 0.0
    %2161 = vmatprep.subr.mxu0 0.0
    %2162 = vmatpush1.msra.mxu0 0.0
    %2163 = vmatprep.subr.mxu0 0.0
    %2164 = vmatpush1.msra.mxu0 0.0
    %2165 = vmatprep.subr.mxu0 0.0
    %2166 = vmatpush1.msra.mxu0 0.0
    %2167 = vmatprep.subr.mxu0 0.0
    %2168 = vmatpush1.msra.mxu0 0.0
    %2169 = vmatprep.subr.mxu0 0.0
    %2170 = vmatpush1.msra.mxu0 0.0
    %2171 = vmatprep.subr.mxu0 0.0
    %2172 = vmatpush1.msra.mxu0 0.0
    %2173 = vmatprep.subr.mxu0 0.0
    %2174 = vmatpush1.msra.mxu0 0.0
    %2175 = vmatprep.subr.mxu0 0.0
    %2176 = vmatpush1.msra.mxu0 %v2072
    %2177 = vmatprep.subr.mxu0 0.0
    %2178 = vmatpush1.msra.mxu0 %v2069
    %2179 = vmatprep.subr.mxu0 0.0
    %2180 = vmatpush1.msra.mxu0 %v2066
    %2181 = vmatprep.subr.mxu0 0.0
    %2182 = vmatpush1.msra.mxu0 %v2063
    %2183 = vmatprep.subr.mxu0 0.0
    %2184 = vmatpush2.msra.mxu0 0.0
    %2185 = vmatprep.subr.mxu0 0.0
    %2186 = vmatpush2.msra.mxu0 0.0
    %2187 = vmatprep.subr.mxu0 0.0
    %2188 = vmatpush2.msra.mxu0 0.0
    %2189 = vmatprep.subr.mxu0 0.0
    %2190 = vmatpush2.msra.mxu0 0.0
    %2191 = vmatprep.subr.mxu0 0.0
    %2192 = vmatpush2.msra.mxu0 0.0
    %2193 = vmatprep.subr.mxu0 0.0
    %2194 = vmatpush2.msra.mxu0 0.0
    %2195 = vmatprep.subr.mxu0 0.0
    %2196 = vmatpush2.msra.mxu0 0.0
    %2197 = vmatprep.subr.mxu0 0.0
    %2198 = vmatpush2.msra.mxu0 0.0
    %2199 = vmatprep.subr.mxu0 0.0
    %2200 = vmatpush2.msra.mxu0 0.0
    %2201 = vmatprep.subr.mxu0 0.0
    %2202 = vmatpush2.msra.mxu0 0.0
    %2203 = vmatprep.subr.mxu0 0.0
    %2204 = vmatpush2.msra.mxu0 0.0
    %2205 = vmatprep.subr.mxu0 0.0
    %2206 = vmatpush2.msra.mxu0 0.0
    %2207 = vmatprep.subr.mxu0 0.0
    %2208 = vmatpush2.msra.mxu0 0.0
    %2209 = vmatprep.subr.mxu0 0.0
    %2210 = vmatpush2.msra.mxu0 0.0
    %2211 = vmatprep.subr.mxu0 0.0
    %2212 = vmatpush2.msra.mxu0 0.0
    %2213 = vmatprep.subr.mxu0 0.0
    %2214 = vmatpush2.msra.mxu0 0.0
    %2215 = vmatprep.mubr.f32.mxu0 0.0
    %2216 = vmatmul.mubr.f32.gmra.mxu0 %v399
    %v2217 = vpop.f32.mrf.mxu0
    %v2218 = vadd.f32 0.0, %v2217
    %v2219 = vpop.f32.mrf.mxu0
    %2220 = vdwg.mxu0
    %v2221 = vld [vmem:[#allocation2] sm:$0xff]
    %v2222 = vld [vmem:[#allocation2 + $0x8] sm:$0xff]
    %v2223 = vld [vmem:[#allocation2 + $0x10] sm:$0xff]
    %v2224 = vadd.f32 %v2221, %v2147
    %v2225 = vxor.u32 %v2224, 2147483648
    %v2226 = vmul.f32 %v2225, 1.442695
    %v2227 = vpow.pop %v2226
    %v2228 = vadd.f32 %v2227, 1.0
    %v2229 = vrcp.pop %v2228
    %v2230 = vmul.f32 1.0, %v2229
    %v2231 = vadd.f32 %v2222, %v2149
    %v2232 = vxor.u32 %v2231, 2147483648
    %v2233 = vmul.f32 %v2232, 1.442695
    %v2234 = vpow.pop %v2233
    %v2235 = vadd.f32 %v2234, 1.0
    %v2236 = vrcp.pop %v2235
    %v2237 = vmul.f32 1.0, %v2236
    %v2238 = vadd.f32 %v2218, %v2078
    %v2239 = vmul.f32 %v2230, %v2238
    %v2240 = vadd.f32 %v2223, %v2239
    %v2241 = vtanh.pop %v2240
    %v2242 = vsub.f32 1.0, %v2237
    %v2243 = vmul.f32 %v2242, %v2241
    %v2244 = vmul.f32 %v2237, 0.0
    %v2245 = vadd.f32 %v2243, %v2244
    %v2247 = vsel %vm397, %v2245, 0
    %2249 = vmatprep.subr.mxu0 0.0
    %2250 = vmatpush1.msra.mxu0 0.0
    %2251 = vmatprep.subr.mxu0 0.0
    %2252 = vmatpush1.msra.mxu0 0.0
    %2253 = vmatprep.subr.mxu0 0.0
    %2254 = vmatpush1.msra.mxu0 0.0
    %2255 = vmatprep.subr.mxu0 0.0
    %2256 = vmatpush1.msra.mxu0 0.0
    %2257 = vmatprep.subr.mxu0 0.0
    %2258 = vmatpush1.msra.mxu0 0.0
    %2259 = vmatprep.subr.mxu0 0.0
    %2260 = vmatpush1.msra.mxu0 0.0
    %2261 = vmatprep.subr.mxu0 0.0
    %2262 = vmatpush1.msra.mxu0 0.0
    %2263 = vmatprep.subr.mxu0 0.0
    %2264 = vmatpush1.msra.mxu0 0.0
    %2265 = vmatprep.subr.mxu0 0.0
    %2266 = vmatpush1.msra.mxu0 0.0
    %2267 = vmatprep.subr.mxu0 0.0
    %2268 = vmatpush1.msra.mxu0 0.0
    %2269 = vmatprep.subr.mxu0 0.0
    %2270 = vmatpush1.msra.mxu0 0.0
    %2271 = vmatprep.subr.mxu0 0.0
    %2272 = vmatpush1.msra.mxu0 0.0
    %2273 = vmatprep.subr.mxu0 %v2071
    %2274 = vmatpush1.msra.mxu0 %v2070
    %2275 = vmatprep.subr.mxu0 %v2068
    %2276 = vmatpush1.msra.mxu0 %v2067
    %2277 = vmatprep.subr.mxu0 %v2065
    %2278 = vmatpush1.msra.mxu0 %v2064
    %2279 = vmatprep.subr.mxu0 %v2062
    %2280 = vmatpush1.msra.mxu0 %v2061
    %2281 = vmatprep.subr.mxu0 0.0
    %2282 = vmatpush2.msra.mxu0 0.0
    %2283 = vmatprep.subr.mxu0 0.0
    %2284 = vmatpush2.msra.mxu0 0.0
    %2285 = vmatprep.subr.mxu0 0.0
    %2286 = vmatpush2.msra.mxu0 0.0
    %2287 = vmatprep.subr.mxu0 0.0
    %2288 = vmatpush2.msra.mxu0 0.0
    %2289 = vmatprep.subr.mxu0 0.0
    %2290 = vmatpush2.msra.mxu0 0.0
    %2291 = vmatprep.subr.mxu0 0.0
    %2292 = vmatpush2.msra.mxu0 0.0
    %2293 = vmatprep.subr.mxu0 0.0
    %2294 = vmatpush2.msra.mxu0 0.0
    %2295 = vmatprep.subr.mxu0 0.0
    %2296 = vmatpush2.msra.mxu0 0.0
    %2297 = vmatprep.subr.mxu0 0.0
    %2298 = vmatpush2.msra.mxu0 0.0
    %2299 = vmatprep.subr.mxu0 0.0
    %2300 = vmatpush2.msra.mxu0 0.0
    %2301 = vmatprep.subr.mxu0 0.0
    %2302 = vmatpush2.msra.mxu0 0.0
    %2303 = vmatprep.subr.mxu0 0.0
    %2304 = vmatpush2.msra.mxu0 0.0
    %2305 = vmatprep.subr.mxu0 0.0
    %2306 = vmatpush2.msra.mxu0 0.0
    %2307 = vmatprep.subr.mxu0 0.0
    %2308 = vmatpush2.msra.mxu0 0.0
    %2309 = vmatprep.subr.mxu0 0.0
    %2310 = vmatpush2.msra.mxu0 0.0
    %2311 = vmatprep.subr.mxu0 0.0
    %2312 = vmatpush2.msra.mxu0 0.0
    %2313 = vmatprep.mubr.f32.mxu0 0.0
    %2314 = vmatmul.mubr.f32.gmra.mxu0 %v2247
    %v2315 = vpop.f32.mrf.mxu0
    %v2316 = vadd.f32 0.0, %v2315
    %v2317 = vpop.f32.mrf.mxu0
    %v2318 = vadd.f32 0.0, %v2317
    %2319 = vdwg.mxu0
    %2320 = vmatprep.subr.mxu0 0.0
    %2321 = vmatpush1.msra.mxu0 0.0
    %2322 = vmatprep.subr.mxu0 0.0
    %2323 = vmatpush1.msra.mxu0 0.0
    %2324 = vmatprep.subr.mxu0 0.0
    %2325 = vmatpush1.msra.mxu0 0.0
    %2326 = vmatprep.subr.mxu0 0.0
    %2327 = vmatpush1.msra.mxu0 0.0
    %2328 = vmatprep.subr.mxu0 0.0
    %2329 = vmatpush1.msra.mxu0 0.0
    %2330 = vmatprep.subr.mxu0 0.0
    %2331 = vmatpush1.msra.mxu0 0.0
    %2332 = vmatprep.subr.mxu0 0.0
    %2333 = vmatpush1.msra.mxu0 0.0
    %2334 = vmatprep.subr.mxu0 0.0
    %2335 = vmatpush1.msra.mxu0 0.0
    %2336 = vmatprep.subr.mxu0 0.0
    %2337 = vmatpush1.msra.mxu0 0.0
    %2338 = vmatprep.subr.mxu0 0.0
    %2339 = vmatpush1.msra.mxu0 0.0
    %2340 = vmatprep.subr.mxu0 0.0
    %2341 = vmatpush1.msra.mxu0 0.0
    %2342 = vmatprep.subr.mxu0 0.0
    %2343 = vmatpush1.msra.mxu0 0.0
    %2344 = vmatprep.subr.mxu0 0.0
    %2345 = vmatpush1.msra.mxu0 %v2072
    %2346 = vmatprep.subr.mxu0 0.0
    %2347 = vmatpush1.msra.mxu0 %v2069
    %2348 = vmatprep.subr.mxu0 0.0
    %2349 = vmatpush1.msra.mxu0 %v2066
    %2350 = vmatprep.subr.mxu0 0.0
    %2351 = vmatpush1.msra.mxu0 %v2063
    %2352 = vmatprep.subr.mxu0 0.0
    %2353 = vmatpush2.msra.mxu0 0.0
    %2354 = vmatprep.subr.mxu0 0.0
    %2355 = vmatpush2.msra.mxu0 0.0
    %2356 = vmatprep.subr.mxu0 0.0
    %2357 = vmatpush2.msra.mxu0 0.0
    %2358 = vmatprep.subr.mxu0 0.0
    %2359 = vmatpush2.msra.mxu0 0.0
    %2360 = vmatprep.subr.mxu0 0.0
    %2361 = vmatpush2.msra.mxu0 0.0
    %2362 = vmatprep.subr.mxu0 0.0
    %2363 = vmatpush2.msra.mxu0 0.0
    %2364 = vmatprep.subr.mxu0 0.0
    %2365 = vmatpush2.msra.mxu0 0.0
    %2366 = vmatprep.subr.mxu0 0.0
    %2367 = vmatpush2.msra.mxu0 0.0
    %2368 = vmatprep.subr.mxu0 0.0
    %2369 = vmatpush2.msra.mxu0 0.0
    %2370 = vmatprep.subr.mxu0 0.0
    %2371 = vmatpush2.msra.mxu0 0.0
    %2372 = vmatprep.subr.mxu0 0.0
    %2373 = vmatpush2.msra.mxu0 0.0
    %2374 = vmatprep.subr.mxu0 0.0
    %2375 = vmatpush2.msra.mxu0 0.0
    %2376 = vmatprep.subr.mxu0 0.0
    %2377 = vmatpush2.msra.mxu0 0.0
    %2378 = vmatprep.subr.mxu0 0.0
    %2379 = vmatpush2.msra.mxu0 0.0
    %2380 = vmatprep.subr.mxu0 0.0
    %2381 = vmatpush2.msra.mxu0 0.0
    %2382 = vmatprep.subr.mxu0 0.0
    %2383 = vmatpush2.msra.mxu0 0.0
    %2384 = vmatprep.mubr.f32.mxu0 0.0
    %2385 = vmatmul.mubr.f32.gmra.mxu0 %v2247
    %v2386 = vpop.f32.mrf.mxu0
    %v2387 = vadd.f32 0.0, %v2386
    %v2388 = vpop.f32.mrf.mxu0
    %2389 = vdwg.mxu0
    %v2390 = vld [vmem:[#allocation2 + $0x18] sm:$0xff]
    %v2391 = vld [vmem:[#allocation2 + $0x20] sm:$0xff]
    %v2392 = vld [vmem:[#allocation2 + $0x28] sm:$0xff]
    %v2393 = vadd.f32 %v2390, %v2316
    %v2394 = vxor.u32 %v2393, 2147483648
    %v2395 = vmul.f32 %v2394, 1.442695
    %v2396 = vpow.pop %v2395
    %v2397 = vadd.f32 %v2396, 1.0
    %v2398 = vrcp.pop %v2397
    %v2399 = vmul.f32 1.0, %v2398
    %v2400 = vadd.f32 %v2391, %v2318
    %v2401 = vxor.u32 %v2400, 2147483648
    %v2402 = vmul.f32 %v2401, 1.442695
    %v2403 = vpow.pop %v2402
    %v2404 = vadd.f32 %v2403, 1.0
    %v2405 = vrcp.pop %v2404
    %v2406 = vmul.f32 1.0, %v2405
    %v2407 = vadd.f32 %v2387, %v2078
    %v2408 = vmul.f32 %v2399, %v2407
    %v2409 = vadd.f32 %v2392, %v2408
    %v2410 = vtanh.pop %v2409
    %v2411 = vsub.f32 1.0, %v2406
    %v2412 = vmul.f32 %v2411, %v2410
    %v2413 = vmul.f32 %v2406, %v2245
    %v2414 = vadd.f32 %v2412, %v2413
    %v2416 = vsel %vm397, %v2414, 0
    %2418 = vmatprep.subr.mxu0 0.0
    %2419 = vmatpush1.msra.mxu0 0.0
    %2420 = vmatprep.subr.mxu0 0.0
    %2421 = vmatpush1.msra.mxu0 0.0
    %2422 = vmatprep.subr.mxu0 0.0
    %2423 = vmatpush1.msra.mxu0 0.0
    %2424 = vmatprep.subr.mxu0 0.0
    %2425 = vmatpush1.msra.mxu0 0.0
    %2426 = vmatprep.subr.mxu0 0.0
    %2427 = vmatpush1.msra.mxu0 0.0
    %2428 = vmatprep.subr.mxu0 0.0
    %2429 = vmatpush1.msra.mxu0 0.0
    %2430 = vmatprep.subr.mxu0 0.0
    %2431 = vmatpush1.msra.mxu0 0.0
    %2432 = vmatprep.subr.mxu0 0.0
    %2433 = vmatpush1.msra.mxu0 0.0
    %2434 = vmatprep.subr.mxu0 0.0
    %2435 = vmatpush1.msra.mxu0 0.0
    %2436 = vmatprep.subr.mxu0 0.0
    %2437 = vmatpush1.msra.mxu0 0.0
    %2438 = vmatprep.subr.mxu0 0.0
    %2439 = vmatpush1.msra.mxu0 0.0
    %2440 = vmatprep.subr.mxu0 0.0
    %2441 = vmatpush1.msra.mxu0 0.0
    %2442 = vmatprep.subr.mxu0 %v2071
    %2443 = vmatpush1.msra.mxu0 %v2070
    %2444 = vmatprep.subr.mxu0 %v2068
    %2445 = vmatpush1.msra.mxu0 %v2067
    %2446 = vmatprep.subr.mxu0 %v2065
    %2447 = vmatpush1.msra.mxu0 %v2064
    %2448 = vmatprep.subr.mxu0 %v2062
    %2449 = vmatpush1.msra.mxu0 %v2061
    %2450 = vmatprep.subr.mxu0 0.0
    %2451 = vmatpush2.msra.mxu0 0.0
    %2452 = vmatprep.subr.mxu0 0.0
    %2453 = vmatpush2.msra.mxu0 0.0
    %2454 = vmatprep.subr.mxu0 0.0
    %2455 = vmatpush2.msra.mxu0 0.0
    %2456 = vmatprep.subr.mxu0 0.0
    %2457 = vmatpush2.msra.mxu0 0.0
    %2458 = vmatprep.subr.mxu0 0.0
    %2459 = vmatpush2.msra.mxu0 0.0
    %2460 = vmatprep.subr.mxu0 0.0
    %2461 = vmatpush2.msra.mxu0 0.0
    %2462 = vmatprep.subr.mxu0 0.0
    %2463 = vmatpush2.msra.mxu0 0.0
    %2464 = vmatprep.subr.mxu0 0.0
    %2465 = vmatpush2.msra.mxu0 0.0
    %2466 = vmatprep.subr.mxu0 0.0
    %2467 = vmatpush2.msra.mxu0 0.0
    %2468 = vmatprep.subr.mxu0 0.0
    %2469 = vmatpush2.msra.mxu0 0.0
    %2470 = vmatprep.subr.mxu0 0.0
    %2471 = vmatpush2.msra.mxu0 0.0
    %2472 = vmatprep.subr.mxu0 0.0
    %2473 = vmatpush2.msra.mxu0 0.0
    %2474 = vmatprep.subr.mxu0 0.0
    %2475 = vmatpush2.msra.mxu0 0.0
    %2476 = vmatprep.subr.mxu0 0.0
    %2477 = vmatpush2.msra.mxu0 0.0
    %2478 = vmatprep.subr.mxu0 0.0
    %2479 = vmatpush2.msra.mxu0 0.0
    %2480 = vmatprep.subr.mxu0 0.0
    %2481 = vmatpush2.msra.mxu0 0.0
    %2482 = vmatprep.mubr.f32.mxu0 0.0
    %2483 = vmatmul.mubr.f32.gmra.mxu0 %v2416
    %v2484 = vpop.f32.mrf.mxu0
    %v2485 = vadd.f32 0.0, %v2484
    %v2486 = vpop.f32.mrf.mxu0
    %v2487 = vadd.f32 0.0, %v2486
    %2488 = vdwg.mxu0
    %2489 = vmatprep.subr.mxu0 0.0
    %2490 = vmatpush1.msra.mxu0 0.0
    %2491 = vmatprep.subr.mxu0 0.0
    %2492 = vmatpush1.msra.mxu0 0.0
    %2493 = vmatprep.subr.mxu0 0.0
    %2494 = vmatpush1.msra.mxu0 0.0
    %2495 = vmatprep.subr.mxu0 0.0
    %2496 = vmatpush1.msra.mxu0 0.0
    %2497 = vmatprep.subr.mxu0 0.0
    %2498 = vmatpush1.msra.mxu0 0.0
    %2499 = vmatprep.subr.mxu0 0.0
    %2500 = vmatpush1.msra.mxu0 0.0
    %2501 = vmatprep.subr.mxu0 0.0
    %2502 = vmatpush1.msra.mxu0 0.0
    %2503 = vmatprep.subr.mxu0 0.0
    %2504 = vmatpush1.msra.mxu0 0.0
    %2505 = vmatprep.subr.mxu0 0.0
    %2506 = vmatpush1.msra.mxu0 0.0
    %2507 = vmatprep.subr.mxu0 0.0
    %2508 = vmatpush1.msra.mxu0 0.0
    %2509 = vmatprep.subr.mxu0 0.0
    %2510 = vmatpush1.msra.mxu0 0.0
    %2511 = vmatprep.subr.mxu0 0.0
    %2512 = vmatpush1.msra.mxu0 0.0
    %2513 = vmatprep.subr.mxu0 0.0
    %2514 = vmatpush1.msra.mxu0 %v2072
    %2515 = vmatprep.subr.mxu0 0.0
    %2516 = vmatpush1.msra.mxu0 %v2069
    %2517 = vmatprep.subr.mxu0 0.0
    %2518 = vmatpush1.msra.mxu0 %v2066
    %2519 = vmatprep.subr.mxu0 0.0
    %2520 = vmatpush1.msra.mxu0 %v2063
    %2521 = vmatprep.subr.mxu0 0.0
    %2522 = vmatpush2.msra.mxu0 0.0
    %2523 = vmatprep.subr.mxu0 0.0
    %2524 = vmatpush2.msra.mxu0 0.0
    %2525 = vmatprep.subr.mxu0 0.0
    %2526 = vmatpush2.msra.mxu0 0.0
    %2527 = vmatprep.subr.mxu0 0.0
    %2528 = vmatpush2.msra.mxu0 0.0
    %2529 = vmatprep.subr.mxu0 0.0
    %2530 = vmatpush2.msra.mxu0 0.0
    %2531 = vmatprep.subr.mxu0 0.0
    %2532 = vmatpush2.msra.mxu0 0.0
    %2533 = vmatprep.subr.mxu0 0.0
    %2534 = vmatpush2.msra.mxu0 0.0
    %2535 = vmatprep.subr.mxu0 0.0
    %2536 = vmatpush2.msra.mxu0 0.0
    %2537 = vmatprep.subr.mxu0 0.0
    %2538 = vmatpush2.msra.mxu0 0.0
    %2539 = vmatprep.subr.mxu0 0.0
    %2540 = vmatpush2.msra.mxu0 0.0
    %2541 = vmatprep.subr.mxu0 0.0
    %2542 = vmatpush2.msra.mxu0 0.0
    %2543 = vmatprep.subr.mxu0 0.0
    %2544 = vmatpush2.msra.mxu0 0.0
    %2545 = vmatprep.subr.mxu0 0.0
    %2546 = vmatpush2.msra.mxu0 0.0
    %2547 = vmatprep.subr.mxu0 0.0
    %2548 = vmatpush2.msra.mxu0 0.0
    %2549 = vmatprep.subr.mxu0 0.0
    %2550 = vmatpush2.msra.mxu0 0.0
    %2551 = vmatprep.subr.mxu0 0.0
    %2552 = vmatpush2.msra.mxu0 0.0
    %2553 = vmatprep.mubr.f32.mxu0 0.0
    %2554 = vmatmul.mubr.f32.gmra.mxu0 %v2416
    %v2555 = vpop.f32.mrf.mxu0
    %v2556 = vadd.f32 0.0, %v2555
    %v2557 = vpop.f32.mrf.mxu0
    %2558 = vdwg.mxu0
    %v2559 = vld [vmem:[#allocation2 + $0x30] sm:$0xff]
    %v2560 = vld [vmem:[#allocation2 + $0x38] sm:$0xff]
    %v2561 = vld [vmem:[#allocation2 + $0x40] sm:$0xff]
    %v2562 = vadd.f32 %v2559, %v2485
    %v2563 = vxor.u32 %v2562, 2147483648
    %v2564 = vmul.f32 %v2563, 1.442695
    %v2565 = vpow.pop %v2564
    %v2566 = vadd.f32 %v2565, 1.0
    %v2567 = vrcp.pop %v2566
    %v2568 = vmul.f32 1.0, %v2567
    %v2569 = vadd.f32 %v2560, %v2487
    %v2570 = vxor.u32 %v2569, 2147483648
    %v2571 = vmul.f32 %v2570, 1.442695
    %v2572 = vpow.pop %v2571
    %v2573 = vadd.f32 %v2572, 1.0
    %v2574 = vrcp.pop %v2573
    %v2575 = vmul.f32 1.0, %v2574
    %v2576 = vadd.f32 %v2556, %v2078
    %v2577 = vmul.f32 %v2568, %v2576
    %v2578 = vadd.f32 %v2561, %v2577
    %v2579 = vtanh.pop %v2578
    %v2580 = vsub.f32 1.0, %v2575
    %v2581 = vmul.f32 %v2580, %v2579
    %v2582 = vmul.f32 %v2575, %v2414
    %v2583 = vadd.f32 %v2581, %v2582
    %v2585 = vsel %vm397, %v2583, 0
    %2587 = vmatprep.subr.mxu0 0.0
    %2588 = vmatpush1.msra.mxu0 0.0
    %2589 = vmatprep.subr.mxu0 0.0
    %2590 = vmatpush1.msra.mxu0 0.0
    %2591 = vmatprep.subr.mxu0 0.0
    %2592 = vmatpush1.msra.mxu0 0.0
    %2593 = vmatprep.subr.mxu0 0.0
    %2594 = vmatpush1.msra.mxu0 0.0
    %2595 = vmatprep.subr.mxu0 0.0
    %2596 = vmatpush1.msra.mxu0 0.0
    %2597 = vmatprep.subr.mxu0 0.0
    %2598 = vmatpush1.msra.mxu0 0.0
    %2599 = vmatprep.subr.mxu0 0.0
    %2600 = vmatpush1.msra.mxu0 0.0
    %2601 = vmatprep.subr.mxu0 0.0
    %2602 = vmatpush1.msra.mxu0 0.0
    %2603 = vmatprep.subr.mxu0 0.0
    %2604 = vmatpush1.msra.mxu0 0.0
    %2605 = vmatprep.subr.mxu0 0.0
    %2606 = vmatpush1.msra.mxu0 0.0
    %2607 = vmatprep.subr.mxu0 0.0
    %2608 = vmatpush1.msra.mxu0 0.0
    %2609 = vmatprep.subr.mxu0 0.0
    %2610 = vmatpush1.msra.mxu0 0.0
    %2611 = vmatprep.subr.mxu0 %v2071
    %2612 = vmatpush1.msra.mxu0 %v2070
    %2613 = vmatprep.subr.mxu0 %v2068
    %2614 = vmatpush1.msra.mxu0 %v2067
    %2615 = vmatprep.subr.mxu0 %v2065
    %2616 = vmatpush1.msra.mxu0 %v2064
    %2617 = vmatprep.subr.mxu0 %v2062
    %2618 = vmatpush1.msra.mxu0 %v2061
    %2619 = vmatprep.subr.mxu0 0.0
    %2620 = vmatpush2.msra.mxu0 0.0
    %2621 = vmatprep.subr.mxu0 0.0
    %2622 = vmatpush2.msra.mxu0 0.0
    %2623 = vmatprep.subr.mxu0 0.0
    %2624 = vmatpush2.msra.mxu0 0.0
    %2625 = vmatprep.subr.mxu0 0.0
    %2626 = vmatpush2.msra.mxu0 0.0
    %2627 = vmatprep.subr.mxu0 0.0
    %2628 = vmatpush2.msra.mxu0 0.0
    %2629 = vmatprep.subr.mxu0 0.0
    %2630 = vmatpush2.msra.mxu0 0.0
    %2631 = vmatprep.subr.mxu0 0.0
    %2632 = vmatpush2.msra.mxu0 0.0
    %2633 = vmatprep.subr.mxu0 0.0
    %2634 = vmatpush2.msra.mxu0 0.0
    %2635 = vmatprep.subr.mxu0 0.0
    %2636 = vmatpush2.msra.mxu0 0.0
    %2637 = vmatprep.subr.mxu0 0.0
    %2638 = vmatpush2.msra.mxu0 0.0
    %2639 = vmatprep.subr.mxu0 0.0
    %2640 = vmatpush2.msra.mxu0 0.0
    %2641 = vmatprep.subr.mxu0 0.0
    %2642 = vmatpush2.msra.mxu0 0.0
    %2643 = vmatprep.subr.mxu0 0.0
    %2644 = vmatpush2.msra.mxu0 0.0
    %2645 = vmatprep.subr.mxu0 0.0
    %2646 = vmatpush2.msra.mxu0 0.0
    %2647 = vmatprep.subr.mxu0 0.0
    %2648 = vmatpush2.msra.mxu0 0.0
    %2649 = vmatprep.subr.mxu0 0.0
    %2650 = vmatpush2.msra.mxu0 0.0
    %2651 = vmatprep.mubr.f32.mxu0 0.0
    %2652 = vmatmul.mubr.f32.gmra.mxu0 %v2585
    %v2653 = vpop.f32.mrf.mxu0
    %v2654 = vadd.f32 0.0, %v2653
    %v2655 = vpop.f32.mrf.mxu0
    %v2656 = vadd.f32 0.0, %v2655
    %2657 = vdwg.mxu0
    %2658 = vmatprep.subr.mxu0 0.0
    %2659 = vmatpush1.msra.mxu0 0.0
    %2660 = vmatprep.subr.mxu0 0.0
    %2661 = vmatpush1.msra.mxu0 0.0
    %2662 = vmatprep.subr.mxu0 0.0
    %2663 = vmatpush1.msra.mxu0 0.0
    %2664 = vmatprep.subr.mxu0 0.0
    %2665 = vmatpush1.msra.mxu0 0.0
    %2666 = vmatprep.subr.mxu0 0.0
    %2667 = vmatpush1.msra.mxu0 0.0
    %2668 = vmatprep.subr.mxu0 0.0
    %2669 = vmatpush1.msra.mxu0 0.0
    %2670 = vmatprep.subr.mxu0 0.0
    %2671 = vmatpush1.msra.mxu0 0.0
    %2672 = vmatprep.subr.mxu0 0.0
    %2673 = vmatpush1.msra.mxu0 0.0
    %2674 = vmatprep.subr.mxu0 0.0
    %2675 = vmatpush1.msra.mxu0 0.0
    %2676 = vmatprep.subr.mxu0 0.0
    %2677 = vmatpush1.msra.mxu0 0.0
    %2678 = vmatprep.subr.mxu0 0.0
    %2679 = vmatpush1.msra.mxu0 0.0
    %2680 = vmatprep.subr.mxu0 0.0
    %2681 = vmatpush1.msra.mxu0 0.0
    %2682 = vmatprep.subr.mxu0 0.0
    %2683 = vmatpush1.msra.mxu0 %v2072
    %2684 = vmatprep.subr.mxu0 0.0
    %2685 = vmatpush1.msra.mxu0 %v2069
    %2686 = vmatprep.subr.mxu0 0.0
    %2687 = vmatpush1.msra.mxu0 %v2066
    %2688 = vmatprep.subr.mxu0 0.0
    %2689 = vmatpush1.msra.mxu0 %v2063
    %2690 = vmatprep.subr.mxu0 0.0
    %2691 = vmatpush2.msra.mxu0 0.0
    %2692 = vmatprep.subr.mxu0 0.0
    %2693 = vmatpush2.msra.mxu0 0.0
    %2694 = vmatprep.subr.mxu0 0.0
    %2695 = vmatpush2.msra.mxu0 0.0
    %2696 = vmatprep.subr.mxu0 0.0
    %2697 = vmatpush2.msra.mxu0 0.0
    %2698 = vmatprep.subr.mxu0 0.0
    %2699 = vmatpush2.msra.mxu0 0.0
    %2700 = vmatprep.subr.mxu0 0.0
    %2701 = vmatpush2.msra.mxu0 0.0
    %2702 = vmatprep.subr.mxu0 0.0
    %2703 = vmatpush2.msra.mxu0 0.0
    %2704 = vmatprep.subr.mxu0 0.0
    %2705 = vmatpush2.msra.mxu0 0.0
    %2706 = vmatprep.subr.mxu0 0.0
    %2707 = vmatpush2.msra.mxu0 0.0
    %2708 = vmatprep.subr.mxu0 0.0
    %2709 = vmatpush2.msra.mxu0 0.0
    %2710 = vmatprep.subr.mxu0 0.0
    %2711 = vmatpush2.msra.mxu0 0.0
    %2712 = vmatprep.subr.mxu0 0.0
    %2713 = vmatpush2.msra.mxu0 0.0
    %2714 = vmatprep.subr.mxu0 0.0
    %2715 = vmatpush2.msra.mxu0 0.0
    %2716 = vmatprep.subr.mxu0 0.0
    %2717 = vmatpush2.msra.mxu0 0.0
    %2718 = vmatprep.subr.mxu0 0.0
    %2719 = vmatpush2.msra.mxu0 0.0
    %2720 = vmatprep.subr.mxu0 0.0
    %2721 = vmatpush2.msra.mxu0 0.0
    %2722 = vmatprep.mubr.f32.mxu0 0.0
    %2723 = vmatmul.mubr.f32.gmra.mxu0 %v2585
    %v2724 = vpop.f32.mrf.mxu0
    %v2725 = vadd.f32 0.0, %v2724
    %v2726 = vpop.f32.mrf.mxu0
    %2727 = vdwg.mxu0
    %v2728 = vld [vmem:[#allocation2 + $0x48] sm:$0xff]
    %v2729 = vld [vmem:[#allocation2 + $0x50] sm:$0xff]
    %v2730 = vld [vmem:[#allocation2 + $0x58] sm:$0xff]
    %v2731 = vadd.f32 %v2728, %v2654
    %v2732 = vxor.u32 %v2731, 2147483648
    %v2733 = vmul.f32 %v2732, 1.442695
    %v2734 = vpow.pop %v2733
    %v2735 = vadd.f32 %v2734, 1.0
    %v2736 = vrcp.pop %v2735
    %v2737 = vmul.f32 1.0, %v2736
    %v2738 = vadd.f32 %v2729, %v2656
    %v2739 = vxor.u32 %v2738, 2147483648
    %v2740 = vmul.f32 %v2739, 1.442695
    %v2741 = vpow.pop %v2740
    %v2742 = vadd.f32 %v2741, 1.0
    %v2743 = vrcp.pop %v2742
    %v2744 = vmul.f32 1.0, %v2743
    %v2745 = vadd.f32 %v2725, %v2078
    %v2746 = vmul.f32 %v2737, %v2745
    %v2747 = vadd.f32 %v2730, %v2746
    %v2748 = vtanh.pop %v2747
    %v2749 = vsub.f32 1.0, %v2744
    %v2750 = vmul.f32 %v2749, %v2748
    %v2751 = vmul.f32 %v2744, %v2583
    %v2752 = vadd.f32 %v2750, %v2751
    %v2754 = vsel %vm397, %v2752, 0
    %2756 = vmatprep.subr.mxu0 0.0
    %2757 = vmatpush1.msra.mxu0 0.0
    %2758 = vmatprep.subr.mxu0 0.0
    %2759 = vmatpush1.msra.mxu0 0.0
    %2760 = vmatprep.subr.mxu0 0.0
    %2761 = vmatpush1.msra.mxu0 0.0
    %2762 = vmatprep.subr.mxu0 0.0
    %2763 = vmatpush1.msra.mxu0 0.0
    %2764 = vmatprep.subr.mxu0 0.0
    %2765 = vmatpush1.msra.mxu0 0.0
    %2766 = vmatprep.subr.mxu0 0.0
    %2767 = vmatpush1.msra.mxu0 0.0
    %2768 = vmatprep.subr.mxu0 0.0
    %2769 = vmatpush1.msra.mxu0 0.0
    %2770 = vmatprep.subr.mxu0 0.0
    %2771 = vmatpush1.msra.mxu0 0.0
    %2772 = vmatprep.subr.mxu0 0.0
    %2773 = vmatpush1.msra.mxu0 0.0
    %2774 = vmatprep.subr.mxu0 0.0
    %2775 = vmatpush1.msra.mxu0 0.0
    %2776 = vmatprep.subr.mxu0 0.0
    %2777 = vmatpush1.msra.mxu0 0.0
    %2778 = vmatprep.subr.mxu0 0.0
    %2779 = vmatpush1.msra.mxu0 0.0
    %2780 = vmatprep.subr.mxu0 %v2071
    %2781 = vmatpush1.msra.mxu0 %v2070
    %2782 = vmatprep.subr.mxu0 %v2068
    %2783 = vmatpush1.msra.mxu0 %v2067
    %2784 = vmatprep.subr.mxu0 %v2065
    %2785 = vmatpush1.msra.mxu0 %v2064
    %2786 = vmatprep.subr.mxu0 %v2062
    %2787 = vmatpush1.msra.mxu0 %v2061
    %2788 = vmatprep.subr.mxu0 0.0
    %2789 = vmatpush2.msra.mxu0 0.0
    %2790 = vmatprep.subr.mxu0 0.0
    %2791 = vmatpush2.msra.mxu0 0.0
    %2792 = vmatprep.subr.mxu0 0.0
    %2793 = vmatpush2.msra.mxu0 0.0
    %2794 = vmatprep.subr.mxu0 0.0
    %2795 = vmatpush2.msra.mxu0 0.0
    %2796 = vmatprep.subr.mxu0 0.0
    %2797 = vmatpush2.msra.mxu0 0.0
    %2798 = vmatprep.subr.mxu0 0.0
    %2799 = vmatpush2.msra.mxu0 0.0
    %2800 = vmatprep.subr.mxu0 0.0
    %2801 = vmatpush2.msra.mxu0 0.0
    %2802 = vmatprep.subr.mxu0 0.0
    %2803 = vmatpush2.msra.mxu0 0.0
    %2804 = vmatprep.subr.mxu0 0.0
    %2805 = vmatpush2.msra.mxu0 0.0
    %2806 = vmatprep.subr.mxu0 0.0
    %2807 = vmatpush2.msra.mxu0 0.0
    %2808 = vmatprep.subr.mxu0 0.0
    %2809 = vmatpush2.msra.mxu0 0.0
    %2810 = vmatprep.subr.mxu0 0.0
    %2811 = vmatpush2.msra.mxu0 0.0
    %2812 = vmatprep.subr.mxu0 0.0
    %2813 = vmatpush2.msra.mxu0 0.0
    %2814 = vmatprep.subr.mxu0 0.0
    %2815 = vmatpush2.msra.mxu0 0.0
    %2816 = vmatprep.subr.mxu0 0.0
    %2817 = vmatpush2.msra.mxu0 0.0
    %2818 = vmatprep.subr.mxu0 0.0
    %2819 = vmatpush2.msra.mxu0 0.0
    %2820 = vmatprep.mubr.f32.mxu0 0.0
    %2821 = vmatmul.mubr.f32.gmra.mxu0 %v2754
    %v2822 = vpop.f32.mrf.mxu0
    %v2823 = vadd.f32 0.0, %v2822
    %v2824 = vpop.f32.mrf.mxu0
    %v2825 = vadd.f32 0.0, %v2824
    %2826 = vdwg.mxu0
    %2827 = vmatprep.subr.mxu0 0.0
    %2828 = vmatpush1.msra.mxu0 0.0
    %2829 = vmatprep.subr.mxu0 0.0
    %2830 = vmatpush1.msra.mxu0 0.0
    %2831 = vmatprep.subr.mxu0 0.0
    %2832 = vmatpush1.msra.mxu0 0.0
    %2833 = vmatprep.subr.mxu0 0.0
    %2834 = vmatpush1.msra.mxu0 0.0
    %2835 = vmatprep.subr.mxu0 0.0
    %2836 = vmatpush1.msra.mxu0 0.0
    %2837 = vmatprep.subr.mxu0 0.0
    %2838 = vmatpush1.msra.mxu0 0.0
    %2839 = vmatprep.subr.mxu0 0.0
    %2840 = vmatpush1.msra.mxu0 0.0
    %2841 = vmatprep.subr.mxu0 0.0
    %2842 = vmatpush1.msra.mxu0 0.0
    %2843 = vmatprep.subr.mxu0 0.0
    %2844 = vmatpush1.msra.mxu0 0.0
    %2845 = vmatprep.subr.mxu0 0.0
    %2846 = vmatpush1.msra.mxu0 0.0
    %2847 = vmatprep.subr.mxu0 0.0
    %2848 = vmatpush1.msra.mxu0 0.0
    %2849 = vmatprep.subr.mxu0 0.0
    %2850 = vmatpush1.msra.mxu0 0.0
    %2851 = vmatprep.subr.mxu0 0.0
    %2852 = vmatpush1.msra.mxu0 %v2072
    %2853 = vmatprep.subr.mxu0 0.0
    %2854 = vmatpush1.msra.mxu0 %v2069
    %2855 = vmatprep.subr.mxu0 0.0
    %2856 = vmatpush1.msra.mxu0 %v2066
    %2857 = vmatprep.subr.mxu0 0.0
    %2858 = vmatpush1.msra.mxu0 %v2063
    %2859 = vmatprep.subr.mxu0 0.0
    %2860 = vmatpush2.msra.mxu0 0.0
    %2861 = vmatprep.subr.mxu0 0.0
    %2862 = vmatpush2.msra.mxu0 0.0
    %2863 = vmatprep.subr.mxu0 0.0
    %2864 = vmatpush2.msra.mxu0 0.0
    %2865 = vmatprep.subr.mxu0 0.0
    %2866 = vmatpush2.msra.mxu0 0.0
    %2867 = vmatprep.subr.mxu0 0.0
    %2868 = vmatpush2.msra.mxu0 0.0
    %2869 = vmatprep.subr.mxu0 0.0
    %2870 = vmatpush2.msra.mxu0 0.0
    %2871 = vmatprep.subr.mxu0 0.0
    %2872 = vmatpush2.msra.mxu0 0.0
    %2873 = vmatprep.subr.mxu0 0.0
    %2874 = vmatpush2.msra.mxu0 0.0
    %2875 = vmatprep.subr.mxu0 0.0
    %2876 = vmatpush2.msra.mxu0 0.0
    %2877 = vmatprep.subr.mxu0 0.0
    %2878 = vmatpush2.msra.mxu0 0.0
    %2879 = vmatprep.subr.mxu0 0.0
    %2880 = vmatpush2.msra.mxu0 0.0
    %2881 = vmatprep.subr.mxu0 0.0
    %2882 = vmatpush2.msra.mxu0 0.0
    %2883 = vmatprep.subr.mxu0 0.0
    %2884 = vmatpush2.msra.mxu0 0.0
    %2885 = vmatprep.subr.mxu0 0.0
    %2886 = vmatpush2.msra.mxu0 0.0
    %2887 = vmatprep.subr.mxu0 0.0
    %2888 = vmatpush2.msra.mxu0 0.0
    %2889 = vmatprep.subr.mxu0 0.0
    %2890 = vmatpush2.msra.mxu0 0.0
    %2891 = vmatprep.mubr.f32.mxu0 0.0
    %2892 = vmatmul.mubr.f32.gmra.mxu0 %v2754
    %v2893 = vpop.f32.mrf.mxu0
    %v2894 = vadd.f32 0.0, %v2893
    %v2895 = vpop.f32.mrf.mxu0
    %2896 = vdwg.mxu0
    %v2897 = vld [vmem:[#allocation2 + $0x60] sm:$0xff]
    %v2898 = vld [vmem:[#allocation2 + $0x68] sm:$0xff]
    %v2899 = vld [vmem:[#allocation2 + $0x70] sm:$0xff]
    %v2900 = vadd.f32 %v2897, %v2823
    %v2901 = vxor.u32 %v2900, 2147483648
    %v2902 = vmul.f32 %v2901, 1.442695
    %v2903 = vpow.pop %v2902
    %v2904 = vadd.f32 %v2903, 1.0
    %v2905 = vrcp.pop %v2904
    %v2906 = vmul.f32 1.0, %v2905
    %v2907 = vadd.f32 %v2898, %v2825
    %v2908 = vxor.u32 %v2907, 2147483648
    %v2909 = vmul.f32 %v2908, 1.442695
    %v2910 = vpow.pop %v2909
    %v2911 = vadd.f32 %v2910, 1.0
    %v2912 = vrcp.pop %v2911
    %v2913 = vmul.f32 1.0, %v2912
    %v2914 = vadd.f32 %v2894, %v2078
    %v2915 = vmul.f32 %v2906, %v2914
    %v2916 = vadd.f32 %v2899, %v2915
    %v2917 = vtanh.pop %v2916
    %v2918 = vsub.f32 1.0, %v2913
    %v2919 = vmul.f32 %v2918, %v2917
    %v2920 = vmul.f32 %v2913, %v2752
    %v2921 = vadd.f32 %v2919, %v2920
    %v2923 = vsel %vm397, %v2921, 0
    %2925 = vmatprep.subr.mxu0 0.0
    %2926 = vmatpush1.msra.mxu0 0.0
    %2927 = vmatprep.subr.mxu0 0.0
    %2928 = vmatpush1.msra.mxu0 0.0
    %2929 = vmatprep.subr.mxu0 0.0
    %2930 = vmatpush1.msra.mxu0 0.0
    %2931 = vmatprep.subr.mxu0 0.0
    %2932 = vmatpush1.msra.mxu0 0.0
    %2933 = vmatprep.subr.mxu0 0.0
    %2934 = vmatpush1.msra.mxu0 0.0
    %2935 = vmatprep.subr.mxu0 0.0
    %2936 = vmatpush1.msra.mxu0 0.0
    %2937 = vmatprep.subr.mxu0 0.0
    %2938 = vmatpush1.msra.mxu0 0.0
    %2939 = vmatprep.subr.mxu0 0.0
    %2940 = vmatpush1.msra.mxu0 0.0
    %2941 = vmatprep.subr.mxu0 0.0
    %2942 = vmatpush1.msra.mxu0 0.0
    %2943 = vmatprep.subr.mxu0 0.0
    %2944 = vmatpush1.msra.mxu0 0.0
    %2945 = vmatprep.subr.mxu0 0.0
    %2946 = vmatpush1.msra.mxu0 0.0
    %2947 = vmatprep.subr.mxu0 0.0
    %2948 = vmatpush1.msra.mxu0 0.0
    %2949 = vmatprep.subr.mxu0 %v2071
    %2950 = vmatpush1.msra.mxu0 %v2070
    %2951 = vmatprep.subr.mxu0 %v2068
    %2952 = vmatpush1.msra.mxu0 %v2067
    %2953 = vmatprep.subr.mxu0 %v2065
    %2954 = vmatpush1.msra.mxu0 %v2064
    %2955 = vmatprep.subr.mxu0 %v2062
    %2956 = vmatpush1.msra.mxu0 %v2061
    %2957 = vmatprep.subr.mxu0 0.0
    %2958 = vmatpush2.msra.mxu0 0.0
    %2959 = vmatprep.subr.mxu0 0.0
    %2960 = vmatpush2.msra.mxu0 0.0
    %2961 = vmatprep.subr.mxu0 0.0
    %2962 = vmatpush2.msra.mxu0 0.0
    %2963 = vmatprep.subr.mxu0 0.0
    %2964 = vmatpush2.msra.mxu0 0.0
    %2965 = vmatprep.subr.mxu0 0.0
    %2966 = vmatpush2.msra.mxu0 0.0
    %2967 = vmatprep.subr.mxu0 0.0
    %2968 = vmatpush2.msra.mxu0 0.0
    %2969 = vmatprep.subr.mxu0 0.0
    %2970 = vmatpush2.msra.mxu0 0.0
    %2971 = vmatprep.subr.mxu0 0.0
    %2972 = vmatpush2.msra.mxu0 0.0
    %2973 = vmatprep.subr.mxu0 0.0
    %2974 = vmatpush2.msra.mxu0 0.0
    %2975 = vmatprep.subr.mxu0 0.0
    %2976 = vmatpush2.msra.mxu0 0.0
    %2977 = vmatprep.subr.mxu0 0.0
    %2978 = vmatpush2.msra.mxu0 0.0
    %2979 = vmatprep.subr.mxu0 0.0
    %2980 = vmatpush2.msra.mxu0 0.0
    %2981 = vmatprep.subr.mxu0 0.0
    %2982 = vmatpush2.msra.mxu0 0.0
    %2983 = vmatprep.subr.mxu0 0.0
    %2984 = vmatpush2.msra.mxu0 0.0
    %2985 = vmatprep.subr.mxu0 0.0
    %2986 = vmatpush2.msra.mxu0 0.0
    %2987 = vmatprep.subr.mxu0 0.0
    %2988 = vmatpush2.msra.mxu0 0.0
    %2989 = vmatprep.mubr.f32.mxu0 0.0
    %2990 = vmatmul.mubr.f32.gmra.mxu0 %v2923
    %v2991 = vpop.f32.mrf.mxu0
    %v2992 = vadd.f32 0.0, %v2991
    %v2993 = vpop.f32.mrf.mxu0
    %v2994 = vadd.f32 0.0, %v2993
    %2995 = vdwg.mxu0
    %2996 = vmatprep.subr.mxu0 0.0
    %2997 = vmatpush1.msra.mxu0 0.0
    %2998 = vmatprep.subr.mxu0 0.0
    %2999 = vmatpush1.msra.mxu0 0.0
    %3000 = vmatprep.subr.mxu0 0.0
    %3001 = vmatpush1.msra.mxu0 0.0
    %3002 = vmatprep.subr.mxu0 0.0
    %3003 = vmatpush1.msra.mxu0 0.0
    %3004 = vmatprep.subr.mxu0 0.0
    %3005 = vmatpush1.msra.mxu0 0.0
    %3006 = vmatprep.subr.mxu0 0.0
    %3007 = vmatpush1.msra.mxu0 0.0
    %3008 = vmatprep.subr.mxu0 0.0
    %3009 = vmatpush1.msra.mxu0 0.0
    %3010 = vmatprep.subr.mxu0 0.0
    %3011 = vmatpush1.msra.mxu0 0.0
    %3012 = vmatprep.subr.mxu0 0.0
    %3013 = vmatpush1.msra.mxu0 0.0
    %3014 = vmatprep.subr.mxu0 0.0
    %3015 = vmatpush1.msra.mxu0 0.0
    %3016 = vmatprep.subr.mxu0 0.0
    %3017 = vmatpush1.msra.mxu0 0.0
    %3018 = vmatprep.subr.mxu0 0.0
    %3019 = vmatpush1.msra.mxu0 0.0
    %3020 = vmatprep.subr.mxu0 0.0
    %3021 = vmatpush1.msra.mxu0 %v2072
    %3022 = vmatprep.subr.mxu0 0.0
    %3023 = vmatpush1.msra.mxu0 %v2069
    %3024 = vmatprep.subr.mxu0 0.0
    %3025 = vmatpush1.msra.mxu0 %v2066
    %3026 = vmatprep.subr.mxu0 0.0
    %3027 = vmatpush1.msra.mxu0 %v2063
    %3028 = vmatprep.subr.mxu0 0.0
    %3029 = vmatpush2.msra.mxu0 0.0
    %3030 = vmatprep.subr.mxu0 0.0
    %3031 = vmatpush2.msra.mxu0 0.0
    %3032 = vmatprep.subr.mxu0 0.0
    %3033 = vmatpush2.msra.mxu0 0.0
    %3034 = vmatprep.subr.mxu0 0.0
    %3035 = vmatpush2.msra.mxu0 0.0
    %3036 = vmatprep.subr.mxu0 0.0
    %3037 = vmatpush2.msra.mxu0 0.0
    %3038 = vmatprep.subr.mxu0 0.0
    %3039 = vmatpush2.msra.mxu0 0.0
    %3040 = vmatprep.subr.mxu0 0.0
    %3041 = vmatpush2.msra.mxu0 0.0
    %3042 = vmatprep.subr.mxu0 0.0
    %3043 = vmatpush2.msra.mxu0 0.0
    %3044 = vmatprep.subr.mxu0 0.0
    %3045 = vmatpush2.msra.mxu0 0.0
    %3046 = vmatprep.subr.mxu0 0.0
    %3047 = vmatpush2.msra.mxu0 0.0
    %3048 = vmatprep.subr.mxu0 0.0
    %3049 = vmatpush2.msra.mxu0 0.0
    %3050 = vmatprep.subr.mxu0 0.0
    %3051 = vmatpush2.msra.mxu0 0.0
    %3052 = vmatprep.subr.mxu0 0.0
    %3053 = vmatpush2.msra.mxu0 0.0
    %3054 = vmatprep.subr.mxu0 0.0
    %3055 = vmatpush2.msra.mxu0 0.0
    %3056 = vmatprep.subr.mxu0 0.0
    %3057 = vmatpush2.msra.mxu0 0.0
    %3058 = vmatprep.subr.mxu0 0.0
    %3059 = vmatpush2.msra.mxu0 0.0
    %3060 = vmatprep.mubr.f32.mxu0 0.0
    %3061 = vmatmul.mubr.f32.gmra.mxu0 %v2923
    %v3062 = vpop.f32.mrf.mxu0
    %v3063 = vadd.f32 0.0, %v3062
    %v3064 = vpop.f32.mrf.mxu0
    %3065 = vdwg.mxu0
    %v3066 = vld [vmem:[#allocation2 + $0x78] sm:$0xff]
    %v3067 = vld [vmem:[#allocation2 + $0x80] sm:$0xff]
    %v3068 = vld [vmem:[#allocation2 + $0x88] sm:$0xff]
    %v3069 = vadd.f32 %v3066, %v2992
    %v3070 = vxor.u32 %v3069, 2147483648
    %v3071 = vmul.f32 %v3070, 1.442695
    %v3072 = vpow.pop %v3071
    %v3073 = vadd.f32 %v3072, 1.0
    %v3074 = vrcp.pop %v3073
    %v3075 = vmul.f32 1.0, %v3074
    %v3076 = vadd.f32 %v3067, %v2994
    %v3077 = vxor.u32 %v3076, 2147483648
    %v3078 = vmul.f32 %v3077, 1.442695
    %v3079 = vpow.pop %v3078
    %v3080 = vadd.f32 %v3079, 1.0
    %v3081 = vrcp.pop %v3080
    %v3082 = vmul.f32 1.0, %v3081
    %v3083 = vadd.f32 %v3063, %v2078
    %v3084 = vmul.f32 %v3075, %v3083
    %v3085 = vadd.f32 %v3068, %v3084
    %v3086 = vtanh.pop %v3085
    %v3087 = vsub.f32 1.0, %v3082
    %v3088 = vmul.f32 %v3087, %v3086
    %v3089 = vmul.f32 %v3082, %v2921
    %v3090 = vadd.f32 %v3088, %v3089
    %v3092 = vsel %vm397, %v3090, 0
    %3094 = vmatprep.subr.mxu0 0.0
    %3095 = vmatpush1.msra.mxu0 0.0
    %3096 = vmatprep.subr.mxu0 0.0
    %3097 = vmatpush1.msra.mxu0 0.0
    %3098 = vmatprep.subr.mxu0 0.0
    %3099 = vmatpush1.msra.mxu0 0.0
    %3100 = vmatprep.subr.mxu0 0.0
    %3101 = vmatpush1.msra.mxu0 0.0
    %3102 = vmatprep.subr.mxu0 0.0
    %3103 = vmatpush1.msra.mxu0 0.0
    %3104 = vmatprep.subr.mxu0 0.0
    %3105 = vmatpush1.msra.mxu0 0.0
    %3106 = vmatprep.subr.mxu0 0.0
    %3107 = vmatpush1.msra.mxu0 0.0
    %3108 = vmatprep.subr.mxu0 0.0
    %3109 = vmatpush1.msra.mxu0 0.0
    %3110 = vmatprep.subr.mxu0 0.0
    %3111 = vmatpush1.msra.mxu0 0.0
    %3112 = vmatprep.subr.mxu0 0.0
    %3113 = vmatpush1.msra.mxu0 0.0
    %3114 = vmatprep.subr.mxu0 0.0
    %3115 = vmatpush1.msra.mxu0 0.0
    %3116 = vmatprep.subr.mxu0 0.0
    %3117 = vmatpush1.msra.mxu0 0.0
    %3118 = vmatprep.subr.mxu0 %v2071
    %3119 = vmatpush1.msra.mxu0 %v2070
    %3120 = vmatprep.subr.mxu0 %v2068
    %3121 = vmatpush1.msra.mxu0 %v2067
    %3122 = vmatprep.subr.mxu0 %v2065
    %3123 = vmatpush1.msra.mxu0 %v2064
    %3124 = vmatprep.subr.mxu0 %v2062
    %3125 = vmatpush1.msra.mxu0 %v2061
    %3126 = vmatprep.subr.mxu0 0.0
    %3127 = vmatpush2.msra.mxu0 0.0
    %3128 = vmatprep.subr.mxu0 0.0
    %3129 = vmatpush2.msra.mxu0 0.0
    %3130 = vmatprep.subr.mxu0 0.0
    %3131 = vmatpush2.msra.mxu0 0.0
    %3132 = vmatprep.subr.mxu0 0.0
    %3133 = vmatpush2.msra.mxu0 0.0
    %3134 = vmatprep.subr.mxu0 0.0
    %3135 = vmatpush2.msra.mxu0 0.0
    %3136 = vmatprep.subr.mxu0 0.0
    %3137 = vmatpush2.msra.mxu0 0.0
    %3138 = vmatprep.subr.mxu0 0.0
    %3139 = vmatpush2.msra.mxu0 0.0
    %3140 = vmatprep.subr.mxu0 0.0
    %3141 = vmatpush2.msra.mxu0 0.0
    %3142 = vmatprep.subr.mxu0 0.0
    %3143 = vmatpush2.msra.mxu0 0.0
    %3144 = vmatprep.subr.mxu0 0.0
    %3145 = vmatpush2.msra.mxu0 0.0
    %3146 = vmatprep.subr.mxu0 0.0
    %3147 = vmatpush2.msra.mxu0 0.0
    %3148 = vmatprep.subr.mxu0 0.0
    %3149 = vmatpush2.msra.mxu0 0.0
    %3150 = vmatprep.subr.mxu0 0.0
    %3151 = vmatpush2.msra.mxu0 0.0
    %3152 = vmatprep.subr.mxu0 0.0
    %3153 = vmatpush2.msra.mxu0 0.0
    %3154 = vmatprep.subr.mxu0 0.0
    %3155 = vmatpush2.msra.mxu0 0.0
    %3156 = vmatprep.subr.mxu0 0.0
    %3157 = vmatpush2.msra.mxu0 0.0
    %3158 = vmatprep.mubr.f32.mxu0 0.0
    %3159 = vmatmul.mubr.f32.gmra.mxu0 %v3092
    %v3160 = vpop.f32.mrf.mxu0
    %v3161 = vadd.f32 0.0, %v3160
    %v3162 = vpop.f32.mrf.mxu0
    %v3163 = vadd.f32 0.0, %v3162
    %3164 = vdwg.mxu0
    %3165 = vmatprep.subr.mxu0 0.0
    %3166 = vmatpush1.msra.mxu0 0.0
    %3167 = vmatprep.subr.mxu0 0.0
    %3168 = vmatpush1.msra.mxu0 0.0
    %3169 = vmatprep.subr.mxu0 0.0
    %3170 = vmatpush1.msra.mxu0 0.0
    %3171 = vmatprep.subr.mxu0 0.0
    %3172 = vmatpush1.msra.mxu0 0.0
    %3173 = vmatprep.subr.mxu0 0.0
    %3174 = vmatpush1.msra.mxu0 0.0
    %3175 = vmatprep.subr.mxu0 0.0
    %3176 = vmatpush1.msra.mxu0 0.0
    %3177 = vmatprep.subr.mxu0 0.0
    %3178 = vmatpush1.msra.mxu0 0.0
    %3179 = vmatprep.subr.mxu0 0.0
    %3180 = vmatpush1.msra.mxu0 0.0
    %3181 = vmatprep.subr.mxu0 0.0
    %3182 = vmatpush1.msra.mxu0 0.0
    %3183 = vmatprep.subr.mxu0 0.0
    %3184 = vmatpush1.msra.mxu0 0.0
    %3185 = vmatprep.subr.mxu0 0.0
    %3186 = vmatpush1.msra.mxu0 0.0
    %3187 = vmatprep.subr.mxu0 0.0
    %3188 = vmatpush1.msra.mxu0 0.0
    %3189 = vmatprep.subr.mxu0 0.0
    %3190 = vmatpush1.msra.mxu0 %v2072
    %3191 = vmatprep.subr.mxu0 0.0
    %3192 = vmatpush1.msra.mxu0 %v2069
    %3193 = vmatprep.subr.mxu0 0.0
    %3194 = vmatpush1.msra.mxu0 %v2066
    %3195 = vmatprep.subr.mxu0 0.0
    %3196 = vmatpush1.msra.mxu0 %v2063
    %3197 = vmatprep.subr.mxu0 0.0
    %3198 = vmatpush2.msra.mxu0 0.0
    %3199 = vmatprep.subr.mxu0 0.0
    %3200 = vmatpush2.msra.mxu0 0.0
    %3201 = vmatprep.subr.mxu0 0.0
    %3202 = vmatpush2.msra.mxu0 0.0
    %3203 = vmatprep.subr.mxu0 0.0
    %3204 = vmatpush2.msra.mxu0 0.0
    %3205 = vmatprep.subr.mxu0 0.0
    %3206 = vmatpush2.msra.mxu0 0.0
    %3207 = vmatprep.subr.mxu0 0.0
    %3208 = vmatpush2.msra.mxu0 0.0
    %3209 = vmatprep.subr.mxu0 0.0
    %3210 = vmatpush2.msra.mxu0 0.0
    %3211 = vmatprep.subr.mxu0 0.0
    %3212 = vmatpush2.msra.mxu0 0.0
    %3213 = vmatprep.subr.mxu0 0.0
    %3214 = vmatpush2.msra.mxu0 0.0
    %3215 = vmatprep.subr.mxu0 0.0
    %3216 = vmatpush2.msra.mxu0 0.0
    %3217 = vmatprep.subr.mxu0 0.0
    %3218 = vmatpush2.msra.mxu0 0.0
    %3219 = vmatprep.subr.mxu0 0.0
    %3220 = vmatpush2.msra.mxu0 0.0
    %3221 = vmatprep.subr.mxu0 0.0
    %3222 = vmatpush2.msra.mxu0 0.0
    %3223 = vmatprep.subr.mxu0 0.0
    %3224 = vmatpush2.msra.mxu0 0.0
    %3225 = vmatprep.subr.mxu0 0.0
    %3226 = vmatpush2.msra.mxu0 0.0
    %3227 = vmatprep.subr.mxu0 0.0
    %3228 = vmatpush2.msra.mxu0 0.0
    %3229 = vmatprep.mubr.f32.mxu0 0.0
    %3230 = vmatmul.mubr.f32.gmra.mxu0 %v3092
    %v3231 = vpop.f32.mrf.mxu0
    %v3232 = vadd.f32 0.0, %v3231
    %v3233 = vpop.f32.mrf.mxu0
    %3234 = vdwg.mxu0
    %v3235 = vld [vmem:[#allocation2 + $0x90] sm:$0xff]
    %v3236 = vld [vmem:[#allocation2 + $0x98] sm:$0xff]
    %v3237 = vld [vmem:[#allocation2 + $0xa0] sm:$0xff]
    %v3238 = vadd.f32 %v3235, %v3161
    %v3239 = vxor.u32 %v3238, 2147483648
    %v3240 = vmul.f32 %v3239, 1.442695
    %v3241 = vpow.pop %v3240
    %v3242 = vadd.f32 %v3241, 1.0
    %v3243 = vrcp.pop %v3242
    %v3244 = vmul.f32 1.0, %v3243
    %v3245 = vadd.f32 %v3236, %v3163
    %v3246 = vxor.u32 %v3245, 2147483648
    %v3247 = vmul.f32 %v3246, 1.442695
    %v3248 = vpow.pop %v3247
    %v3249 = vadd.f32 %v3248, 1.0
    %v3250 = vrcp.pop %v3249
    %v3251 = vmul.f32 1.0, %v3250
    %v3252 = vadd.f32 %v3232, %v2078
    %v3253 = vmul.f32 %v3244, %v3252
    %v3254 = vadd.f32 %v3237, %v3253
    %v3255 = vtanh.pop %v3254
    %v3256 = vsub.f32 1.0, %v3251
    %v3257 = vmul.f32 %v3256, %v3255
    %v3258 = vmul.f32 %v3251, %v3090
    %v3259 = vadd.f32 %v3257, %v3258
    %v3261 = vsel %vm397, %v3259, 0
    %3263 = vmatprep.subr.mxu0 0.0
    %3264 = vmatpush1.msra.mxu0 0.0
    %3265 = vmatprep.subr.mxu0 0.0
    %3266 = vmatpush1.msra.mxu0 0.0
    %3267 = vmatprep.subr.mxu0 0.0
    %3268 = vmatpush1.msra.mxu0 0.0
    %3269 = vmatprep.subr.mxu0 0.0
    %3270 = vmatpush1.msra.mxu0 0.0
    %3271 = vmatprep.subr.mxu0 0.0
    %3272 = vmatpush1.msra.mxu0 0.0
    %3273 = vmatprep.subr.mxu0 0.0
    %3274 = vmatpush1.msra.mxu0 0.0
    %3275 = vmatprep.subr.mxu0 0.0
    %3276 = vmatpush1.msra.mxu0 0.0
    %3277 = vmatprep.subr.mxu0 0.0
    %3278 = vmatpush1.msra.mxu0 0.0
    %3279 = vmatprep.subr.mxu0 0.0
    %3280 = vmatpush1.msra.mxu0 0.0
    %3281 = vmatprep.subr.mxu0 0.0
    %3282 = vmatpush1.msra.mxu0 0.0
    %3283 = vmatprep.subr.mxu0 0.0
    %3284 = vmatpush1.msra.mxu0 0.0
    %3285 = vmatprep.subr.mxu0 0.0
    %3286 = vmatpush1.msra.mxu0 0.0
    %3287 = vmatprep.subr.mxu0 %v2071
    %3288 = vmatpush1.msra.mxu0 %v2070
    %3289 = vmatprep.subr.mxu0 %v2068
    %3290 = vmatpush1.msra.mxu0 %v2067
    %3291 = vmatprep.subr.mxu0 %v2065
    %3292 = vmatpush1.msra.mxu0 %v2064
    %3293 = vmatprep.subr.mxu0 %v2062
    %3294 = vmatpush1.msra.mxu0 %v2061
    %3295 = vmatprep.subr.mxu0 0.0
    %3296 = vmatpush2.msra.mxu0 0.0
    %3297 = vmatprep.subr.mxu0 0.0
    %3298 = vmatpush2.msra.mxu0 0.0
    %3299 = vmatprep.subr.mxu0 0.0
    %3300 = vmatpush2.msra.mxu0 0.0
    %3301 = vmatprep.subr.mxu0 0.0
    %3302 = vmatpush2.msra.mxu0 0.0
    %3303 = vmatprep.subr.mxu0 0.0
    %3304 = vmatpush2.msra.mxu0 0.0
    %3305 = vmatprep.subr.mxu0 0.0
    %3306 = vmatpush2.msra.mxu0 0.0
    %3307 = vmatprep.subr.mxu0 0.0
    %3308 = vmatpush2.msra.mxu0 0.0
    %3309 = vmatprep.subr.mxu0 0.0
    %3310 = vmatpush2.msra.mxu0 0.0
    %3311 = vmatprep.subr.mxu0 0.0
    %3312 = vmatpush2.msra.mxu0 0.0
    %3313 = vmatprep.subr.mxu0 0.0
    %3314 = vmatpush2.msra.mxu0 0.0
    %3315 = vmatprep.subr.mxu0 0.0
    %3316 = vmatpush2.msra.mxu0 0.0
    %3317 = vmatprep.subr.mxu0 0.0
    %3318 = vmatpush2.msra.mxu0 0.0
    %3319 = vmatprep.subr.mxu0 0.0
    %3320 = vmatpush2.msra.mxu0 0.0
    %3321 = vmatprep.subr.mxu0 0.0
    %3322 = vmatpush2.msra.mxu0 0.0
    %3323 = vmatprep.subr.mxu0 0.0
    %3324 = vmatpush2.msra.mxu0 0.0
    %3325 = vmatprep.subr.mxu0 0.0
    %3326 = vmatpush2.msra.mxu0 0.0
    %3327 = vmatprep.mubr.f32.mxu0 0.0
    %3328 = vmatmul.mubr.f32.gmra.mxu0 %v3261
    %v3329 = vpop.f32.mrf.mxu0
    %v3330 = vadd.f32 0.0, %v3329
    %v3331 = vpop.f32.mrf.mxu0
    %v3332 = vadd.f32 0.0, %v3331
    %3333 = vdwg.mxu0
    %3334 = vmatprep.subr.mxu0 0.0
    %3335 = vmatpush1.msra.mxu0 0.0
    %3336 = vmatprep.subr.mxu0 0.0
    %3337 = vmatpush1.msra.mxu0 0.0
    %3338 = vmatprep.subr.mxu0 0.0
    %3339 = vmatpush1.msra.mxu0 0.0
    %3340 = vmatprep.subr.mxu0 0.0
    %3341 = vmatpush1.msra.mxu0 0.0
    %3342 = vmatprep.subr.mxu0 0.0
    %3343 = vmatpush1.msra.mxu0 0.0
    %3344 = vmatprep.subr.mxu0 0.0
    %3345 = vmatpush1.msra.mxu0 0.0
    %3346 = vmatprep.subr.mxu0 0.0
    %3347 = vmatpush1.msra.mxu0 0.0
    %3348 = vmatprep.subr.mxu0 0.0
    %3349 = vmatpush1.msra.mxu0 0.0
    %3350 = vmatprep.subr.mxu0 0.0
    %3351 = vmatpush1.msra.mxu0 0.0
    %3352 = vmatprep.subr.mxu0 0.0
    %3353 = vmatpush1.msra.mxu0 0.0
    %3354 = vmatprep.subr.mxu0 0.0
    %3355 = vmatpush1.msra.mxu0 0.0
    %3356 = vmatprep.subr.mxu0 0.0
    %3357 = vmatpush1.msra.mxu0 0.0
    %3358 = vmatprep.subr.mxu0 0.0
    %3359 = vmatpush1.msra.mxu0 %v2072
    %3360 = vmatprep.subr.mxu0 0.0
    %3361 = vmatpush1.msra.mxu0 %v2069
    %3362 = vmatprep.subr.mxu0 0.0
    %3363 = vmatpush1.msra.mxu0 %v2066
    %3364 = vmatprep.subr.mxu0 0.0
    %3365 = vmatpush1.msra.mxu0 %v2063
    %3366 = vmatprep.subr.mxu0 0.0
    %3367 = vmatpush2.msra.mxu0 0.0
    %3368 = vmatprep.subr.mxu0 0.0
    %3369 = vmatpush2.msra.mxu0 0.0
    %3370 = vmatprep.subr.mxu0 0.0
    %3371 = vmatpush2.msra.mxu0 0.0
    %3372 = vmatprep.subr.mxu0 0.0
    %3373 = vmatpush2.msra.mxu0 0.0
    %3374 = vmatprep.subr.mxu0 0.0
    %3375 = vmatpush2.msra.mxu0 0.0
    %3376 = vmatprep.subr.mxu0 0.0
    %3377 = vmatpush2.msra.mxu0 0.0
    %3378 = vmatprep.subr.mxu0 0.0
    %3379 = vmatpush2.msra.mxu0 0.0
    %3380 = vmatprep.subr.mxu0 0.0
    %3381 = vmatpush2.msra.mxu0 0.0
    %3382 = vmatprep.subr.mxu0 0.0
    %3383 = vmatpush2.msra.mxu0 0.0
    %3384 = vmatprep.subr.mxu0 0.0
    %3385 = vmatpush2.msra.mxu0 0.0
    %3386 = vmatprep.subr.mxu0 0.0
    %3387 = vmatpush2.msra.mxu0 0.0
    %3388 = vmatprep.subr.mxu0 0.0
    %3389 = vmatpush2.msra.mxu0 0.0
    %3390 = vmatprep.subr.mxu0 0.0
    %3391 = vmatpush2.msra.mxu0 0.0
    %3392 = vmatprep.subr.mxu0 0.0
    %3393 = vmatpush2.msra.mxu0 0.0
    %3394 = vmatprep.subr.mxu0 0.0
    %3395 = vmatpush2.msra.mxu0 0.0
    %3396 = vmatprep.subr.mxu0 0.0
    %3397 = vmatpush2.msra.mxu0 0.0
    %3398 = vmatprep.mubr.f32.mxu0 0.0
    %3399 = vmatmul.mubr.f32.gmra.mxu0 %v3261
    %v3400 = vpop.f32.mrf.mxu0
    %v3401 = vadd.f32 0.0, %v3400
    %v3402 = vpop.f32.mrf.mxu0
    %3403 = vdwg.mxu0
    %v3404 = vld [vmem:[#allocation2 + $0xa8] sm:$0xff]
    %v3405 = vld [vmem:[#allocation2 + $0xb0] sm:$0xff]
    %v3406 = vld [vmem:[#allocation2 + $0xb8] sm:$0xff]
    %v3407 = vadd.f32 %v3404, %v3330
    %v3408 = vxor.u32 %v3407, 2147483648
    %v3409 = vmul.f32 %v3408, 1.442695
    %v3410 = vpow.pop %v3409
    %v3411 = vadd.f32 %v3410, 1.0
    %v3412 = vrcp.pop %v3411
    %v3413 = vmul.f32 1.0, %v3412
    %v3414 = vadd.f32 %v3405, %v3332
    %v3415 = vxor.u32 %v3414, 2147483648
    %v3416 = vmul.f32 %v3415, 1.442695
    %v3417 = vpow.pop %v3416
    %v3418 = vadd.f32 %v3417, 1.0
    %v3419 = vrcp.pop %v3418
    %v3420 = vmul.f32 1.0, %v3419
    %v3421 = vadd.f32 %v3401, %v2078
    %v3422 = vmul.f32 %v3413, %v3421
    %v3423 = vadd.f32 %v3406, %v3422
    %v3424 = vtanh.pop %v3423
    %v3425 = vsub.f32 1.0, %v3420
    %v3426 = vmul.f32 %v3425, %v3424
    %v3427 = vmul.f32 %v3420, %v3259
    %v3428 = vadd.f32 %v3426, %v3427
    %v3429 = vld [vmem:[%s9] sm:$0xff]
    %v3430 = vld [vmem:[%s9 + $0x8] sm:$0xff]
    %v3431 = vld [vmem:[%s9 + $0x10] sm:$0xff]
    %v3432 = vld [vmem:[%s9 + $0x18] sm:$0xff]
    %v3433 = vld [vmem:[%s10] sm:$0x1]
    %v3435 = vlaneseq
    %v3436 = vshrl.u32 %v3435, 7
    %v3437 = vsub.s32 0, %v3436
    %v3438 = vrot.slane %v3433, %v3437
    %v3441 = vsel %vm397, %v3428, 0
    %3443 = vmatprep.subr.mxu0 0.0
    %3444 = vmatpush1.msra.mxu0 0.0
    %3445 = vmatprep.subr.mxu0 0.0
    %3446 = vmatpush1.msra.mxu0 0.0
    %3447 = vmatprep.subr.mxu0 0.0
    %3448 = vmatpush1.msra.mxu0 0.0
    %3449 = vmatprep.subr.mxu0 0.0
    %3450 = vmatpush1.msra.mxu0 0.0
    %3451 = vmatprep.subr.mxu0 0.0
    %3452 = vmatpush1.msra.mxu0 0.0
    %3453 = vmatprep.subr.mxu0 0.0
    %3454 = vmatpush1.msra.mxu0 0.0
    %3455 = vmatprep.subr.mxu0 0.0
    %3456 = vmatpush1.msra.mxu0 0.0
    %3457 = vmatprep.subr.mxu0 0.0
    %3458 = vmatpush1.msra.mxu0 0.0
    %3459 = vmatprep.subr.mxu0 0.0
    %3460 = vmatpush1.msra.mxu0 0.0
    %3461 = vmatprep.subr.mxu0 0.0
    %3462 = vmatpush1.msra.mxu0 0.0
    %3463 = vmatprep.subr.mxu0 0.0
    %3464 = vmatpush1.msra.mxu0 0.0
    %3465 = vmatprep.subr.mxu0 0.0
    %3466 = vmatpush1.msra.mxu0 0.0
    %3467 = vmatprep.subr.mxu0 0.0
    %3468 = vmatpush1.msra.mxu0 %v3432
    %3469 = vmatprep.subr.mxu0 0.0
    %3470 = vmatpush1.msra.mxu0 %v3431
    %3471 = vmatprep.subr.mxu0 0.0
    %3472 = vmatpush1.msra.mxu0 %v3430
    %3473 = vmatprep.subr.mxu0 0.0
    %3474 = vmatpush1.msra.mxu0 %v3429
    %3475 = vmatprep.subr.mxu0 0.0
    %3476 = vmatpush2.msra.mxu0 0.0
    %3477 = vmatprep.subr.mxu0 0.0
    %3478 = vmatpush2.msra.mxu0 0.0
    %3479 = vmatprep.subr.mxu0 0.0
    %3480 = vmatpush2.msra.mxu0 0.0
    %3481 = vmatprep.subr.mxu0 0.0
    %3482 = vmatpush2.msra.mxu0 0.0
    %3483 = vmatprep.subr.mxu0 0.0
    %3484 = vmatpush2.msra.mxu0 0.0
    %3485 = vmatprep.subr.mxu0 0.0
    %3486 = vmatpush2.msra.mxu0 0.0
    %3487 = vmatprep.subr.mxu0 0.0
    %3488 = vmatpush2.msra.mxu0 0.0
    %3489 = vmatprep.subr.mxu0 0.0
    %3490 = vmatpush2.msra.mxu0 0.0
    %3491 = vmatprep.subr.mxu0 0.0
    %3492 = vmatpush2.msra.mxu0 0.0
    %3493 = vmatprep.subr.mxu0 0.0
    %3494 = vmatpush2.msra.mxu0 0.0
    %3495 = vmatprep.subr.mxu0 0.0
    %3496 = vmatpush2.msra.mxu0 0.0
    %3497 = vmatprep.subr.mxu0 0.0
    %3498 = vmatpush2.msra.mxu0 0.0
    %3499 = vmatprep.subr.mxu0 0.0
    %3500 = vmatpush2.msra.mxu0 0.0
    %3501 = vmatprep.subr.mxu0 0.0
    %3502 = vmatpush2.msra.mxu0 0.0
    %3503 = vmatprep.subr.mxu0 0.0
    %3504 = vmatpush2.msra.mxu0 0.0
    %3505 = vmatprep.subr.mxu0 0.0
    %3506 = vmatpush2.msra.mxu0 0.0
    %3507 = vmatprep.mubr.f32.mxu0 0.0
    %3508 = vmatmul.mubr.f32.gmra.mxu0 %v3441
    %v3509 = vpop.f32.mrf.mxu0
    %v3510 = vadd.f32 %v3438, %v3509
    %v3511 = vpop.f32.mrf.mxu0
    %3512 = vdwg.mxu0
    %3513 = vst [vmem:[#allocation10] sm:$0xff] %v3510
    // Predicated region
    $region58: #{tpu_custom_call.1} parent=1 // pred_check
      _
    $region59: #{tpu_custom_call.1} parent=1 // pred_check_branch
      %3515 = sbr.rel (0) target = $region61
    $region60: #{tpu_custom_call.1} parent=1 // pred_region
      %s3517 = ssub.s32 128, 128
      %3518 = vsyncadd [#allocation6], %s3517
      %s3520 = sshll.u32 [#allocation10], 4
      %s3521 = int_to_ptr.vmem [resolvable:$true] %s3520
      %3523 = dma.vmem_to_hbm [thread:$0]  %s3521, 128, %s11, [#allocation6]
    $region61: #{tpu_custom_call.1} parent=1 // pred_fallthru
      _
    // Predicated region
    $region62: #{tpu_custom_call.1} parent=1 // pred_check
      _
    $region63: #{tpu_custom_call.1} parent=1 // pred_check_branch
      %3525 = sbr.rel (0) target = $region65
    $region64: #{tpu_custom_call.1} parent=1 // pred_region
      %3526 = dma.done [#allocation6], 128
    $region65: #{tpu_custom_call.1} parent=1 // pred_fallthru
      _
    %3527 = vsyncpa [#allocation5], 1
    %3528 = vsyncpa [#allocation8], 1
    %3529 = vsyncpa [#allocation6], 1

</llo_original>
